<compile_context>
chip_gen: v5e
topology: v5e:2x2
jax: 0.10.0
libtpu: 0.0.40
codegen_flags: <defaults>
</compile_context>

<pallas_src>
import functools

import numpy as np
import jax
import jax.numpy as jnp
from jax import lax
from jax.experimental import pallas as pl
from jax.experimental.pallas import tpu as pltpu

START_TAG, STOP_TAG = "<START>", "<STOP>"
EMO_TO_IX = {"ang": 0, "hap": 1, "neu": 2, "sad": 3, START_TAG: 4, STOP_TAG: 5}
NT = len(EMO_TO_IX)          # 6 real tags
NT_PAD = 8                   # padded tagset size (one sublane group)
START_IX = EMO_TO_IX[START_TAG]
STOP_IX = EMO_TO_IX[STOP_TAG]
NEG = -10000.0               # same constant the PyTorch module uses
PAD = -1e9                   # transition padding, strictly dominated everywhere


def viterbi_kernel(feat_ref, trans_ref, score_ref, path_ref, bp_ref):
    """Viterbi-decode one tile of dialogs (tags on sublanes, dialogs on lanes).

    feat_ref  : (T, 8, Bt) f32 VMEM   feats[t, tag, dialog]
    trans_ref : (8, 8)     f32 VMEM   transitions[next, prev] (PAD outside 6x6)
    score_ref : (1, Bt)    f32 VMEM   best path score per dialog
    path_ref  : (T, Bt)    i32 VMEM   decoded tag sequence per dialog
    bp_ref    : (T, 8, Bt) i32 VMEM scratch   backpointers[t, next, dialog]
    """
    T, NTP, Bt = feat_ref.shape

    trans = trans_ref[...]                                    # [next, prev]
    # Hoisted lane-broadcast of the transitions: trans_b[next, prev, dialog].
    trans_b = jnp.broadcast_to(trans[:, :, None], (NTP, NTP, Bt))

    prev_iota = lax.broadcasted_iota(jnp.int32, (NTP, NTP, Bt), 1)  # prev tag id
    tag_iota = lax.broadcasted_iota(jnp.int32, (NTP, Bt), 0)        # tag id (sublanes)

    # init: fv[prev_tag, dialog]
    fv = jnp.where(tag_iota == START_IX, 0.0, NEG).astype(jnp.float32)

    # ---- forward recursion (fully unrolled; T is static) ----------------------
    # Only add-trans + max-reduce + add-feat are serially dependent; the
    # backpointer argmax and its VMEM spill hang off the side of the chain.
    for t in range(T):
        ntv = fv[None, :, :] + trans_b                         # (next, prev, b)
        vmax = jnp.max(ntv, axis=1)                            # (next, b)
        cand = jnp.where(ntv == vmax[:, None, :], prev_iota, NTP)
        bp_ref[t] = jnp.min(cand, axis=1)                      # first-occurrence argmax
        fv = vmax + feat_ref[t]                                # (next, b)

    # ---- terminal step: forward_var + transitions[STOP, prev] -----------------
    terminal = fv + trans_b[STOP_IX]                           # (prev, b)
    tmax = jnp.max(terminal, axis=0, keepdims=True)            # (1, b)
    cand = jnp.where(terminal == tmax, tag_iota, NTP)
    cur = jnp.min(cand, axis=0, keepdims=True)                 # (1, b) i32
    score_ref[...] = tmax

    # ---- backtrace: path emitted as one lane-dense (T, Bt) store --------------
    rows = [None] * T
    rows[T - 1] = cur
    for t in range(T - 1, 0, -1):
        bp = bp_ref[t]                                         # (next, b)
        cur = jnp.sum(jnp.where(tag_iota == cur, bp, 0), axis=0, keepdims=True)
        rows[t - 1] = cur
    path_ref[...] = jnp.concatenate(rows, axis=0)


def make_transitions(key):
    """nn.Parameter(torch.randn(NT, NT) * 0.0001) with START/STOP constraints."""
    t = jax.random.normal(key, (NT, NT), dtype=jnp.float32) * 0.0001
    t = t.at[START_IX, :].set(NEG)
    t = t.at[:, STOP_IX].set(NEG)
    return t


def prepare_tables(transitions, out_table):
    """One-time padding of the CRF parameters (hoisted out of the per-call jit)."""
    trans_np = jnp.full((NT_PAD, NT_PAD), PAD, jnp.float32)
    trans_np = trans_np.at[:NT, :NT].set(transitions)          # [next, prev]
    vocab = out_table.shape[0]
    out_pad = jnp.zeros((vocab, NT_PAD), jnp.float32).at[:, :4].set(out_table)
    return out_pad, trans_np


@functools.partial(jax.jit, static_argnames=("block_b",))
def crf_viterbi_batch(sentences, out_pad, trans_np, block_b=128):
    """Viterbi-decode a batch of dialogs; one tile of `block_b` dialogs per grid step."""
    sentences = sentences.astype(jnp.int32)
    B, T = sentences.shape

    # Feature build in plain XLA (keeps the (vocab, 8) table out of kernel VMEM):
    # emission gather + the +-3 START/STOP position features.
    feats = out_pad[sentences]                                 # (B, T, 8)
    pos = jnp.zeros((T, NT_PAD), jnp.float32)
    pos = pos.at[:, START_IX].set(-3.0).at[0, START_IX].set(3.0)
    pos = pos.at[:, STOP_IX].set(-3.0).at[T - 1, STOP_IX].set(3.0)
    feats = feats + pos[None, :, :]

    # Kernel layout: tags on sublanes, dialogs on lanes -> (T, 8, B_pad).
    feats = jnp.transpose(feats, (1, 2, 0))                    # (T, 8, B)
    n_tiles = max(1, -(-B // block_b))
    b_pad = n_tiles * block_b
    if b_pad != B:
        feats = jnp.pad(feats, ((0, 0), (0, 0), (0, b_pad - B)))

    scores, paths = pl.pallas_call(
        viterbi_kernel,
        out_shape=(jax.ShapeDtypeStruct((n_tiles, 1, block_b), jnp.float32),
                   jax.ShapeDtypeStruct((n_tiles, T, block_b), jnp.int32)),
        grid=(n_tiles,),
        in_specs=[pl.BlockSpec((T, NT_PAD, block_b), lambda i: (0, 0, i)),
                  pl.BlockSpec(memory_space=pltpu.MemorySpace.VMEM)],   # 8x8 transitions, resident
        out_specs=(pl.BlockSpec((None, 1, block_b), lambda i: (i, 0, 0)),
                   pl.BlockSpec((None, T, block_b), lambda i: (i, 0, 0))),
        scratch_shapes=[pltpu.VMEM((T, NT_PAD, block_b), jnp.int32)],   # backpointers
        compiler_params=pltpu.CompilerParams(
            dimension_semantics=("parallel",)),    # v7x: dialog tiles split over both TCs
    )(feats, trans_np)

    scores = scores.reshape(b_pad)[:B]
    paths = jnp.transpose(paths, (0, 2, 1)).reshape(b_pad, T)[:B]
    return scores, paths


def crf_forward(sentence, out_pad, trans_np):
    """CRF.forward(sentence, out_dict) -> (path_score, tag_seq) for one dialog."""
    scores, paths = crf_viterbi_batch(sentence[None, :], out_pad, trans_np)
    return scores[0], paths[0]


# ----------------------------- numpy reference --------------------------------
def ref_features(sentence, out_table):
    """Replica of _get_pretrain_model_features (f32)."""
    T = len(sentence)
    feats = np.zeros((T, NT), np.float32)
    feats[:, :4] = out_table[sentence]
    feats[:, 4] = -3.0
    feats[0, 4] = 3.0
    feats[:, 5] = -3.0
    feats[T - 1, 5] = 3.0
    return feats


def viterbi_ref(feats, trans):
    """Pure-numpy replica of CRF._viterbi_decode for verification."""
    T, _ = feats.shape
    fv = np.full((NT,), NEG, np.float32)
    fv[START_IX] = 0.0
    bptrs = []
    for t in range(T):
        ntv = fv[None, :] + trans                # [next, prev]
        best = np.argmax(ntv, axis=1)
        fv = ntv[np.arange(NT), best] + feats[t]
        bptrs.append(best)
    terminal = fv + trans[STOP_IX]
    best_last = int(np.argmax(terminal))
    score = float(terminal[best_last])
    path = [best_last]
    for bp in reversed(bptrs):
        path.append(int(bp[path[-1]]))
    start = path.pop()
    assert start == START_IX
    path.reverse()
    return score, path


if __name__ == "__main__":
    key = jax.random.PRNGKey(0)
    k1, k2, k3 = jax.random.split(key, 3)

    # 136 dialogs -> two 128-lane tiles (2 grid steps; exercises padding + megacore).
    vocab_size, B, T = 20, 136, 9

    transitions = make_transitions(k1)                                # (6, 6)
    out_table = jax.random.normal(k2, (vocab_size, 4), jnp.float32)   # pretrain outputs
    sentences = jax.random.randint(k3, (B, T), 0, vocab_size)         # utterance ids

    out_pad, trans_np = prepare_tables(transitions, out_table)
    scores, paths = crf_viterbi_batch(sentences, out_pad, trans_np)
    jax.block_until_ready((scores, paths))

    # verify against a pure-numpy reference of the PyTorch Viterbi decode
    trans_host = np.asarray(transitions, np.float32)
    table_host = np.asarray(out_table, np.float32)
    sent_host = np.asarray(sentences)
    scores_host = np.asarray(scores)
    paths_host = np.asarray(paths)
    for bi in range(B):
        feats = ref_features(sent_host[bi], table_host)
        ref_score, ref_path = viterbi_ref(feats, trans_host)
        assert np.allclose(float(scores_host[bi]), ref_score, atol=1e-3), (
            bi, float(scores_host[bi]), ref_score)
        assert list(map(int, paths_host[bi])) == ref_path, (
            bi, paths_host[bi], ref_path)

    print("KERNEL_OK")
</pallas_src>

<mosaic_0001>
module attributes {stable_mosaic.version = 11 : i64} {
  func.func @viterbi_kernel(%arg0: i32, %arg1: memref<9x8x128xf32, #tpu.memory_space<vmem>>, %arg2: memref<8x8xf32, #tpu.memory_space<vmem>>, %arg3: memref<1x1x128xf32, #tpu.memory_space<vmem>>, %arg4: memref<1x9x128xi32, #tpu.memory_space<vmem>>, %arg5: memref<9x8x128xi32, #tpu.memory_space<vmem>>) attributes {dimension_semantics = [#tpu.dimension_semantics<parallel>], iteration_bounds = array<i64: 2>, scalar_prefetch = 0 : i64, scratch_operands = 1 : i64, tpu.core_type = #tpu.core_type<tc>, window_params = [{transform_indices = @transform_0, window_bounds = array<i64: 9, 8, 128>}, {pipeline_mode = #tpu.pipeline_mode<synchronous>, transform_indices = @transform_1, window_bounds = array<i64: 8, 8>}, {transform_indices = @transform_2, window_bounds = array<i64: 1, 1, 128>}, {transform_indices = @transform_3, window_bounds = array<i64: 1, 9, 128>}]} {
    %c0 = arith.constant 0 : index
    %c0_0 = arith.constant 0 : index
    %0 = vector.load %arg2[%c0, %c0_0] : memref<8x8xf32, #tpu.memory_space<vmem>>, vector<8x8xf32>
    %1 = vector.shape_cast %0 : vector<8x8xf32> to vector<8x8x1xf32>
    %2 = vector.shape_cast %1 : vector<8x8x1xf32> to vector<8x8x1xf32>
    %3 = vector.broadcast %2 : vector<8x8x1xf32> to vector<8x8x128xf32>
    %4 = tpu.iota {dimensions = array<i32: 1>} : vector<8x8x128xi32>
    %5 = tpu.iota {dimensions = array<i32: 0>} : vector<8x128xi32>
    %c4_i32 = arith.constant 4 : i32
    %6 = vector.broadcast %c4_i32 : i32 to vector<8x128xi32>
    %7 = arith.cmpi eq, %5, %6 : vector<8x128xi32>
    %cst = arith.constant 0.000000e+00 : f32
    %cst_1 = arith.constant -1.000000e+04 : f32
    %8 = vector.broadcast %cst : f32 to vector<8x128xf32>
    %9 = vector.broadcast %cst_1 : f32 to vector<8x128xf32>
    %10 = arith.select %7, %8, %9 : vector<8x128xi1>, vector<8x128xf32>
    %11 = vector.shape_cast %10 : vector<8x128xf32> to vector<1x8x128xf32>
    %12 = vector.broadcast %11 : vector<1x8x128xf32> to vector<8x8x128xf32>
    %13 = arith.addf %12, %3 : vector<8x8x128xf32>
    %cst_2 = arith.constant dense<0xFF800000> : vector<8x128xf32>
    %14 = vector.multi_reduction <maximumf>, %13, %cst_2 [1] : vector<8x8x128xf32> to vector<8x128xf32>
    %15 = vector.shape_cast %14 : vector<8x128xf32> to vector<8x1x128xf32>
    %16 = vector.broadcast %15 : vector<8x1x128xf32> to vector<8x8x128xf32>
    %17 = arith.cmpf oeq, %13, %16 : vector<8x8x128xf32>
    %c8_i32 = arith.constant 8 : i32
    %18 = vector.broadcast %c8_i32 : i32 to vector<8x8x128xi32>
    %19 = arith.select %17, %4, %18 : vector<8x8x128xi1>, vector<8x8x128xi32>
    %cst_3 = arith.constant dense<2147483647> : vector<8x128xi32>
    %20 = vector.multi_reduction <minsi>, %19, %cst_3 [1] : vector<8x8x128xi32> to vector<8x128xi32>
    %c0_4 = arith.constant 0 : index
    %c0_5 = arith.constant 0 : index
    %c0_6 = arith.constant 0 : index
    %21 = vector.load %arg5[%c0_4, %c0_5, %c0_6] : memref<9x8x128xi32, #tpu.memory_space<vmem>>, vector<1x8x128xi32>
    %22 = vector.shape_cast %21 : vector<1x8x128xi32> to vector<8x128xi32>
    %23 = vector.shape_cast %20 : vector<8x128xi32> to vector<1x8x128xi32>
    tpu.vector_store %arg5[%c0_4, %c0_5, %c0_6], %23 {strides = array<i32>} : memref<9x8x128xi32, #tpu.memory_space<vmem>>, vector<1x8x128xi32>,
    %c0_7 = arith.constant 0 : index
    %c0_8 = arith.constant 0 : index
    %c0_9 = arith.constant 0 : index
    %24 = vector.load %arg1[%c0_7, %c0_8, %c0_9] : memref<9x8x128xf32, #tpu.memory_space<vmem>>, vector<1x8x128xf32>
    %25 = vector.shape_cast %24 : vector<1x8x128xf32> to vector<8x128xf32>
    %26 = arith.addf %14, %25 : vector<8x128xf32>
    %27 = vector.shape_cast %26 : vector<8x128xf32> to vector<1x8x128xf32>
    %28 = vector.broadcast %27 : vector<1x8x128xf32> to vector<8x8x128xf32>
    %29 = arith.addf %28, %3 : vector<8x8x128xf32>
    %cst_10 = arith.constant dense<0xFF800000> : vector<8x128xf32>
    %30 = vector.multi_reduction <maximumf>, %29, %cst_10 [1] : vector<8x8x128xf32> to vector<8x128xf32>
    %31 = vector.shape_cast %30 : vector<8x128xf32> to vector<8x1x128xf32>
    %32 = vector.broadcast %31 : vector<8x1x128xf32> to vector<8x8x128xf32>
    %33 = arith.cmpf oeq, %29, %32 : vector<8x8x128xf32>
    %c8_i32_11 = arith.constant 8 : i32
    %34 = vector.broadcast %c8_i32_11 : i32 to vector<8x8x128xi32>
    %35 = arith.select %33, %4, %34 : vector<8x8x128xi1>, vector<8x8x128xi32>
    %cst_12 = arith.constant dense<2147483647> : vector<8x128xi32>
    %36 = vector.multi_reduction <minsi>, %35, %cst_12 [1] : vector<8x8x128xi32> to vector<8x128xi32>
    %c1 = arith.constant 1 : index
    %c0_13 = arith.constant 0 : index
    %c0_14 = arith.constant 0 : index
    %37 = vector.load %arg5[%c1, %c0_13, %c0_14] : memref<9x8x128xi32, #tpu.memory_space<vmem>>, vector<1x8x128xi32>
    %38 = vector.shape_cast %37 : vector<1x8x128xi32> to vector<8x128xi32>
    %39 = vector.shape_cast %36 : vector<8x128xi32> to vector<1x8x128xi32>
    tpu.vector_store %arg5[%c1, %c0_13, %c0_14], %39 {strides = array<i32>} : memref<9x8x128xi32, #tpu.memory_space<vmem>>, vector<1x8x128xi32>,
    %c1_15 = arith.constant 1 : index
    %c0_16 = arith.constant 0 : index
    %c0_17 = arith.constant 0 : index
    %40 = vector.load %arg1[%c1_15, %c0_16, %c0_17] : memref<9x8x128xf32, #tpu.memory_space<vmem>>, vector<1x8x128xf32>
    %41 = vector.shape_cast %40 : vector<1x8x128xf32> to vector<8x128xf32>
    %42 = arith.addf %30, %41 : vector<8x128xf32>
    %43 = vector.shape_cast %42 : vector<8x128xf32> to vector<1x8x128xf32>
    %44 = vector.broadcast %43 : vector<1x8x128xf32> to vector<8x8x128xf32>
    %45 = arith.addf %44, %3 : vector<8x8x128xf32>
    %cst_18 = arith.constant dense<0xFF800000> : vector<8x128xf32>
    %46 = vector.multi_reduction <maximumf>, %45, %cst_18 [1] : vector<8x8x128xf32> to vector<8x128xf32>
    %47 = vector.shape_cast %46 : vector<8x128xf32> to vector<8x1x128xf32>
    %48 = vector.broadcast %47 : vector<8x1x128xf32> to vector<8x8x128xf32>
    %49 = arith.cmpf oeq, %45, %48 : vector<8x8x128xf32>
    %c8_i32_19 = arith.constant 8 : i32
    %50 = vector.broadcast %c8_i32_19 : i32 to vector<8x8x128xi32>
    %51 = arith.select %49, %4, %50 : vector<8x8x128xi1>, vector<8x8x128xi32>
    %cst_20 = arith.constant dense<2147483647> : vector<8x128xi32>
    %52 = vector.multi_reduction <minsi>, %51, %cst_20 [1] : vector<8x8x128xi32> to vector<8x128xi32>
    %c2 = arith.constant 2 : index
    %c0_21 = arith.constant 0 : index
    %c0_22 = arith.constant 0 : index
    %53 = vector.load %arg5[%c2, %c0_21, %c0_22] : memref<9x8x128xi32, #tpu.memory_space<vmem>>, vector<1x8x128xi32>
    %54 = vector.shape_cast %53 : vector<1x8x128xi32> to vector<8x128xi32>
    %55 = vector.shape_cast %52 : vector<8x128xi32> to vector<1x8x128xi32>
    tpu.vector_store %arg5[%c2, %c0_21, %c0_22], %55 {strides = array<i32>} : memref<9x8x128xi32, #tpu.memory_space<vmem>>, vector<1x8x128xi32>,
    %c2_23 = arith.constant 2 : index
    %c0_24 = arith.constant 0 : index
    %c0_25 = arith.constant 0 : index
    %56 = vector.load %arg1[%c2_23, %c0_24, %c0_25] : memref<9x8x128xf32, #tpu.memory_space<vmem>>, vector<1x8x128xf32>
    %57 = vector.shape_cast %56 : vector<1x8x128xf32> to vector<8x128xf32>
    %58 = arith.addf %46, %57 : vector<8x128xf32>
    %59 = vector.shape_cast %58 : vector<8x128xf32> to vector<1x8x128xf32>
    %60 = vector.broadcast %59 : vector<1x8x128xf32> to vector<8x8x128xf32>
    %61 = arith.addf %60, %3 : vector<8x8x128xf32>
    %cst_26 = arith.constant dense<0xFF800000> : vector<8x128xf32>
    %62 = vector.multi_reduction <maximumf>, %61, %cst_26 [1] : vector<8x8x128xf32> to vector<8x128xf32>
    %63 = vector.shape_cast %62 : vector<8x128xf32> to vector<8x1x128xf32>
    %64 = vector.broadcast %63 : vector<8x1x128xf32> to vector<8x8x128xf32>
    %65 = arith.cmpf oeq, %61, %64 : vector<8x8x128xf32>
    %c8_i32_27 = arith.constant 8 : i32
    %66 = vector.broadcast %c8_i32_27 : i32 to vector<8x8x128xi32>
    %67 = arith.select %65, %4, %66 : vector<8x8x128xi1>, vector<8x8x128xi32>
    %cst_28 = arith.constant dense<2147483647> : vector<8x128xi32>
    %68 = vector.multi_reduction <minsi>, %67, %cst_28 [1] : vector<8x8x128xi32> to vector<8x128xi32>
    %c3 = arith.constant 3 : index
    %c0_29 = arith.constant 0 : index
    %c0_30 = arith.constant 0 : index
    %69 = vector.load %arg5[%c3, %c0_29, %c0_30] : memref<9x8x128xi32, #tpu.memory_space<vmem>>, vector<1x8x128xi32>
    %70 = vector.shape_cast %69 : vector<1x8x128xi32> to vector<8x128xi32>
    %71 = vector.shape_cast %68 : vector<8x128xi32> to vector<1x8x128xi32>
    tpu.vector_store %arg5[%c3, %c0_29, %c0_30], %71 {strides = array<i32>} : memref<9x8x128xi32, #tpu.memory_space<vmem>>, vector<1x8x128xi32>,
    %c3_31 = arith.constant 3 : index
    %c0_32 = arith.constant 0 : index
    %c0_33 = arith.constant 0 : index
    %72 = vector.load %arg1[%c3_31, %c0_32, %c0_33] : memref<9x8x128xf32, #tpu.memory_space<vmem>>, vector<1x8x128xf32>
    %73 = vector.shape_cast %72 : vector<1x8x128xf32> to vector<8x128xf32>
    %74 = arith.addf %62, %73 : vector<8x128xf32>
    %75 = vector.shape_cast %74 : vector<8x128xf32> to vector<1x8x128xf32>
    %76 = vector.broadcast %75 : vector<1x8x128xf32> to vector<8x8x128xf32>
    %77 = arith.addf %76, %3 : vector<8x8x128xf32>
    %cst_34 = arith.constant dense<0xFF800000> : vector<8x128xf32>
    %78 = vector.multi_reduction <maximumf>, %77, %cst_34 [1] : vector<8x8x128xf32> to vector<8x128xf32>
    %79 = vector.shape_cast %78 : vector<8x128xf32> to vector<8x1x128xf32>
    %80 = vector.broadcast %79 : vector<8x1x128xf32> to vector<8x8x128xf32>
    %81 = arith.cmpf oeq, %77, %80 : vector<8x8x128xf32>
    %c8_i32_35 = arith.constant 8 : i32
    %82 = vector.broadcast %c8_i32_35 : i32 to vector<8x8x128xi32>
    %83 = arith.select %81, %4, %82 : vector<8x8x128xi1>, vector<8x8x128xi32>
    %cst_36 = arith.constant dense<2147483647> : vector<8x128xi32>
    %84 = vector.multi_reduction <minsi>, %83, %cst_36 [1] : vector<8x8x128xi32> to vector<8x128xi32>
    %c4 = arith.constant 4 : index
    %c0_37 = arith.constant 0 : index
    %c0_38 = arith.constant 0 : index
    %85 = vector.load %arg5[%c4, %c0_37, %c0_38] : memref<9x8x128xi32, #tpu.memory_space<vmem>>, vector<1x8x128xi32>
    %86 = vector.shape_cast %85 : vector<1x8x128xi32> to vector<8x128xi32>
    %87 = vector.shape_cast %84 : vector<8x128xi32> to vector<1x8x128xi32>
    tpu.vector_store %arg5[%c4, %c0_37, %c0_38], %87 {strides = array<i32>} : memref<9x8x128xi32, #tpu.memory_space<vmem>>, vector<1x8x128xi32>,
    %c4_39 = arith.constant 4 : index
    %c0_40 = arith.constant 0 : index
    %c0_41 = arith.constant 0 : index
    %88 = vector.load %arg1[%c4_39, %c0_40, %c0_41] : memref<9x8x128xf32, #tpu.memory_space<vmem>>, vector<1x8x128xf32>
    %89 = vector.shape_cast %88 : vector<1x8x128xf32> to vector<8x128xf32>
    %90 = arith.addf %78, %89 : vector<8x128xf32>
    %91 = vector.shape_cast %90 : vector<8x128xf32> to vector<1x8x128xf32>
    %92 = vector.broadcast %91 : vector<1x8x128xf32> to vector<8x8x128xf32>
    %93 = arith.addf %92, %3 : vector<8x8x128xf32>
    %cst_42 = arith.constant dense<0xFF800000> : vector<8x128xf32>
    %94 = vector.multi_reduction <maximumf>, %93, %cst_42 [1] : vector<8x8x128xf32> to vector<8x128xf32>
    %95 = vector.shape_cast %94 : vector<8x128xf32> to vector<8x1x128xf32>
    %96 = vector.broadcast %95 : vector<8x1x128xf32> to vector<8x8x128xf32>
    %97 = arith.cmpf oeq, %93, %96 : vector<8x8x128xf32>
    %c8_i32_43 = arith.constant 8 : i32
    %98 = vector.broadcast %c8_i32_43 : i32 to vector<8x8x128xi32>
    %99 = arith.select %97, %4, %98 : vector<8x8x128xi1>, vector<8x8x128xi32>
    %cst_44 = arith.constant dense<2147483647> : vector<8x128xi32>
    %100 = vector.multi_reduction <minsi>, %99, %cst_44 [1] : vector<8x8x128xi32> to vector<8x128xi32>
    %c5 = arith.constant 5 : index
    %c0_45 = arith.constant 0 : index
    %c0_46 = arith.constant 0 : index
    %101 = vector.load %arg5[%c5, %c0_45, %c0_46] : memref<9x8x128xi32, #tpu.memory_space<vmem>>, vector<1x8x128xi32>
    %102 = vector.shape_cast %101 : vector<1x8x128xi32> to vector<8x128xi32>
    %103 = vector.shape_cast %100 : vector<8x128xi32> to vector<1x8x128xi32>
    tpu.vector_store %arg5[%c5, %c0_45, %c0_46], %103 {strides = array<i32>} : memref<9x8x128xi32, #tpu.memory_space<vmem>>, vector<1x8x128xi32>,
    %c5_47 = arith.constant 5 : index
    %c0_48 = arith.constant 0 : index
    %c0_49 = arith.constant 0 : index
    %104 = vector.load %arg1[%c5_47, %c0_48, %c0_49] : memref<9x8x128xf32, #tpu.memory_space<vmem>>, vector<1x8x128xf32>
    %105 = vector.shape_cast %104 : vector<1x8x128xf32> to vector<8x128xf32>
    %106 = arith.addf %94, %105 : vector<8x128xf32>
    %107 = vector.shape_cast %106 : vector<8x128xf32> to vector<1x8x128xf32>
    %108 = vector.broadcast %107 : vector<1x8x128xf32> to vector<8x8x128xf32>
    %109 = arith.addf %108, %3 : vector<8x8x128xf32>
    %cst_50 = arith.constant dense<0xFF800000> : vector<8x128xf32>
    %110 = vector.multi_reduction <maximumf>, %109, %cst_50 [1] : vector<8x8x128xf32> to vector<8x128xf32>
    %111 = vector.shape_cast %110 : vector<8x128xf32> to vector<8x1x128xf32>
    %112 = vector.broadcast %111 : vector<8x1x128xf32> to vector<8x8x128xf32>
    %113 = arith.cmpf oeq, %109, %112 : vector<8x8x128xf32>
    %c8_i32_51 = arith.constant 8 : i32
    %114 = vector.broadcast %c8_i32_51 : i32 to vector<8x8x128xi32>
    %115 = arith.select %113, %4, %114 : vector<8x8x128xi1>, vector<8x8x128xi32>
    %cst_52 = arith.constant dense<2147483647> : vector<8x128xi32>
    %116 = vector.multi_reduction <minsi>, %115, %cst_52 [1] : vector<8x8x128xi32> to vector<8x128xi32>
    %c6 = arith.constant 6 : index
    %c0_53 = arith.constant 0 : index
    %c0_54 = arith.constant 0 : index
    %117 = vector.load %arg5[%c6, %c0_53, %c0_54] : memref<9x8x128xi32, #tpu.memory_space<vmem>>, vector<1x8x128xi32>
    %118 = vector.shape_cast %117 : vector<1x8x128xi32> to vector<8x128xi32>
    %119 = vector.shape_cast %116 : vector<8x128xi32> to vector<1x8x128xi32>
    tpu.vector_store %arg5[%c6, %c0_53, %c0_54], %119 {strides = array<i32>} : memref<9x8x128xi32, #tpu.memory_space<vmem>>, vector<1x8x128xi32>,
    %c6_55 = arith.constant 6 : index
    %c0_56 = arith.constant 0 : index
    %c0_57 = arith.constant 0 : index
    %120 = vector.load %arg1[%c6_55, %c0_56, %c0_57] : memref<9x8x128xf32, #tpu.memory_space<vmem>>, vector<1x8x128xf32>
    %121 = vector.shape_cast %120 : vector<1x8x128xf32> to vector<8x128xf32>
    %122 = arith.addf %110, %121 : vector<8x128xf32>
    %123 = vector.shape_cast %122 : vector<8x128xf32> to vector<1x8x128xf32>
    %124 = vector.broadcast %123 : vector<1x8x128xf32> to vector<8x8x128xf32>
    %125 = arith.addf %124, %3 : vector<8x8x128xf32>
    %cst_58 = arith.constant dense<0xFF800000> : vector<8x128xf32>
    %126 = vector.multi_reduction <maximumf>, %125, %cst_58 [1] : vector<8x8x128xf32> to vector<8x128xf32>
    %127 = vector.shape_cast %126 : vector<8x128xf32> to vector<8x1x128xf32>
    %128 = vector.broadcast %127 : vector<8x1x128xf32> to vector<8x8x128xf32>
    %129 = arith.cmpf oeq, %125, %128 : vector<8x8x128xf32>
    %c8_i32_59 = arith.constant 8 : i32
    %130 = vector.broadcast %c8_i32_59 : i32 to vector<8x8x128xi32>
    %131 = arith.select %129, %4, %130 : vector<8x8x128xi1>, vector<8x8x128xi32>
    %cst_60 = arith.constant dense<2147483647> : vector<8x128xi32>
    %132 = vector.multi_reduction <minsi>, %131, %cst_60 [1] : vector<8x8x128xi32> to vector<8x128xi32>
    %c7 = arith.constant 7 : index
    %c0_61 = arith.constant 0 : index
    %c0_62 = arith.constant 0 : index
    %133 = vector.load %arg5[%c7, %c0_61, %c0_62] : memref<9x8x128xi32, #tpu.memory_space<vmem>>, vector<1x8x128xi32>
    %134 = vector.shape_cast %133 : vector<1x8x128xi32> to vector<8x128xi32>
    %135 = vector.shape_cast %132 : vector<8x128xi32> to vector<1x8x128xi32>
    tpu.vector_store %arg5[%c7, %c0_61, %c0_62], %135 {strides = array<i32>} : memref<9x8x128xi32, #tpu.memory_space<vmem>>, vector<1x8x128xi32>,
    %c7_63 = arith.constant 7 : index
    %c0_64 = arith.constant 0 : index
    %c0_65 = arith.constant 0 : index
    %136 = vector.load %arg1[%c7_63, %c0_64, %c0_65] : memref<9x8x128xf32, #tpu.memory_space<vmem>>, vector<1x8x128xf32>
    %137 = vector.shape_cast %136 : vector<1x8x128xf32> to vector<8x128xf32>
    %138 = arith.addf %126, %137 : vector<8x128xf32>
    %139 = vector.shape_cast %138 : vector<8x128xf32> to vector<1x8x128xf32>
    %140 = vector.broadcast %139 : vector<1x8x128xf32> to vector<8x8x128xf32>
    %141 = arith.addf %140, %3 : vector<8x8x128xf32>
    %cst_66 = arith.constant dense<0xFF800000> : vector<8x128xf32>
    %142 = vector.multi_reduction <maximumf>, %141, %cst_66 [1] : vector<8x8x128xf32> to vector<8x128xf32>
    %143 = vector.shape_cast %142 : vector<8x128xf32> to vector<8x1x128xf32>
    %144 = vector.broadcast %143 : vector<8x1x128xf32> to vector<8x8x128xf32>
    %145 = arith.cmpf oeq, %141, %144 : vector<8x8x128xf32>
    %c8_i32_67 = arith.constant 8 : i32
    %146 = vector.broadcast %c8_i32_67 : i32 to vector<8x8x128xi32>
    %147 = arith.select %145, %4, %146 : vector<8x8x128xi1>, vector<8x8x128xi32>
    %cst_68 = arith.constant dense<2147483647> : vector<8x128xi32>
    %148 = vector.multi_reduction <minsi>, %147, %cst_68 [1] : vector<8x8x128xi32> to vector<8x128xi32>
    %c8 = arith.constant 8 : index
    %c0_69 = arith.constant 0 : index
    %c0_70 = arith.constant 0 : index
    %149 = vector.load %arg5[%c8, %c0_69, %c0_70] : memref<9x8x128xi32, #tpu.memory_space<vmem>>, vector<1x8x128xi32>
    %150 = vector.shape_cast %149 : vector<1x8x128xi32> to vector<8x128xi32>
    %151 = vector.shape_cast %148 : vector<8x128xi32> to vector<1x8x128xi32>
    tpu.vector_store %arg5[%c8, %c0_69, %c0_70], %151 {strides = array<i32>} : memref<9x8x128xi32, #tpu.memory_space<vmem>>, vector<1x8x128xi32>,
    %c8_71 = arith.constant 8 : index
    %c0_72 = arith.constant 0 : index
    %c0_73 = arith.constant 0 : index
    %152 = vector.load %arg1[%c8_71, %c0_72, %c0_73] : memref<9x8x128xf32, #tpu.memory_space<vmem>>, vector<1x8x128xf32>
    %153 = vector.shape_cast %152 : vector<1x8x128xf32> to vector<8x128xf32>
    %154 = arith.addf %142, %153 : vector<8x128xf32>
    %155 = vector.extract_strided_slice %3 {offsets = [5, 0, 0], sizes = [1, 8, 128], strides = [1, 1, 1]} : vector<8x8x128xf32> to vector<1x8x128xf32>
    %156 = vector.shape_cast %155 : vector<1x8x128xf32> to vector<8x128xf32>
    %157 = arith.addf %154, %156 : vector<8x128xf32>
    %cst_74 = arith.constant dense<0xFF800000> : vector<128xf32>
    %158 = vector.multi_reduction <maximumf>, %157, %cst_74 [0] : vector<8x128xf32> to vector<128xf32>
    %159 = vector.shape_cast %158 : vector<128xf32> to vector<1x128xf32>
    %160 = vector.broadcast %159 : vector<1x128xf32> to vector<8x128xf32>
    %161 = arith.cmpf oeq, %157, %160 : vector<8x128xf32>
    %c8_i32_75 = arith.constant 8 : i32
    %162 = vector.broadcast %c8_i32_75 : i32 to vector<8x128xi32>
    %163 = arith.select %161, %5, %162 : vector<8x128xi1>, vector<8x128xi32>
    %cst_76 = arith.constant dense<2147483647> : vector<128xi32>
    %164 = vector.multi_reduction <minsi>, %163, %cst_76 [0] : vector<8x128xi32> to vector<128xi32>
    %165 = vector.shape_cast %164 : vector<128xi32> to vector<1x128xi32>
    %c0_77 = arith.constant 0 : index
    %c0_78 = arith.constant 0 : index
    %c0_79 = arith.constant 0 : index
    %166 = vector.load %arg3[%c0_77, %c0_78, %c0_79] : memref<1x1x128xf32, #tpu.memory_space<vmem>>, vector<1x1x128xf32>
    %167 = vector.shape_cast %166 : vector<1x1x128xf32> to vector<1x128xf32>
    %168 = vector.shape_cast %159 : vector<1x128xf32> to vector<1x1x128xf32>
    tpu.vector_store %arg3[%c0_77, %c0_78, %c0_79], %168 {strides = array<i32>} : memref<1x1x128xf32, #tpu.memory_space<vmem>>, vector<1x1x128xf32>,
    %c8_80 = arith.constant 8 : index
    %c0_81 = arith.constant 0 : index
    %c0_82 = arith.constant 0 : index
    %169 = vector.load %arg5[%c8_80, %c0_81, %c0_82] : memref<9x8x128xi32, #tpu.memory_space<vmem>>, vector<1x8x128xi32>
    %170 = vector.shape_cast %169 : vector<1x8x128xi32> to vector<8x128xi32>
    %171 = vector.broadcast %165 : vector<1x128xi32> to vector<8x128xi32>
    %172 = arith.cmpi eq, %5, %171 : vector<8x128xi32>
    %c0_i32 = arith.constant 0 : i32
    %173 = vector.broadcast %c0_i32 : i32 to vector<8x128xi32>
    %174 = arith.select %172, %170, %173 : vector<8x128xi1>, vector<8x128xi32>
    %cst_83 = arith.constant dense<0> : vector<128xi32>
    %175 = vector.multi_reduction <add>, %174, %cst_83 [0] : vector<8x128xi32> to vector<128xi32>
    %176 = vector.shape_cast %175 : vector<128xi32> to vector<1x128xi32>
    %c7_84 = arith.constant 7 : index
    %c0_85 = arith.constant 0 : index
    %c0_86 = arith.constant 0 : index
    %177 = vector.load %arg5[%c7_84, %c0_85, %c0_86] : memref<9x8x128xi32, #tpu.memory_space<vmem>>, vector<1x8x128xi32>
    %178 = vector.shape_cast %177 : vector<1x8x128xi32> to vector<8x128xi32>
    %179 = vector.broadcast %176 : vector<1x128xi32> to vector<8x128xi32>
    %180 = arith.cmpi eq, %5, %179 : vector<8x128xi32>
    %c0_i32_87 = arith.constant 0 : i32
    %181 = vector.broadcast %c0_i32_87 : i32 to vector<8x128xi32>
    %182 = arith.select %180, %178, %181 : vector<8x128xi1>, vector<8x128xi32>
    %cst_88 = arith.constant dense<0> : vector<128xi32>
    %183 = vector.multi_reduction <add>, %182, %cst_88 [0] : vector<8x128xi32> to vector<128xi32>
    %184 = vector.shape_cast %183 : vector<128xi32> to vector<1x128xi32>
    %c6_89 = arith.constant 6 : index
    %c0_90 = arith.constant 0 : index
    %c0_91 = arith.constant 0 : index
    %185 = vector.load %arg5[%c6_89, %c0_90, %c0_91] : memref<9x8x128xi32, #tpu.memory_space<vmem>>, vector<1x8x128xi32>
    %186 = vector.shape_cast %185 : vector<1x8x128xi32> to vector<8x128xi32>
    %187 = vector.broadcast %184 : vector<1x128xi32> to vector<8x128xi32>
    %188 = arith.cmpi eq, %5, %187 : vector<8x128xi32>
    %c0_i32_92 = arith.constant 0 : i32
    %189 = vector.broadcast %c0_i32_92 : i32 to vector<8x128xi32>
    %190 = arith.select %188, %186, %189 : vector<8x128xi1>, vector<8x128xi32>
    %cst_93 = arith.constant dense<0> : vector<128xi32>
    %191 = vector.multi_reduction <add>, %190, %cst_93 [0] : vector<8x128xi32> to vector<128xi32>
    %192 = vector.shape_cast %191 : vector<128xi32> to vector<1x128xi32>
    %c5_94 = arith.constant 5 : index
    %c0_95 = arith.constant 0 : index
    %c0_96 = arith.constant 0 : index
    %193 = vector.load %arg5[%c5_94, %c0_95, %c0_96] : memref<9x8x128xi32, #tpu.memory_space<vmem>>, vector<1x8x128xi32>
    %194 = vector.shape_cast %193 : vector<1x8x128xi32> to vector<8x128xi32>
    %195 = vector.broadcast %192 : vector<1x128xi32> to vector<8x128xi32>
    %196 = arith.cmpi eq, %5, %195 : vector<8x128xi32>
    %c0_i32_97 = arith.constant 0 : i32
    %197 = vector.broadcast %c0_i32_97 : i32 to vector<8x128xi32>
    %198 = arith.select %196, %194, %197 : vector<8x128xi1>, vector<8x128xi32>
    %cst_98 = arith.constant dense<0> : vector<128xi32>
    %199 = vector.multi_reduction <add>, %198, %cst_98 [0] : vector<8x128xi32> to vector<128xi32>
    %200 = vector.shape_cast %199 : vector<128xi32> to vector<1x128xi32>
    %c4_99 = arith.constant 4 : index
    %c0_100 = arith.constant 0 : index
    %c0_101 = arith.constant 0 : index
    %201 = vector.load %arg5[%c4_99, %c0_100, %c0_101] : memref<9x8x128xi32, #tpu.memory_space<vmem>>, vector<1x8x128xi32>
    %202 = vector.shape_cast %201 : vector<1x8x128xi32> to vector<8x128xi32>
    %203 = vector.broadcast %200 : vector<1x128xi32> to vector<8x128xi32>
    %204 = arith.cmpi eq, %5, %203 : vector<8x128xi32>
    %c0_i32_102 = arith.constant 0 : i32
    %205 = vector.broadcast %c0_i32_102 : i32 to vector<8x128xi32>
    %206 = arith.select %204, %202, %205 : vector<8x128xi1>, vector<8x128xi32>
    %cst_103 = arith.constant dense<0> : vector<128xi32>
    %207 = vector.multi_reduction <add>, %206, %cst_103 [0] : vector<8x128xi32> to vector<128xi32>
    %208 = vector.shape_cast %207 : vector<128xi32> to vector<1x128xi32>
    %c3_104 = arith.constant 3 : index
    %c0_105 = arith.constant 0 : index
    %c0_106 = arith.constant 0 : index
    %209 = vector.load %arg5[%c3_104, %c0_105, %c0_106] : memref<9x8x128xi32, #tpu.memory_space<vmem>>, vector<1x8x128xi32>
    %210 = vector.shape_cast %209 : vector<1x8x128xi32> to vector<8x128xi32>
    %211 = vector.broadcast %208 : vector<1x128xi32> to vector<8x128xi32>
    %212 = arith.cmpi eq, %5, %211 : vector<8x128xi32>
    %c0_i32_107 = arith.constant 0 : i32
    %213 = vector.broadcast %c0_i32_107 : i32 to vector<8x128xi32>
    %214 = arith.select %212, %210, %213 : vector<8x128xi1>, vector<8x128xi32>
    %cst_108 = arith.constant dense<0> : vector<128xi32>
    %215 = vector.multi_reduction <add>, %214, %cst_108 [0] : vector<8x128xi32> to vector<128xi32>
    %216 = vector.shape_cast %215 : vector<128xi32> to vector<1x128xi32>
    %c2_109 = arith.constant 2 : index
    %c0_110 = arith.constant 0 : index
    %c0_111 = arith.constant 0 : index
    %217 = vector.load %arg5[%c2_109, %c0_110, %c0_111] : memref<9x8x128xi32, #tpu.memory_space<vmem>>, vector<1x8x128xi32>
    %218 = vector.shape_cast %217 : vector<1x8x128xi32> to vector<8x128xi32>
    %219 = vector.broadcast %216 : vector<1x128xi32> to vector<8x128xi32>
    %220 = arith.cmpi eq, %5, %219 : vector<8x128xi32>
    %c0_i32_112 = arith.constant 0 : i32
    %221 = vector.broadcast %c0_i32_112 : i32 to vector<8x128xi32>
    %222 = arith.select %220, %218, %221 : vector<8x128xi1>, vector<8x128xi32>
    %cst_113 = arith.constant dense<0> : vector<128xi32>
    %223 = vector.multi_reduction <add>, %222, %cst_113 [0] : vector<8x128xi32> to vector<128xi32>
    %224 = vector.shape_cast %223 : vector<128xi32> to vector<1x128xi32>
    %c1_114 = arith.constant 1 : index
    %c0_115 = arith.constant 0 : index
    %c0_116 = arith.constant 0 : index
    %225 = vector.load %arg5[%c1_114, %c0_115, %c0_116] : memref<9x8x128xi32, #tpu.memory_space<vmem>>, vector<1x8x128xi32>
    %226 = vector.shape_cast %225 : vector<1x8x128xi32> to vector<8x128xi32>
    %227 = vector.broadcast %224 : vector<1x128xi32> to vector<8x128xi32>
    %228 = arith.cmpi eq, %5, %227 : vector<8x128xi32>
    %c0_i32_117 = arith.constant 0 : i32
    %229 = vector.broadcast %c0_i32_117 : i32 to vector<8x128xi32>
    %230 = arith.select %228, %226, %229 : vector<8x128xi1>, vector<8x128xi32>
    %cst_118 = arith.constant dense<0> : vector<128xi32>
    %231 = vector.multi_reduction <add>, %230, %cst_118 [0] : vector<8x128xi32> to vector<128xi32>
    %232 = vector.shape_cast %231 : vector<128xi32> to vector<1x128xi32>
    %233 = tpu.concatenate %232, %224, %216, %208, %200, %192, %184, %176, %165 in 0 : vector<1x128xi32>, vector<1x128xi32>, vector<1x128xi32>, vector<1x128xi32>, vector<1x128xi32>, vector<1x128xi32>, vector<1x128xi32>, vector<1x128xi32>, vector<1x128xi32> -> vector<9x128xi32>
    %c0_119 = arith.constant 0 : index
    %c0_120 = arith.constant 0 : index
    %c0_121 = arith.constant 0 : index
    %234 = vector.load %arg4[%c0_119, %c0_120, %c0_121] : memref<1x9x128xi32, #tpu.memory_space<vmem>>, vector<1x9x128xi32>
    %235 = vector.shape_cast %234 : vector<1x9x128xi32> to vector<9x128xi32>
    %236 = vector.shape_cast %233 : vector<9x128xi32> to vector<1x9x128xi32>
    tpu.vector_store %arg4[%c0_119, %c0_120, %c0_121], %236 {strides = array<i32>} : memref<1x9x128xi32, #tpu.memory_space<vmem>>, vector<1x9x128xi32>,
    return
  }
  func.func @transform_0(%arg0: i32) -> (i32, i32, i32) {
    %c0_i32 = arith.constant 0 : i32
    %c0_i32_0 = arith.constant 0 : i32
    %c0_i32_1 = arith.constant 0 : i32
    return %c0_i32, %c0_i32_0, %arg0 : i32, i32, i32
  }
  func.func @transform_1(%arg0: i32) -> (i32, i32) {
    %c0_i32 = arith.constant 0 : i32
    %c0_i32_0 = arith.constant 0 : i32
    %c0_i32_1 = arith.constant 0 : i32
    return %c0_i32, %c0_i32_0 : i32, i32
  }
  func.func @transform_2(%arg0: i32) -> (i32, i32, i32) {
    %c0_i32 = arith.constant 0 : i32
    %c0_i32_0 = arith.constant 0 : i32
    %c0_i32_1 = arith.constant 0 : i32
    return %arg0, %c0_i32, %c0_i32_0 : i32, i32, i32
  }
  func.func @transform_3(%arg0: i32) -> (i32, i32, i32) {
    %c0_i32 = arith.constant 0 : i32
    %c0_i32_0 = arith.constant 0 : i32
    %c0_i32_1 = arith.constant 0 : i32
    return %arg0, %c0_i32, %c0_i32_0 : i32, i32, i32
  }
}

</mosaic_0001>

<llo_original>
// kernel: crf_viterbi_batch.1
$region0: #{crf_viterbi_batch.1}
  #allocation0 [shape = 'u32[]', space=smem, size = 0x4, offset = 0x4, fixed_abs, tag = 'smem constant byte address 0x4 - core index']
  #allocation1 [shape = 'u32[72,128]{1,0:T(1,128)}', space=vmem, size = 0x9000, scoped, tag = 'internal scratch']
  #allocation2 [shape = 's32[9,8,128]{2,1,0:T(8,128)}', space=vmem, size = 0x9000, scoped, tag = 'scratch operand']
  %s0 = inlined_call_operand.vmem [shape: f32[9,8,256], index: 0, kind: input, shape index: {}]
  %s1 = inlined_call_operand.vmem [shape: f32[8,8], index: 1, kind: input, shape index: {}]
  %s2 = inlined_call_operand.hbm [shape: f32[2,1,128], index: 2, kind: output, shape index: {0}]
  %s3 = inlined_call_operand.vmem [shape: s32[2,9,128], index: 3, kind: output, shape index: {1}]
  %4 = xla_tuple %s2, %s3
  %s5 = sld [smem:[#allocation0]]
  $region87: #{crf_viterbi_batch.1} parent=0
    _
  %s7 = ssub.s32 1, %s5
  %s8 = scalar_select 0, %s7, %s5
  $region1: #{crf_viterbi_batch.1} parent=0
    #allocation3 [shape = 'u8[73728]{0}', space=vmem, size = 0x12000, scoped, tag = 'input window, operand 0']
    #allocation4 [shape = 'u8[1024]{0}', space=vmem, size = 0x400, scoped, tag = 'output window, operand 0']
    #allocation5 [shape = 's32[2]{0}', space=sflag, size = 0x8, scoped, tag = 'scoped memory for crf_viterbi_batch.1']
    %9 = vsyncpa [#allocation5], 0
    %s10 = scalar_lea.sflag [#allocation5], 1
    %11 = vsyncpa %s10, 0
    loop: start=0, step=1, limit=4
    $region2: #{crf_viterbi_batch.1} parent=1 // loop_pre_header
      _
    $region3: #{crf_viterbi_batch.1} parent=1 // loop_header
      %s13 = sphi 0, %s17
      %p14 = scmp.ge.s32.totalorder %s13, 4
      %s23 = sphi 0, %s25
      %s26 = sphi 0, %s23
      %s27 = sphi 0, %s26
      %s43 = sphi 0, %s27
      %s47 = sphi 0, %s47
      %s49 = sphi 0, %s47
      %s50 = sphi 0, %s49
      %s64 = sphi 0, %s50
      %s70 = sphi 0, %s72
      %s73 = sphi 0, %s70
      %s74 = sphi 0, %s73
      %s90 = sphi 0, %s74
      %s96 = sphi 0, %s98
      %s99 = sphi 0, %s96
      %s100 = sphi 0, %s99
      %s116 = sphi 0, %s100
    $region4: #{crf_viterbi_batch.1} parent=1 // loop_header_branch
      %16 = sbr.rel (%p14) target = $region8
    $region5: #{crf_viterbi_batch.1} parent=1 // loop_body
      %s18 = ssub.s32 %s13, 1
      %s19 = ssub.s32 %s13, 2
      %s20 = sadd.s32 %s13, 1
      %s21 = ssub.s32 %s13, %s20
      %p22 = scmp.eq.s32.totalorder %s21, 0
      %s24 = sadd.s32 %s23, 1
      %s25 = scalar_select %p22, %s23, %s24
      %p28 = pneg %p22
      %p29 = scmp.eq.s32.totalorder %s13, 1
      %p30 = por %p28, %p29
      %p31 = scmp.ne.s32.totalorder %s23, %s26
      %p32 = scmp.eq.s32.totalorder %s13, 0
      %p33 = por %p31, %p32
      %p34 = scmp.ne.s32.totalorder %s23, %s26
      %p35 = scmp.eq.s32.totalorder %s18, 1
      %p36 = por %p34, %p35
      %p37 = scmp.ne.s32.totalorder %s26, %s27
      %p38 = scmp.eq.s32.totalorder %s18, 0
      %p39 = por %p37, %p38
      %p40 = scmp.ne.s32.totalorder %s26, %s27
      %p41 = scmp.eq.s32.totalorder %s19, 1
      %p42 = por %p40, %p41
      %p44 = scmp.ne.s32.totalorder %s27, %s43
      %p45 = scmp.eq.s32.totalorder %s19, 0
      %p46 = por %p44, %p45
      %s48 = sadd.s32 %s47, 1
      %p51 = scmp.eq.s32.totalorder %s13, 1
      %p52 = scmp.ne.s32.totalorder %s47, %s49
      %p53 = scmp.eq.s32.totalorder %s13, 0
      %p54 = por %p52, %p53
      %p55 = scmp.ne.s32.totalorder %s47, %s49
      %p56 = scmp.eq.s32.totalorder %s18, 1
      %p57 = por %p55, %p56
      %p58 = scmp.ne.s32.totalorder %s49, %s50
      %p59 = scmp.eq.s32.totalorder %s18, 0
      %p60 = por %p58, %p59
      %p61 = scmp.ne.s32.totalorder %s49, %s50
      %p62 = scmp.eq.s32.totalorder %s19, 1
      %p63 = por %p61, %p62
      %p65 = scmp.ne.s32.totalorder %s50, %s64
      %p66 = scmp.eq.s32.totalorder %s19, 0
      %p67 = por %p65, %p66
      %s68 = ssub.s32 %s13, %s20
      %p69 = scmp.eq.s32.totalorder %s68, 0
      %s71 = sadd.s32 %s70, 1
      %s72 = scalar_select %p69, %s70, %s71
      %p75 = pneg %p69
      %p76 = scmp.eq.s32.totalorder %s13, 1
      %p77 = por %p75, %p76
      %p78 = scmp.ne.s32.totalorder %s70, %s73
      %p79 = scmp.eq.s32.totalorder %s13, 0
      %p80 = por %p78, %p79
      %p81 = scmp.ne.s32.totalorder %s70, %s73
      %p82 = scmp.eq.s32.totalorder %s18, 1
      %p83 = por %p81, %p82
      %p84 = scmp.ne.s32.totalorder %s73, %s74
      %p85 = scmp.eq.s32.totalorder %s18, 0
      %p86 = por %p84, %p85
      %p87 = scmp.ne.s32.totalorder %s73, %s74
      %p88 = scmp.eq.s32.totalorder %s19, 1
      %p89 = por %p87, %p88
      %p91 = scmp.ne.s32.totalorder %s74, %s90
      %p92 = scmp.eq.s32.totalorder %s19, 0
      %p93 = por %p91, %p92
      %s94 = ssub.s32 %s13, %s20
      %p95 = scmp.eq.s32.totalorder %s94, 0
      %s97 = sadd.s32 %s96, 1
      %s98 = scalar_select %p95, %s96, %s97
      %p101 = pneg %p95
      %p102 = scmp.eq.s32.totalorder %s13, 1
      %p103 = por %p101, %p102
      %p104 = scmp.ne.s32.totalorder %s96, %s99
      %p105 = scmp.eq.s32.totalorder %s13, 0
      %p106 = por %p104, %p105
      %p107 = scmp.ne.s32.totalorder %s96, %s99
      %p108 = scmp.eq.s32.totalorder %s18, 1
      %p109 = por %p107, %p108
      %p110 = scmp.ne.s32.totalorder %s99, %s100
      %p111 = scmp.eq.s32.totalorder %s18, 0
      %p112 = por %p110, %p111
      %p113 = scmp.ne.s32.totalorder %s99, %s100
      %p114 = scmp.eq.s32.totalorder %s19, 1
      %p115 = por %p113, %p114
      %p117 = scmp.ne.s32.totalorder %s100, %s116
      %p118 = scmp.eq.s32.totalorder %s19, 0
      %p119 = por %p117, %p118
      %p120 = scmp.le.s32.totalorder 1, %s13
      %p121 = scmp.lt.s32.totalorder %s13, 3
      %p122 = pnand %p120, %p121
      %p123 = pneg %p122
      // Predicated region
      $region9: #{crf_viterbi_batch.1} parent=5 // pred_check
        _
      $region10: #{crf_viterbi_batch.1} parent=5 // pred_check_branch
        %125 = sbr.rel (%p122) target = $region12
      $region11: #{crf_viterbi_batch.1} parent=5 // pred_region
        %s126 = ssub.s32 %s13, 1
        // Predicated region
        $region13: #{crf_viterbi_batch.1} parent=11 // pred_check
          %p127 = pneg %p60
        $region14: #{crf_viterbi_batch.1} parent=11 // pred_check_branch
          %129 = sbr.rel (%p127) target = $region16
        $region15: #{crf_viterbi_batch.1} parent=11 // pred_region
          _
        $region16: #{crf_viterbi_batch.1} parent=11 // pred_fallthru
          _
      $region12: #{crf_viterbi_batch.1} parent=5 // pred_fallthru
        _
      %p130 = scmp.lt.s32.totalorder %s13, 2
      // Predicated region
      $region17: #{crf_viterbi_batch.1} parent=5 // pred_check
        %p131 = pneg %p130
      $region18: #{crf_viterbi_batch.1} parent=5 // pred_check_branch
        %133 = sbr.rel (%p131) target = $region20
      $region19: #{crf_viterbi_batch.1} parent=5 // pred_region
        // Predicated region
        $region21: #{crf_viterbi_batch.1} parent=19 // pred_check
          %p134 = pneg %p33
        $region22: #{crf_viterbi_batch.1} parent=19 // pred_check_branch
          %136 = sbr.rel (%p134) target = $region24
        $region23: #{crf_viterbi_batch.1} parent=19 // pred_region
          %s137 = sand.u32 %s23, 1
          %s138 = sand.u32 %s23, 1
          %s139 = smul.addr %s138, 72
          %s140 = scalar_lea.vmem [#allocation3], %s139
          %s141 = smul.addr %s13, 8
          %s142 = scalar_lea.vmem %s0, %s141
          // Predicated region
          $region25: #{crf_viterbi_batch.1} parent=23 // pred_check
            _
          $region26: #{crf_viterbi_batch.1} parent=23 // pred_check_branch
            %144 = sbr.rel (0) target = $region28
          $region27: #{crf_viterbi_batch.1} parent=23 // pred_region
            // Predicated region
            $region29: #{crf_viterbi_batch.1} parent=27 // pred_check
              _
            $region30: #{crf_viterbi_batch.1} parent=27 // pred_check_branch
              %146 = sbr.rel (0) target = $region32
            $region31: #{crf_viterbi_batch.1} parent=27 // pred_region
              // Predicated region
              $region44: #{crf_viterbi_batch.1} parent=31 // pred_check
                _
              $region45: #{crf_viterbi_batch.1} parent=31 // pred_check_branch
                %178 = sbr.rel (0) target = $region47
              $region46: #{crf_viterbi_batch.1} parent=31 // pred_region
                loop: start=0, step=1, limit=1
                $region48: #{crf_viterbi_batch.1} parent=46 // loop_pre_header
                  _
                $region49: #{crf_viterbi_batch.1} parent=46 // loop_header
                  %s180 = sphi 0, %s184
                  %p181 = scmp.ge.s32.totalorder %s180, 1
                  %s185 = sphi %s142, %s142
                  %s186 = sphi %s140, %s140
                $region50: #{crf_viterbi_batch.1} parent=46 // loop_header_branch
                  %183 = sbr.rel (%p181) target = $region54
                $region51: #{crf_viterbi_batch.1} parent=46 // loop_body
                  %v187 = vld [vmem:[%s185] sm:$0xff]
                  %188 = vst [vmem:[%s186] sm:$0xff] %v187
                  %v189 = vld [vmem:[%s185 + $0x10] sm:$0xff]
                  %190 = vst [vmem:[%s186 + $0x8] sm:$0xff] %v189
                  %v191 = vld [vmem:[%s185 + $0x20] sm:$0xff]
                  %192 = vst [vmem:[%s186 + $0x10] sm:$0xff] %v191
                  %v193 = vld [vmem:[%s185 + $0x30] sm:$0xff]
                  %194 = vst [vmem:[%s186 + $0x18] sm:$0xff] %v193
                  %v195 = vld [vmem:[%s185 + $0x40] sm:$0xff]
                  %196 = vst [vmem:[%s186 + $0x20] sm:$0xff] %v195
                  %v197 = vld [vmem:[%s185 + $0x50] sm:$0xff]
                  %198 = vst [vmem:[%s186 + $0x28] sm:$0xff] %v197
                  %v199 = vld [vmem:[%s185 + $0x60] sm:$0xff]
                  %200 = vst [vmem:[%s186 + $0x30] sm:$0xff] %v199
                  %v201 = vld [vmem:[%s185 + $0x70] sm:$0xff]
                  %202 = vst [vmem:[%s186 + $0x38] sm:$0xff] %v201
                  %v203 = vld [vmem:[%s185 + $0x80] sm:$0xff]
                  %204 = vst [vmem:[%s186 + $0x40] sm:$0xff] %v203
                $region52: #{crf_viterbi_batch.1} parent=46 // loop_footer
                  %s184 = sadd.s32 1, %s180
                $region53: #{crf_viterbi_batch.1} parent=46 // loop_footer_branch
                  %179 = sbr.rel target = $region49
                $region54: #{crf_viterbi_batch.1} parent=46 // loop_exit
                  _
              $region47: #{crf_viterbi_batch.1} parent=31 // pred_fallthru
                _
              // Predicated region
              $region55: #{crf_viterbi_batch.1} parent=31 // pred_check
                _
              $region56: #{crf_viterbi_batch.1} parent=31 // pred_check_branch
                %206 = sbr.rel target = $region58
              $region57: #{crf_viterbi_batch.1} parent=31 // pred_region
                _
              $region58: #{crf_viterbi_batch.1} parent=31 // pred_fallthru
                _
            $region32: #{crf_viterbi_batch.1} parent=27 // pred_fallthru
              _
            // Predicated region
            $region33: #{crf_viterbi_batch.1} parent=27 // pred_check
              _
            $region34: #{crf_viterbi_batch.1} parent=27 // pred_check_branch
              %148 = sbr.rel target = $region36
            $region35: #{crf_viterbi_batch.1} parent=27 // pred_region
              %s150 = ssub.s32 256, 1
              loop: start=0, step=1, limit=1
              $region37: #{crf_viterbi_batch.1} parent=35 // loop_pre_header
                _
              $region38: #{crf_viterbi_batch.1} parent=35 // loop_header
                %s152 = sphi 0, %s156
                %p153 = scmp.ge.s32.totalorder %s152, 1
                %s157 = sphi %s142, %s142
                %s158 = sphi %s140, %s140
              $region39: #{crf_viterbi_batch.1} parent=35 // loop_header_branch
                %155 = sbr.rel (%p153) target = $region43
              $region40: #{crf_viterbi_batch.1} parent=35 // loop_body
                %v159 = vld [vmem:[%s157] sm:%s150]
                %160 = vst [vmem:[%s158] sm:%s150] %v159
                %v161 = vld [vmem:[%s157 + $0x10] sm:%s150]
                %162 = vst [vmem:[%s158 + $0x8] sm:%s150] %v161
                %v163 = vld [vmem:[%s157 + $0x20] sm:%s150]
                %164 = vst [vmem:[%s158 + $0x10] sm:%s150] %v163
                %v165 = vld [vmem:[%s157 + $0x30] sm:%s150]
                %166 = vst [vmem:[%s158 + $0x18] sm:%s150] %v165
                %v167 = vld [vmem:[%s157 + $0x40] sm:%s150]
                %168 = vst [vmem:[%s158 + $0x20] sm:%s150] %v167
                %v169 = vld [vmem:[%s157 + $0x50] sm:%s150]
                %170 = vst [vmem:[%s158 + $0x28] sm:%s150] %v169
                %v171 = vld [vmem:[%s157 + $0x60] sm:%s150]
                %172 = vst [vmem:[%s158 + $0x30] sm:%s150] %v171
                %v173 = vld [vmem:[%s157 + $0x70] sm:%s150]
                %174 = vst [vmem:[%s158 + $0x38] sm:%s150] %v173
                %v175 = vld [vmem:[%s157 + $0x80] sm:%s150]
                %176 = vst [vmem:[%s158 + $0x40] sm:%s150] %v175
              $region41: #{crf_viterbi_batch.1} parent=35 // loop_footer
                %s156 = sadd.s32 1, %s152
              $region42: #{crf_viterbi_batch.1} parent=35 // loop_footer_branch
                %151 = sbr.rel target = $region38
              $region43: #{crf_viterbi_batch.1} parent=35 // loop_exit
                _
            $region36: #{crf_viterbi_batch.1} parent=27 // pred_fallthru
              _
          $region28: #{crf_viterbi_batch.1} parent=23 // pred_fallthru
            _
          %207 = vnop
        $region24: #{crf_viterbi_batch.1} parent=19 // pred_fallthru
          _
      $region20: #{crf_viterbi_batch.1} parent=5 // pred_fallthru
        _
      %p208 = scmp.le.s32.totalorder 1, %s13
      %p209 = scmp.lt.s32.totalorder %s13, 3
      %p210 = pnand %p208, %p209
      %p211 = pneg %p210
      // Predicated region
      $region59: #{crf_viterbi_batch.1} parent=5 // pred_check
        _
      $region60: #{crf_viterbi_batch.1} parent=5 // pred_check_branch
        %213 = sbr.rel (%p210) target = $region62
      $region61: #{crf_viterbi_batch.1} parent=5 // pred_region
        %s214 = ssub.s32 %s13, 1
        %s215 = sand.u32 %s26, 1
        %s216 = sand.u32 %s26, 1
        %s217 = smul.addr %s216, 72
        %s218 = scalar_lea.vmem [#allocation3], %s217
        // Predicated region
        $region63: #{crf_viterbi_batch.1} parent=61 // pred_check
          %p219 = pneg %p39
        $region64: #{crf_viterbi_batch.1} parent=61 // pred_check_branch
          %221 = sbr.rel (%p219) target = $region66
        $region65: #{crf_viterbi_batch.1} parent=61 // pred_region
          _
        $region66: #{crf_viterbi_batch.1} parent=61 // pred_fallthru
          _
        %s222 = sand.u32 %s26, 1
        %s223 = sand.u32 %s26, 1
        %s224 = smul.addr %s223, 72
        %s225 = scalar_lea.vmem [#allocation3], %s224
        %p226 = pneg %p39
        %p227 = pneg %p36
        %p228 = pneg %p60
        %p229 = pneg %p57
        %p230 = pneg %p86
        %p231 = pneg %p83
        %s232 = sand.u32 %s73, 1
        %s233 = scalar_lea.sflag [#allocation5], %s232
        %s234 = sand.u32 %s73, 1
        %s235 = scalar_lea.vmem [#allocation4], %s234
        %p236 = pneg %p112
        %p237 = pneg %p109
        %p238 = scmp.lt.s32.totalorder %s18, 1
        %s239 = scalar_select %p238, %s18, 1
        %s240 = smul.addr %s239, 2
        %s241 = smul.addr %s240, 8
        %s242 = scalar_lea.vmem %s3, %s241
        %p243 = scmp.lt.s32.totalorder %s18, 1
        %s244 = scalar_select %p243, %s18, 1
        %s245 = smul.addr %s244, 2
        %s246 = smul.addr %s245, 8
        %s247 = scalar_lea.vmem %s3, %s246
        %v248 = vld [vmem:[%s1] sm:$0xff]
        %v249 = vperm.slane %v248, 0
        %v250 = vlaneseq
        %v251 = vshrl.u32 %v250, 7
        %253 = vset.pattern.permute.xlu0 %v251
        %254 = vperm.xlu0 %253, %v249
        %v255 = vpop.permute.xlu0 %254
        %v256 = vperm.slane %v248, 1
        %v257 = vlaneseq
        %v258 = vshrl.u32 %v257, 7
        %260 = vset.pattern.permute.xlu0 %v258
        %261 = vperm.xlu0 %260, %v256
        %v262 = vpop.permute.xlu0 %261
        %v263 = vperm.slane %v248, 2
        %v264 = vlaneseq
        %v265 = vshrl.u32 %v264, 7
        %267 = vset.pattern.permute.xlu0 %v265
        %268 = vperm.xlu0 %267, %v263
        %v269 = vpop.permute.xlu0 %268
        %v270 = vperm.slane %v248, 3
        %v271 = vlaneseq
        %v272 = vshrl.u32 %v271, 7
        %274 = vset.pattern.permute.xlu0 %v272
        %275 = vperm.xlu0 %274, %v270
        %v276 = vpop.permute.xlu0 %275
        %v277 = vperm.slane %v248, 4
        %v278 = vlaneseq
        %v279 = vshrl.u32 %v278, 7
        %281 = vset.pattern.permute.xlu0 %v279
        %282 = vperm.xlu0 %281, %v277
        %v283 = vpop.permute.xlu0 %282
        %v284 = vperm.slane %v248, 5
        %v285 = vlaneseq
        %v286 = vshrl.u32 %v285, 7
        %288 = vset.pattern.permute.xlu0 %v286
        %289 = vperm.xlu0 %288, %v284
        %v290 = vpop.permute.xlu0 %289
        %v291 = vperm.slane %v248, 6
        %v292 = vlaneseq
        %v293 = vshrl.u32 %v292, 7
        %295 = vset.pattern.permute.xlu0 %v293
        %296 = vperm.xlu0 %295, %v291
        %v297 = vpop.permute.xlu0 %296
        %v298 = vperm.slane %v248, 7
        %v299 = vlaneseq
        %v300 = vshrl.u32 %v299, 7
        %302 = vset.pattern.permute.xlu0 %v300
        %303 = vperm.xlu0 %302, %v298
        %v304 = vpop.permute.xlu0 %303
        %v305 = vlaneseq
        %v306 = vshrl.u32 %v305, 7
        %vm307 = vcmp.eq.s32.totalorder %v306, 4
        %v308 = vsel %vm307, 0.0, -10000.0
        %v309 = vadd.f32 %v308, %v255
        %v310 = vadd.f32 %v308, %v262
        %v311 = vadd.f32 %v308, %v269
        %v312 = vadd.f32 %v308, %v276
        %v313 = vadd.f32 %v308, %v283
        %v314 = vadd.f32 %v308, %v290
        %v315 = vadd.f32 %v308, %v297
        %v316 = vadd.f32 %v308, %v304
        %v317 = vrot.slane %v309, 4
        %v318 = vmax.f32 %v309, %v317
        %v319 = vrot.slane %v318, 2
        %v320 = vmax.f32 %v318, %v319
        %v321 = vrot.slane %v320, 1
        %v322 = vmax.f32 %v320, %v321
        %v323 = vrot.slane %v310, 4
        %v324 = vmax.f32 %v310, %v323
        %v325 = vrot.slane %v324, 2
        %v326 = vmax.f32 %v324, %v325
        %v327 = vrot.slane %v326, 1
        %v328 = vmax.f32 %v326, %v327
        %v329 = vrot.slane %v311, 4
        %v330 = vmax.f32 %v311, %v329
        %v331 = vrot.slane %v330, 2
        %v332 = vmax.f32 %v330, %v331
        %v333 = vrot.slane %v332, 1
        %v334 = vmax.f32 %v332, %v333
        %v335 = vrot.slane %v312, 4
        %v336 = vmax.f32 %v312, %v335
        %v337 = vrot.slane %v336, 2
        %v338 = vmax.f32 %v336, %v337
        %v339 = vrot.slane %v338, 1
        %v340 = vmax.f32 %v338, %v339
        %v341 = vrot.slane %v313, 4
        %v342 = vmax.f32 %v313, %v341
        %v343 = vrot.slane %v342, 2
        %v344 = vmax.f32 %v342, %v343
        %v345 = vrot.slane %v344, 1
        %v346 = vmax.f32 %v344, %v345
        %v347 = vrot.slane %v314, 4
        %v348 = vmax.f32 %v314, %v347
        %v349 = vrot.slane %v348, 2
        %v350 = vmax.f32 %v348, %v349
        %v351 = vrot.slane %v350, 1
        %v352 = vmax.f32 %v350, %v351
        %v353 = vrot.slane %v315, 4
        %v354 = vmax.f32 %v315, %v353
        %v355 = vrot.slane %v354, 2
        %v356 = vmax.f32 %v354, %v355
        %v357 = vrot.slane %v356, 1
        %v358 = vmax.f32 %v356, %v357
        %v359 = vrot.slane %v316, 4
        %v360 = vmax.f32 %v316, %v359
        %v361 = vrot.slane %v360, 2
        %v362 = vmax.f32 %v360, %v361
        %v363 = vrot.slane %v362, 1
        %v364 = vmax.f32 %v362, %v363
        %vm365 = vcmp.eq.f32.partialorder %v309, %v322
        %vm366 = vcmp.eq.f32.partialorder %v310, %v328
        %vm367 = vcmp.eq.f32.partialorder %v311, %v334
        %vm368 = vcmp.eq.f32.partialorder %v312, %v340
        %vm369 = vcmp.eq.f32.partialorder %v313, %v346
        %vm370 = vcmp.eq.f32.partialorder %v314, %v352
        %vm371 = vcmp.eq.f32.partialorder %v315, %v358
        %vm372 = vcmp.eq.f32.partialorder %v316, %v364
        %v373 = vsel %vm365, %v306, 8
        %v374 = vsel %vm366, %v306, 8
        %v375 = vsel %vm367, %v306, 8
        %v376 = vsel %vm368, %v306, 8
        %v377 = vsel %vm369, %v306, 8
        %v378 = vsel %vm370, %v306, 8
        %v379 = vsel %vm371, %v306, 8
        %v380 = vsel %vm372, %v306, 8
        %v381 = vrot.slane %v373, 4
        %vm382 = vcmp.lt.s32.totalorder %v373, %v381
        %v383 = vsel %vm382, %v373, %v381
        %v384 = vrot.slane %v383, 2
        %vm385 = vcmp.lt.s32.totalorder %v383, %v384
        %v386 = vsel %vm385, %v383, %v384
        %v387 = vrot.slane %v386, 1
        %vm388 = vcmp.lt.s32.totalorder %v386, %v387
        %v389 = vsel %vm388, %v386, %v387
        %v390 = vrot.slane %v374, 4
        %vm391 = vcmp.lt.s32.totalorder %v374, %v390
        %v392 = vsel %vm391, %v374, %v390
        %v393 = vrot.slane %v392, 2
        %vm394 = vcmp.lt.s32.totalorder %v392, %v393
        %v395 = vsel %vm394, %v392, %v393
        %v396 = vrot.slane %v395, 1
        %vm397 = vcmp.lt.s32.totalorder %v395, %v396
        %v398 = vsel %vm397, %v395, %v396
        %v399 = vrot.slane %v375, 4
        %vm400 = vcmp.lt.s32.totalorder %v375, %v399
        %v401 = vsel %vm400, %v375, %v399
        %v402 = vrot.slane %v401, 2
        %vm403 = vcmp.lt.s32.totalorder %v401, %v402
        %v404 = vsel %vm403, %v401, %v402
        %v405 = vrot.slane %v404, 1
        %vm406 = vcmp.lt.s32.totalorder %v404, %v405
        %v407 = vsel %vm406, %v404, %v405
        %v408 = vrot.slane %v376, 4
        %vm409 = vcmp.lt.s32.totalorder %v376, %v408
        %v410 = vsel %vm409, %v376, %v408
        %v411 = vrot.slane %v410, 2
        %vm412 = vcmp.lt.s32.totalorder %v410, %v411
        %v413 = vsel %vm412, %v410, %v411
        %v414 = vrot.slane %v413, 1
        %vm415 = vcmp.lt.s32.totalorder %v413, %v414
        %v416 = vsel %vm415, %v413, %v414
        %v417 = vrot.slane %v377, 4
        %vm418 = vcmp.lt.s32.totalorder %v377, %v417
        %v419 = vsel %vm418, %v377, %v417
        %v420 = vrot.slane %v419, 2
        %vm421 = vcmp.lt.s32.totalorder %v419, %v420
        %v422 = vsel %vm421, %v419, %v420
        %v423 = vrot.slane %v422, 1
        %vm424 = vcmp.lt.s32.totalorder %v422, %v423
        %v425 = vsel %vm424, %v422, %v423
        %v426 = vrot.slane %v378, 4
        %vm427 = vcmp.lt.s32.totalorder %v378, %v426
        %v428 = vsel %vm427, %v378, %v426
        %v429 = vrot.slane %v428, 2
        %vm430 = vcmp.lt.s32.totalorder %v428, %v429
        %v431 = vsel %vm430, %v428, %v429
        %v432 = vrot.slane %v431, 1
        %vm433 = vcmp.lt.s32.totalorder %v431, %v432
        %v434 = vsel %vm433, %v431, %v432
        %v435 = vrot.slane %v379, 4
        %vm436 = vcmp.lt.s32.totalorder %v379, %v435
        %v437 = vsel %vm436, %v379, %v435
        %v438 = vrot.slane %v437, 2
        %vm439 = vcmp.lt.s32.totalorder %v437, %v438
        %v440 = vsel %vm439, %v437, %v438
        %v441 = vrot.slane %v440, 1
        %vm442 = vcmp.lt.s32.totalorder %v440, %v441
        %v443 = vsel %vm442, %v440, %v441
        %v444 = vrot.slane %v380, 4
        %vm445 = vcmp.lt.s32.totalorder %v380, %v444
        %v446 = vsel %vm445, %v380, %v444
        %v447 = vrot.slane %v446, 2
        %vm448 = vcmp.lt.s32.totalorder %v446, %v447
        %v449 = vsel %vm448, %v446, %v447
        %v450 = vrot.slane %v449, 1
        %vm451 = vcmp.lt.s32.totalorder %v449, %v450
        %v452 = vsel %vm451, %v449, %v450
        %vm453 = vcmask 1041409
        %v454 = vsel %vm453, %v398, %v389
        %vm455 = vcmask 1042434
        %v456 = vsel %vm455, %v407, %v454
        %vm457 = vcmask 1043459
        %v458 = vsel %vm457, %v416, %v456
        %vm459 = vcmask 1044484
        %v460 = vsel %vm459, %v425, %v458
        %vm461 = vcmask 1045509
        %v462 = vsel %vm461, %v434, %v460
        %vm463 = vcmask 1046534
        %v464 = vsel %vm463, %v443, %v462
        %vm465 = vcmask 1047559
        %v466 = vsel %vm465, %v452, %v464
        %467 = vst [vmem:[#allocation2] sm:$0xff] %v466
        %v468 = vld [vmem:[%s218] sm:$0xff]
        %v470 = vrot.slane %v468, 1
        %v471 = vrot.slane %v468, 2
        %v472 = vrot.slane %v468, 3
        %v473 = vrot.slane %v468, 4
        %v474 = vrot.slane %v468, 5
        %v475 = vrot.slane %v468, 6
        %v476 = vrot.slane %v468, 7
        %v485 = vadd.f32 %v322, %v468
        %v486 = vadd.f32 %v328, %v470
        %v487 = vadd.f32 %v334, %v471
        %v488 = vadd.f32 %v340, %v472
        %v489 = vadd.f32 %v346, %v473
        %v490 = vadd.f32 %v352, %v474
        %v491 = vadd.f32 %v358, %v475
        %v492 = vadd.f32 %v364, %v476
        %v501 = vrot.slane %v255, 1
        %v502 = vrot.slane %v255, 2
        %v503 = vrot.slane %v255, 3
        %v504 = vrot.slane %v255, 4
        %v505 = vrot.slane %v255, 5
        %v506 = vrot.slane %v255, 6
        %v507 = vrot.slane %v255, 7
        %v508 = vrot.slane %v262, 1
        %v509 = vrot.slane %v262, 2
        %v510 = vrot.slane %v262, 3
        %v511 = vrot.slane %v262, 4
        %v512 = vrot.slane %v262, 5
        %v513 = vrot.slane %v262, 6
        %v514 = vrot.slane %v262, 7
        %v515 = vrot.slane %v269, 1
        %v516 = vrot.slane %v269, 2
        %v517 = vrot.slane %v269, 3
        %v518 = vrot.slane %v269, 4
        %v519 = vrot.slane %v269, 5
        %v520 = vrot.slane %v269, 6
        %v521 = vrot.slane %v269, 7
        %v522 = vrot.slane %v276, 1
        %v523 = vrot.slane %v276, 2
        %v524 = vrot.slane %v276, 3
        %v525 = vrot.slane %v276, 4
        %v526 = vrot.slane %v276, 5
        %v527 = vrot.slane %v276, 6
        %v528 = vrot.slane %v276, 7
        %v529 = vrot.slane %v283, 1
        %v530 = vrot.slane %v283, 2
        %v531 = vrot.slane %v283, 3
        %v532 = vrot.slane %v283, 4
        %v533 = vrot.slane %v283, 5
        %v534 = vrot.slane %v283, 6
        %v535 = vrot.slane %v283, 7
        %v536 = vrot.slane %v290, 1
        %v537 = vrot.slane %v290, 2
        %v538 = vrot.slane %v290, 3
        %v539 = vrot.slane %v290, 4
        %v540 = vrot.slane %v290, 5
        %v541 = vrot.slane %v290, 6
        %v542 = vrot.slane %v290, 7
        %v543 = vrot.slane %v297, 1
        %v544 = vrot.slane %v297, 2
        %v545 = vrot.slane %v297, 3
        %v546 = vrot.slane %v297, 4
        %v547 = vrot.slane %v297, 5
        %v548 = vrot.slane %v297, 6
        %v549 = vrot.slane %v297, 7
        %v550 = vrot.slane %v304, 1
        %v551 = vrot.slane %v304, 2
        %v552 = vrot.slane %v304, 3
        %v553 = vrot.slane %v304, 4
        %v554 = vrot.slane %v304, 5
        %v555 = vrot.slane %v304, 6
        %v556 = vrot.slane %v304, 7
        %v621 = vadd.f32 %v485, %v255
        %v622 = vadd.f32 %v486, %v501
        %v623 = vadd.f32 %v487, %v502
        %v624 = vadd.f32 %v488, %v503
        %v625 = vadd.f32 %v489, %v504
        %v626 = vadd.f32 %v490, %v505
        %v627 = vadd.f32 %v491, %v506
        %v628 = vadd.f32 %v492, %v507
        %v629 = vadd.f32 %v485, %v262
        %v630 = vadd.f32 %v486, %v508
        %v631 = vadd.f32 %v487, %v509
        %v632 = vadd.f32 %v488, %v510
        %v633 = vadd.f32 %v489, %v511
        %v634 = vadd.f32 %v490, %v512
        %v635 = vadd.f32 %v491, %v513
        %v636 = vadd.f32 %v492, %v514
        %v637 = vadd.f32 %v485, %v269
        %v638 = vadd.f32 %v486, %v515
        %v639 = vadd.f32 %v487, %v516
        %v640 = vadd.f32 %v488, %v517
        %v641 = vadd.f32 %v489, %v518
        %v642 = vadd.f32 %v490, %v519
        %v643 = vadd.f32 %v491, %v520
        %v644 = vadd.f32 %v492, %v521
        %v645 = vadd.f32 %v485, %v276
        %v646 = vadd.f32 %v486, %v522
        %v647 = vadd.f32 %v487, %v523
        %v648 = vadd.f32 %v488, %v524
        %v649 = vadd.f32 %v489, %v525
        %v650 = vadd.f32 %v490, %v526
        %v651 = vadd.f32 %v491, %v527
        %v652 = vadd.f32 %v492, %v528
        %v653 = vadd.f32 %v485, %v283
        %v654 = vadd.f32 %v486, %v529
        %v655 = vadd.f32 %v487, %v530
        %v656 = vadd.f32 %v488, %v531
        %v657 = vadd.f32 %v489, %v532
        %v658 = vadd.f32 %v490, %v533
        %v659 = vadd.f32 %v491, %v534
        %v660 = vadd.f32 %v492, %v535
        %v661 = vadd.f32 %v485, %v290
        %v662 = vadd.f32 %v486, %v536
        %v663 = vadd.f32 %v487, %v537
        %v664 = vadd.f32 %v488, %v538
        %v665 = vadd.f32 %v489, %v539
        %v666 = vadd.f32 %v490, %v540
        %v667 = vadd.f32 %v491, %v541
        %v668 = vadd.f32 %v492, %v542
        %v669 = vadd.f32 %v485, %v297
        %v670 = vadd.f32 %v486, %v543
        %v671 = vadd.f32 %v487, %v544
        %v672 = vadd.f32 %v488, %v545
        %v673 = vadd.f32 %v489, %v546
        %v674 = vadd.f32 %v490, %v547
        %v675 = vadd.f32 %v491, %v548
        %v676 = vadd.f32 %v492, %v549
        %v677 = vadd.f32 %v485, %v304
        %v678 = vadd.f32 %v486, %v550
        %v679 = vadd.f32 %v487, %v551
        %v680 = vadd.f32 %v488, %v552
        %v681 = vadd.f32 %v489, %v553
        %v682 = vadd.f32 %v490, %v554
        %v683 = vadd.f32 %v491, %v555
        %v684 = vadd.f32 %v492, %v556
        %vm685 = vcmask 1040384
        %v686 = vsel %vm685, %v621, -inf
        %v687 = vsel %vm685, %v622, -inf
        %v688 = vmax.f32 %v686, %v687
        %v689 = vsel %vm685, %v623, -inf
        %v690 = vmax.f32 %v688, %v689
        %v691 = vsel %vm685, %v624, -inf
        %v692 = vmax.f32 %v690, %v691
        %v693 = vsel %vm685, %v625, -inf
        %v694 = vmax.f32 %v692, %v693
        %v695 = vsel %vm685, %v626, -inf
        %v696 = vmax.f32 %v694, %v695
        %v697 = vsel %vm685, %v627, -inf
        %v698 = vmax.f32 %v696, %v697
        %v699 = vsel %vm685, %v628, -inf
        %v700 = vmax.f32 %v698, %v699
        %v701 = vsel %vm685, %v629, -inf
        %v702 = vsel %vm685, %v630, -inf
        %v703 = vmax.f32 %v701, %v702
        %v704 = vsel %vm685, %v631, -inf
        %v705 = vmax.f32 %v703, %v704
        %v706 = vsel %vm685, %v632, -inf
        %v707 = vmax.f32 %v705, %v706
        %v708 = vsel %vm685, %v633, -inf
        %v709 = vmax.f32 %v707, %v708
        %v710 = vsel %vm685, %v634, -inf
        %v711 = vmax.f32 %v709, %v710
        %v712 = vsel %vm685, %v635, -inf
        %v713 = vmax.f32 %v711, %v712
        %v714 = vsel %vm685, %v636, -inf
        %v715 = vmax.f32 %v713, %v714
        %v716 = vsel %vm685, %v637, -inf
        %v717 = vsel %vm685, %v638, -inf
        %v718 = vmax.f32 %v716, %v717
        %v719 = vsel %vm685, %v639, -inf
        %v720 = vmax.f32 %v718, %v719
        %v721 = vsel %vm685, %v640, -inf
        %v722 = vmax.f32 %v720, %v721
        %v723 = vsel %vm685, %v641, -inf
        %v724 = vmax.f32 %v722, %v723
        %v725 = vsel %vm685, %v642, -inf
        %v726 = vmax.f32 %v724, %v725
        %v727 = vsel %vm685, %v643, -inf
        %v728 = vmax.f32 %v726, %v727
        %v729 = vsel %vm685, %v644, -inf
        %v730 = vmax.f32 %v728, %v729
        %v731 = vsel %vm685, %v645, -inf
        %v732 = vsel %vm685, %v646, -inf
        %v733 = vmax.f32 %v731, %v732
        %v734 = vsel %vm685, %v647, -inf
        %v735 = vmax.f32 %v733, %v734
        %v736 = vsel %vm685, %v648, -inf
        %v737 = vmax.f32 %v735, %v736
        %v738 = vsel %vm685, %v649, -inf
        %v739 = vmax.f32 %v737, %v738
        %v740 = vsel %vm685, %v650, -inf
        %v741 = vmax.f32 %v739, %v740
        %v742 = vsel %vm685, %v651, -inf
        %v743 = vmax.f32 %v741, %v742
        %v744 = vsel %vm685, %v652, -inf
        %v745 = vmax.f32 %v743, %v744
        %v746 = vsel %vm685, %v653, -inf
        %v747 = vsel %vm685, %v654, -inf
        %v748 = vmax.f32 %v746, %v747
        %v749 = vsel %vm685, %v655, -inf
        %v750 = vmax.f32 %v748, %v749
        %v751 = vsel %vm685, %v656, -inf
        %v752 = vmax.f32 %v750, %v751
        %v753 = vsel %vm685, %v657, -inf
        %v754 = vmax.f32 %v752, %v753
        %v755 = vsel %vm685, %v658, -inf
        %v756 = vmax.f32 %v754, %v755
        %v757 = vsel %vm685, %v659, -inf
        %v758 = vmax.f32 %v756, %v757
        %v759 = vsel %vm685, %v660, -inf
        %v760 = vmax.f32 %v758, %v759
        %v761 = vsel %vm685, %v661, -inf
        %v762 = vsel %vm685, %v662, -inf
        %v763 = vmax.f32 %v761, %v762
        %v764 = vsel %vm685, %v663, -inf
        %v765 = vmax.f32 %v763, %v764
        %v766 = vsel %vm685, %v664, -inf
        %v767 = vmax.f32 %v765, %v766
        %v768 = vsel %vm685, %v665, -inf
        %v769 = vmax.f32 %v767, %v768
        %v770 = vsel %vm685, %v666, -inf
        %v771 = vmax.f32 %v769, %v770
        %v772 = vsel %vm685, %v667, -inf
        %v773 = vmax.f32 %v771, %v772
        %v774 = vsel %vm685, %v668, -inf
        %v775 = vmax.f32 %v773, %v774
        %v776 = vsel %vm685, %v669, -inf
        %v777 = vsel %vm685, %v670, -inf
        %v778 = vmax.f32 %v776, %v777
        %v779 = vsel %vm685, %v671, -inf
        %v780 = vmax.f32 %v778, %v779
        %v781 = vsel %vm685, %v672, -inf
        %v782 = vmax.f32 %v780, %v781
        %v783 = vsel %vm685, %v673, -inf
        %v784 = vmax.f32 %v782, %v783
        %v785 = vsel %vm685, %v674, -inf
        %v786 = vmax.f32 %v784, %v785
        %v787 = vsel %vm685, %v675, -inf
        %v788 = vmax.f32 %v786, %v787
        %v789 = vsel %vm685, %v676, -inf
        %v790 = vmax.f32 %v788, %v789
        %v791 = vsel %vm685, %v677, -inf
        %v792 = vsel %vm685, %v678, -inf
        %v793 = vmax.f32 %v791, %v792
        %v794 = vsel %vm685, %v679, -inf
        %v795 = vmax.f32 %v793, %v794
        %v796 = vsel %vm685, %v680, -inf
        %v797 = vmax.f32 %v795, %v796
        %v798 = vsel %vm685, %v681, -inf
        %v799 = vmax.f32 %v797, %v798
        %v800 = vsel %vm685, %v682, -inf
        %v801 = vmax.f32 %v799, %v800
        %v802 = vsel %vm685, %v683, -inf
        %v803 = vmax.f32 %v801, %v802
        %v804 = vsel %vm685, %v684, -inf
        %v805 = vmax.f32 %v803, %v804
        %v806 = vperm.slane %v700, 0
        %v807 = vperm.slane %v715, 0
        %v808 = vperm.slane %v730, 0
        %v809 = vperm.slane %v745, 0
        %v810 = vperm.slane %v760, 0
        %v811 = vperm.slane %v775, 0
        %v812 = vperm.slane %v790, 0
        %v813 = vperm.slane %v805, 0
        %vm814 = vcmp.eq.f32.partialorder %v621, %v806
        %vm815 = vcmp.eq.f32.partialorder %v622, %v806
        %vm816 = vcmp.eq.f32.partialorder %v623, %v806
        %vm817 = vcmp.eq.f32.partialorder %v624, %v806
        %vm818 = vcmp.eq.f32.partialorder %v625, %v806
        %vm819 = vcmp.eq.f32.partialorder %v626, %v806
        %vm820 = vcmp.eq.f32.partialorder %v627, %v806
        %vm821 = vcmp.eq.f32.partialorder %v628, %v806
        %vm822 = vcmp.eq.f32.partialorder %v629, %v807
        %vm823 = vcmp.eq.f32.partialorder %v630, %v807
        %vm824 = vcmp.eq.f32.partialorder %v631, %v807
        %vm825 = vcmp.eq.f32.partialorder %v632, %v807
        %vm826 = vcmp.eq.f32.partialorder %v633, %v807
        %vm827 = vcmp.eq.f32.partialorder %v634, %v807
        %vm828 = vcmp.eq.f32.partialorder %v635, %v807
        %vm829 = vcmp.eq.f32.partialorder %v636, %v807
        %vm830 = vcmp.eq.f32.partialorder %v637, %v808
        %vm831 = vcmp.eq.f32.partialorder %v638, %v808
        %vm832 = vcmp.eq.f32.partialorder %v639, %v808
        %vm833 = vcmp.eq.f32.partialorder %v640, %v808
        %vm834 = vcmp.eq.f32.partialorder %v641, %v808
        %vm835 = vcmp.eq.f32.partialorder %v642, %v808
        %vm836 = vcmp.eq.f32.partialorder %v643, %v808
        %vm837 = vcmp.eq.f32.partialorder %v644, %v808
        %vm838 = vcmp.eq.f32.partialorder %v645, %v809
        %vm839 = vcmp.eq.f32.partialorder %v646, %v809
        %vm840 = vcmp.eq.f32.partialorder %v647, %v809
        %vm841 = vcmp.eq.f32.partialorder %v648, %v809
        %vm842 = vcmp.eq.f32.partialorder %v649, %v809
        %vm843 = vcmp.eq.f32.partialorder %v650, %v809
        %vm844 = vcmp.eq.f32.partialorder %v651, %v809
        %vm845 = vcmp.eq.f32.partialorder %v652, %v809
        %vm846 = vcmp.eq.f32.partialorder %v653, %v810
        %vm847 = vcmp.eq.f32.partialorder %v654, %v810
        %vm848 = vcmp.eq.f32.partialorder %v655, %v810
        %vm849 = vcmp.eq.f32.partialorder %v656, %v810
        %vm850 = vcmp.eq.f32.partialorder %v657, %v810
        %vm851 = vcmp.eq.f32.partialorder %v658, %v810
        %vm852 = vcmp.eq.f32.partialorder %v659, %v810
        %vm853 = vcmp.eq.f32.partialorder %v660, %v810
        %vm854 = vcmp.eq.f32.partialorder %v661, %v811
        %vm855 = vcmp.eq.f32.partialorder %v662, %v811
        %vm856 = vcmp.eq.f32.partialorder %v663, %v811
        %vm857 = vcmp.eq.f32.partialorder %v664, %v811
        %vm858 = vcmp.eq.f32.partialorder %v665, %v811
        %vm859 = vcmp.eq.f32.partialorder %v666, %v811
        %vm860 = vcmp.eq.f32.partialorder %v667, %v811
        %vm861 = vcmp.eq.f32.partialorder %v668, %v811
        %vm862 = vcmp.eq.f32.partialorder %v669, %v812
        %vm863 = vcmp.eq.f32.partialorder %v670, %v812
        %vm864 = vcmp.eq.f32.partialorder %v671, %v812
        %vm865 = vcmp.eq.f32.partialorder %v672, %v812
        %vm866 = vcmp.eq.f32.partialorder %v673, %v812
        %vm867 = vcmp.eq.f32.partialorder %v674, %v812
        %vm868 = vcmp.eq.f32.partialorder %v675, %v812
        %vm869 = vcmp.eq.f32.partialorder %v676, %v812
        %vm870 = vcmp.eq.f32.partialorder %v677, %v813
        %vm871 = vcmp.eq.f32.partialorder %v678, %v813
        %vm872 = vcmp.eq.f32.partialorder %v679, %v813
        %vm873 = vcmp.eq.f32.partialorder %v680, %v813
        %vm874 = vcmp.eq.f32.partialorder %v681, %v813
        %vm875 = vcmp.eq.f32.partialorder %v682, %v813
        %vm876 = vcmp.eq.f32.partialorder %v683, %v813
        %vm877 = vcmp.eq.f32.partialorder %v684, %v813
        %v878 = vrot.slane %v306, 1
        %v879 = vrot.slane %v306, 2
        %v880 = vrot.slane %v306, 3
        %v881 = vrot.slane %v306, 4
        %v882 = vrot.slane %v306, 5
        %v883 = vrot.slane %v306, 6
        %v884 = vrot.slane %v306, 7
        %v885 = vsel %vm814, %v306, 8
        %v886 = vsel %vm815, %v878, 8
        %v887 = vsel %vm816, %v879, 8
        %v888 = vsel %vm817, %v880, 8
        %v889 = vsel %vm818, %v881, 8
        %v890 = vsel %vm819, %v882, 8
        %v891 = vsel %vm820, %v883, 8
        %v892 = vsel %vm821, %v884, 8
        %v893 = vsel %vm822, %v306, 8
        %v894 = vsel %vm823, %v878, 8
        %v895 = vsel %vm824, %v879, 8
        %v896 = vsel %vm825, %v880, 8
        %v897 = vsel %vm826, %v881, 8
        %v898 = vsel %vm827, %v882, 8
        %v899 = vsel %vm828, %v883, 8
        %v900 = vsel %vm829, %v884, 8
        %v901 = vsel %vm830, %v306, 8
        %v902 = vsel %vm831, %v878, 8
        %v903 = vsel %vm832, %v879, 8
        %v904 = vsel %vm833, %v880, 8
        %v905 = vsel %vm834, %v881, 8
        %v906 = vsel %vm835, %v882, 8
        %v907 = vsel %vm836, %v883, 8
        %v908 = vsel %vm837, %v884, 8
        %v909 = vsel %vm838, %v306, 8
        %v910 = vsel %vm839, %v878, 8
        %v911 = vsel %vm840, %v879, 8
        %v912 = vsel %vm841, %v880, 8
        %v913 = vsel %vm842, %v881, 8
        %v914 = vsel %vm843, %v882, 8
        %v915 = vsel %vm844, %v883, 8
        %v916 = vsel %vm845, %v884, 8
        %v917 = vsel %vm846, %v306, 8
        %v918 = vsel %vm847, %v878, 8
        %v919 = vsel %vm848, %v879, 8
        %v920 = vsel %vm849, %v880, 8
        %v921 = vsel %vm850, %v881, 8
        %v922 = vsel %vm851, %v882, 8
        %v923 = vsel %vm852, %v883, 8
        %v924 = vsel %vm853, %v884, 8
        %v925 = vsel %vm854, %v306, 8
        %v926 = vsel %vm855, %v878, 8
        %v927 = vsel %vm856, %v879, 8
        %v928 = vsel %vm857, %v880, 8
        %v929 = vsel %vm858, %v881, 8
        %v930 = vsel %vm859, %v882, 8
        %v931 = vsel %vm860, %v883, 8
        %v932 = vsel %vm861, %v884, 8
        %v933 = vsel %vm862, %v306, 8
        %v934 = vsel %vm863, %v878, 8
        %v935 = vsel %vm864, %v879, 8
        %v936 = vsel %vm865, %v880, 8
        %v937 = vsel %vm866, %v881, 8
        %v938 = vsel %vm867, %v882, 8
        %v939 = vsel %vm868, %v883, 8
        %v940 = vsel %vm869, %v884, 8
        %v941 = vsel %vm870, %v306, 8
        %v942 = vsel %vm871, %v878, 8
        %v943 = vsel %vm872, %v879, 8
        %v944 = vsel %vm873, %v880, 8
        %v945 = vsel %vm874, %v881, 8
        %v946 = vsel %vm875, %v882, 8
        %v947 = vsel %vm876, %v883, 8
        %v948 = vsel %vm877, %v884, 8
        %v949 = vsel %vm685, %v885, 2147483647
        %v950 = vsel %vm685, %v886, 2147483647
        %vm951 = vcmp.lt.s32.totalorder %v949, %v950
        %v952 = vsel %vm951, %v949, %v950
        %v953 = vsel %vm685, %v887, 2147483647
        %vm954 = vcmp.lt.s32.totalorder %v952, %v953
        %v955 = vsel %vm954, %v952, %v953
        %v956 = vsel %vm685, %v888, 2147483647
        %vm957 = vcmp.lt.s32.totalorder %v955, %v956
        %v958 = vsel %vm957, %v955, %v956
        %v959 = vsel %vm685, %v889, 2147483647
        %vm960 = vcmp.lt.s32.totalorder %v958, %v959
        %v961 = vsel %vm960, %v958, %v959
        %v962 = vsel %vm685, %v890, 2147483647
        %vm963 = vcmp.lt.s32.totalorder %v961, %v962
        %v964 = vsel %vm963, %v961, %v962
        %v965 = vsel %vm685, %v891, 2147483647
        %vm966 = vcmp.lt.s32.totalorder %v964, %v965
        %v967 = vsel %vm966, %v964, %v965
        %v968 = vsel %vm685, %v892, 2147483647
        %vm969 = vcmp.lt.s32.totalorder %v967, %v968
        %v970 = vsel %vm969, %v967, %v968
        %v971 = vsel %vm685, %v893, 2147483647
        %v972 = vsel %vm685, %v894, 2147483647
        %vm973 = vcmp.lt.s32.totalorder %v971, %v972
        %v974 = vsel %vm973, %v971, %v972
        %v975 = vsel %vm685, %v895, 2147483647
        %vm976 = vcmp.lt.s32.totalorder %v974, %v975
        %v977 = vsel %vm976, %v974, %v975
        %v978 = vsel %vm685, %v896, 2147483647
        %vm979 = vcmp.lt.s32.totalorder %v977, %v978
        %v980 = vsel %vm979, %v977, %v978
        %v981 = vsel %vm685, %v897, 2147483647
        %vm982 = vcmp.lt.s32.totalorder %v980, %v981
        %v983 = vsel %vm982, %v980, %v981
        %v984 = vsel %vm685, %v898, 2147483647
        %vm985 = vcmp.lt.s32.totalorder %v983, %v984
        %v986 = vsel %vm985, %v983, %v984
        %v987 = vsel %vm685, %v899, 2147483647
        %vm988 = vcmp.lt.s32.totalorder %v986, %v987
        %v989 = vsel %vm988, %v986, %v987
        %v990 = vsel %vm685, %v900, 2147483647
        %vm991 = vcmp.lt.s32.totalorder %v989, %v990
        %v992 = vsel %vm991, %v989, %v990
        %v993 = vsel %vm685, %v901, 2147483647
        %v994 = vsel %vm685, %v902, 2147483647
        %vm995 = vcmp.lt.s32.totalorder %v993, %v994
        %v996 = vsel %vm995, %v993, %v994
        %v997 = vsel %vm685, %v903, 2147483647
        %vm998 = vcmp.lt.s32.totalorder %v996, %v997
        %v999 = vsel %vm998, %v996, %v997
        %v1000 = vsel %vm685, %v904, 2147483647
        %vm1001 = vcmp.lt.s32.totalorder %v999, %v1000
        %v1002 = vsel %vm1001, %v999, %v1000
        %v1003 = vsel %vm685, %v905, 2147483647
        %vm1004 = vcmp.lt.s32.totalorder %v1002, %v1003
        %v1005 = vsel %vm1004, %v1002, %v1003
        %v1006 = vsel %vm685, %v906, 2147483647
        %vm1007 = vcmp.lt.s32.totalorder %v1005, %v1006
        %v1008 = vsel %vm1007, %v1005, %v1006
        %v1009 = vsel %vm685, %v907, 2147483647
        %vm1010 = vcmp.lt.s32.totalorder %v1008, %v1009
        %v1011 = vsel %vm1010, %v1008, %v1009
        %v1012 = vsel %vm685, %v908, 2147483647
        %vm1013 = vcmp.lt.s32.totalorder %v1011, %v1012
        %v1014 = vsel %vm1013, %v1011, %v1012
        %v1015 = vsel %vm685, %v909, 2147483647
        %v1016 = vsel %vm685, %v910, 2147483647
        %vm1017 = vcmp.lt.s32.totalorder %v1015, %v1016
        %v1018 = vsel %vm1017, %v1015, %v1016
        %v1019 = vsel %vm685, %v911, 2147483647
        %vm1020 = vcmp.lt.s32.totalorder %v1018, %v1019
        %v1021 = vsel %vm1020, %v1018, %v1019
        %v1022 = vsel %vm685, %v912, 2147483647
        %vm1023 = vcmp.lt.s32.totalorder %v1021, %v1022
        %v1024 = vsel %vm1023, %v1021, %v1022
        %v1025 = vsel %vm685, %v913, 2147483647
        %vm1026 = vcmp.lt.s32.totalorder %v1024, %v1025
        %v1027 = vsel %vm1026, %v1024, %v1025
        %v1028 = vsel %vm685, %v914, 2147483647
        %vm1029 = vcmp.lt.s32.totalorder %v1027, %v1028
        %v1030 = vsel %vm1029, %v1027, %v1028
        %v1031 = vsel %vm685, %v915, 2147483647
        %vm1032 = vcmp.lt.s32.totalorder %v1030, %v1031
        %v1033 = vsel %vm1032, %v1030, %v1031
        %v1034 = vsel %vm685, %v916, 2147483647
        %vm1035 = vcmp.lt.s32.totalorder %v1033, %v1034
        %v1036 = vsel %vm1035, %v1033, %v1034
        %v1037 = vsel %vm685, %v917, 2147483647
        %v1038 = vsel %vm685, %v918, 2147483647
        %vm1039 = vcmp.lt.s32.totalorder %v1037, %v1038
        %v1040 = vsel %vm1039, %v1037, %v1038
        %v1041 = vsel %vm685, %v919, 2147483647
        %vm1042 = vcmp.lt.s32.totalorder %v1040, %v1041
        %v1043 = vsel %vm1042, %v1040, %v1041
        %v1044 = vsel %vm685, %v920, 2147483647
        %vm1045 = vcmp.lt.s32.totalorder %v1043, %v1044
        %v1046 = vsel %vm1045, %v1043, %v1044
        %v1047 = vsel %vm685, %v921, 2147483647
        %vm1048 = vcmp.lt.s32.totalorder %v1046, %v1047
        %v1049 = vsel %vm1048, %v1046, %v1047
        %v1050 = vsel %vm685, %v922, 2147483647
        %vm1051 = vcmp.lt.s32.totalorder %v1049, %v1050
        %v1052 = vsel %vm1051, %v1049, %v1050
        %v1053 = vsel %vm685, %v923, 2147483647
        %vm1054 = vcmp.lt.s32.totalorder %v1052, %v1053
        %v1055 = vsel %vm1054, %v1052, %v1053
        %v1056 = vsel %vm685, %v924, 2147483647
        %vm1057 = vcmp.lt.s32.totalorder %v1055, %v1056
        %v1058 = vsel %vm1057, %v1055, %v1056
        %v1059 = vsel %vm685, %v925, 2147483647
        %v1060 = vsel %vm685, %v926, 2147483647
        %vm1061 = vcmp.lt.s32.totalorder %v1059, %v1060
        %v1062 = vsel %vm1061, %v1059, %v1060
        %v1063 = vsel %vm685, %v927, 2147483647
        %vm1064 = vcmp.lt.s32.totalorder %v1062, %v1063
        %v1065 = vsel %vm1064, %v1062, %v1063
        %v1066 = vsel %vm685, %v928, 2147483647
        %vm1067 = vcmp.lt.s32.totalorder %v1065, %v1066
        %v1068 = vsel %vm1067, %v1065, %v1066
        %v1069 = vsel %vm685, %v929, 2147483647
        %vm1070 = vcmp.lt.s32.totalorder %v1068, %v1069
        %v1071 = vsel %vm1070, %v1068, %v1069
        %v1072 = vsel %vm685, %v930, 2147483647
        %vm1073 = vcmp.lt.s32.totalorder %v1071, %v1072
        %v1074 = vsel %vm1073, %v1071, %v1072
        %v1075 = vsel %vm685, %v931, 2147483647
        %vm1076 = vcmp.lt.s32.totalorder %v1074, %v1075
        %v1077 = vsel %vm1076, %v1074, %v1075
        %v1078 = vsel %vm685, %v932, 2147483647
        %vm1079 = vcmp.lt.s32.totalorder %v1077, %v1078
        %v1080 = vsel %vm1079, %v1077, %v1078
        %v1081 = vsel %vm685, %v933, 2147483647
        %v1082 = vsel %vm685, %v934, 2147483647
        %vm1083 = vcmp.lt.s32.totalorder %v1081, %v1082
        %v1084 = vsel %vm1083, %v1081, %v1082
        %v1085 = vsel %vm685, %v935, 2147483647
        %vm1086 = vcmp.lt.s32.totalorder %v1084, %v1085
        %v1087 = vsel %vm1086, %v1084, %v1085
        %v1088 = vsel %vm685, %v936, 2147483647
        %vm1089 = vcmp.lt.s32.totalorder %v1087, %v1088
        %v1090 = vsel %vm1089, %v1087, %v1088
        %v1091 = vsel %vm685, %v937, 2147483647
        %vm1092 = vcmp.lt.s32.totalorder %v1090, %v1091
        %v1093 = vsel %vm1092, %v1090, %v1091
        %v1094 = vsel %vm685, %v938, 2147483647
        %vm1095 = vcmp.lt.s32.totalorder %v1093, %v1094
        %v1096 = vsel %vm1095, %v1093, %v1094
        %v1097 = vsel %vm685, %v939, 2147483647
        %vm1098 = vcmp.lt.s32.totalorder %v1096, %v1097
        %v1099 = vsel %vm1098, %v1096, %v1097
        %v1100 = vsel %vm685, %v940, 2147483647
        %vm1101 = vcmp.lt.s32.totalorder %v1099, %v1100
        %v1102 = vsel %vm1101, %v1099, %v1100
        %v1103 = vsel %vm685, %v941, 2147483647
        %v1104 = vsel %vm685, %v942, 2147483647
        %vm1105 = vcmp.lt.s32.totalorder %v1103, %v1104
        %v1106 = vsel %vm1105, %v1103, %v1104
        %v1107 = vsel %vm685, %v943, 2147483647
        %vm1108 = vcmp.lt.s32.totalorder %v1106, %v1107
        %v1109 = vsel %vm1108, %v1106, %v1107
        %v1110 = vsel %vm685, %v944, 2147483647
        %vm1111 = vcmp.lt.s32.totalorder %v1109, %v1110
        %v1112 = vsel %vm1111, %v1109, %v1110
        %v1113 = vsel %vm685, %v945, 2147483647
        %vm1114 = vcmp.lt.s32.totalorder %v1112, %v1113
        %v1115 = vsel %vm1114, %v1112, %v1113
        %v1116 = vsel %vm685, %v946, 2147483647
        %vm1117 = vcmp.lt.s32.totalorder %v1115, %v1116
        %v1118 = vsel %vm1117, %v1115, %v1116
        %v1119 = vsel %vm685, %v947, 2147483647
        %vm1120 = vcmp.lt.s32.totalorder %v1118, %v1119
        %v1121 = vsel %vm1120, %v1118, %v1119
        %v1122 = vsel %vm685, %v948, 2147483647
        %vm1123 = vcmp.lt.s32.totalorder %v1121, %v1122
        %v1124 = vsel %vm1123, %v1121, %v1122
        %v1125 = vrot.slane %v992, 7
        %v1126 = vsel %vm453, %v1125, %v970
        %v1127 = vrot.slane %v1014, 6
        %v1128 = vsel %vm455, %v1127, %v1126
        %v1129 = vrot.slane %v1036, 5
        %v1130 = vsel %vm457, %v1129, %v1128
        %v1131 = vrot.slane %v1058, 4
        %v1132 = vsel %vm459, %v1131, %v1130
        %v1133 = vrot.slane %v1080, 3
        %v1134 = vsel %vm461, %v1133, %v1132
        %v1135 = vrot.slane %v1102, 2
        %v1136 = vsel %vm463, %v1135, %v1134
        %v1137 = vrot.slane %v1124, 1
        %v1138 = vsel %vm465, %v1137, %v1136
        %s1139 = scalar_lea.vmem [#allocation2], 8
        %1140 = vst [vmem:[%s1139] sm:$0xff] %v1138
        %s1141 = scalar_lea.vmem %s218, 8 [#allocation3]
        %v1142 = vld [vmem:[%s1141] sm:$0xff]
        %v1144 = vrot.slane %v1142, 1
        %v1145 = vrot.slane %v1142, 2
        %v1146 = vrot.slane %v1142, 3
        %v1147 = vrot.slane %v1142, 4
        %v1148 = vrot.slane %v1142, 5
        %v1149 = vrot.slane %v1142, 6
        %v1150 = vrot.slane %v1142, 7
        %v1159 = vadd.f32 %v700, %v1142
        %v1160 = vadd.f32 %v715, %v1144
        %v1161 = vadd.f32 %v730, %v1145
        %v1162 = vadd.f32 %v745, %v1146
        %v1163 = vadd.f32 %v760, %v1147
        %v1164 = vadd.f32 %v775, %v1148
        %v1165 = vadd.f32 %v790, %v1149
        %v1166 = vadd.f32 %v805, %v1150
        %v1167 = vadd.f32 %v1159, %v255
        %v1168 = vadd.f32 %v1160, %v501
        %v1169 = vadd.f32 %v1161, %v502
        %v1170 = vadd.f32 %v1162, %v503
        %v1171 = vadd.f32 %v1163, %v504
        %v1172 = vadd.f32 %v1164, %v505
        %v1173 = vadd.f32 %v1165, %v506
        %v1174 = vadd.f32 %v1166, %v507
        %v1175 = vadd.f32 %v1159, %v262
        %v1176 = vadd.f32 %v1160, %v508
        %v1177 = vadd.f32 %v1161, %v509
        %v1178 = vadd.f32 %v1162, %v510
        %v1179 = vadd.f32 %v1163, %v511
        %v1180 = vadd.f32 %v1164, %v512
        %v1181 = vadd.f32 %v1165, %v513
        %v1182 = vadd.f32 %v1166, %v514
        %v1183 = vadd.f32 %v1159, %v269
        %v1184 = vadd.f32 %v1160, %v515
        %v1185 = vadd.f32 %v1161, %v516
        %v1186 = vadd.f32 %v1162, %v517
        %v1187 = vadd.f32 %v1163, %v518
        %v1188 = vadd.f32 %v1164, %v519
        %v1189 = vadd.f32 %v1165, %v520
        %v1190 = vadd.f32 %v1166, %v521
        %v1191 = vadd.f32 %v1159, %v276
        %v1192 = vadd.f32 %v1160, %v522
        %v1193 = vadd.f32 %v1161, %v523
        %v1194 = vadd.f32 %v1162, %v524
        %v1195 = vadd.f32 %v1163, %v525
        %v1196 = vadd.f32 %v1164, %v526
        %v1197 = vadd.f32 %v1165, %v527
        %v1198 = vadd.f32 %v1166, %v528
        %v1199 = vadd.f32 %v1159, %v283
        %v1200 = vadd.f32 %v1160, %v529
        %v1201 = vadd.f32 %v1161, %v530
        %v1202 = vadd.f32 %v1162, %v531
        %v1203 = vadd.f32 %v1163, %v532
        %v1204 = vadd.f32 %v1164, %v533
        %v1205 = vadd.f32 %v1165, %v534
        %v1206 = vadd.f32 %v1166, %v535
        %v1207 = vadd.f32 %v1159, %v290
        %v1208 = vadd.f32 %v1160, %v536
        %v1209 = vadd.f32 %v1161, %v537
        %v1210 = vadd.f32 %v1162, %v538
        %v1211 = vadd.f32 %v1163, %v539
        %v1212 = vadd.f32 %v1164, %v540
        %v1213 = vadd.f32 %v1165, %v541
        %v1214 = vadd.f32 %v1166, %v542
        %v1215 = vadd.f32 %v1159, %v297
        %v1216 = vadd.f32 %v1160, %v543
        %v1217 = vadd.f32 %v1161, %v544
        %v1218 = vadd.f32 %v1162, %v545
        %v1219 = vadd.f32 %v1163, %v546
        %v1220 = vadd.f32 %v1164, %v547
        %v1221 = vadd.f32 %v1165, %v548
        %v1222 = vadd.f32 %v1166, %v549
        %v1223 = vadd.f32 %v1159, %v304
        %v1224 = vadd.f32 %v1160, %v550
        %v1225 = vadd.f32 %v1161, %v551
        %v1226 = vadd.f32 %v1162, %v552
        %v1227 = vadd.f32 %v1163, %v553
        %v1228 = vadd.f32 %v1164, %v554
        %v1229 = vadd.f32 %v1165, %v555
        %v1230 = vadd.f32 %v1166, %v556
        %v1231 = vsel %vm685, %v1167, -inf
        %v1232 = vsel %vm685, %v1168, -inf
        %v1233 = vmax.f32 %v1231, %v1232
        %v1234 = vsel %vm685, %v1169, -inf
        %v1235 = vmax.f32 %v1233, %v1234
        %v1236 = vsel %vm685, %v1170, -inf
        %v1237 = vmax.f32 %v1235, %v1236
        %v1238 = vsel %vm685, %v1171, -inf
        %v1239 = vmax.f32 %v1237, %v1238
        %v1240 = vsel %vm685, %v1172, -inf
        %v1241 = vmax.f32 %v1239, %v1240
        %v1242 = vsel %vm685, %v1173, -inf
        %v1243 = vmax.f32 %v1241, %v1242
        %v1244 = vsel %vm685, %v1174, -inf
        %v1245 = vmax.f32 %v1243, %v1244
        %v1246 = vsel %vm685, %v1175, -inf
        %v1247 = vsel %vm685, %v1176, -inf
        %v1248 = vmax.f32 %v1246, %v1247
        %v1249 = vsel %vm685, %v1177, -inf
        %v1250 = vmax.f32 %v1248, %v1249
        %v1251 = vsel %vm685, %v1178, -inf
        %v1252 = vmax.f32 %v1250, %v1251
        %v1253 = vsel %vm685, %v1179, -inf
        %v1254 = vmax.f32 %v1252, %v1253
        %v1255 = vsel %vm685, %v1180, -inf
        %v1256 = vmax.f32 %v1254, %v1255
        %v1257 = vsel %vm685, %v1181, -inf
        %v1258 = vmax.f32 %v1256, %v1257
        %v1259 = vsel %vm685, %v1182, -inf
        %v1260 = vmax.f32 %v1258, %v1259
        %v1261 = vsel %vm685, %v1183, -inf
        %v1262 = vsel %vm685, %v1184, -inf
        %v1263 = vmax.f32 %v1261, %v1262
        %v1264 = vsel %vm685, %v1185, -inf
        %v1265 = vmax.f32 %v1263, %v1264
        %v1266 = vsel %vm685, %v1186, -inf
        %v1267 = vmax.f32 %v1265, %v1266
        %v1268 = vsel %vm685, %v1187, -inf
        %v1269 = vmax.f32 %v1267, %v1268
        %v1270 = vsel %vm685, %v1188, -inf
        %v1271 = vmax.f32 %v1269, %v1270
        %v1272 = vsel %vm685, %v1189, -inf
        %v1273 = vmax.f32 %v1271, %v1272
        %v1274 = vsel %vm685, %v1190, -inf
        %v1275 = vmax.f32 %v1273, %v1274
        %v1276 = vsel %vm685, %v1191, -inf
        %v1277 = vsel %vm685, %v1192, -inf
        %v1278 = vmax.f32 %v1276, %v1277
        %v1279 = vsel %vm685, %v1193, -inf
        %v1280 = vmax.f32 %v1278, %v1279
        %v1281 = vsel %vm685, %v1194, -inf
        %v1282 = vmax.f32 %v1280, %v1281
        %v1283 = vsel %vm685, %v1195, -inf
        %v1284 = vmax.f32 %v1282, %v1283
        %v1285 = vsel %vm685, %v1196, -inf
        %v1286 = vmax.f32 %v1284, %v1285
        %v1287 = vsel %vm685, %v1197, -inf
        %v1288 = vmax.f32 %v1286, %v1287
        %v1289 = vsel %vm685, %v1198, -inf
        %v1290 = vmax.f32 %v1288, %v1289
        %v1291 = vsel %vm685, %v1199, -inf
        %v1292 = vsel %vm685, %v1200, -inf
        %v1293 = vmax.f32 %v1291, %v1292
        %v1294 = vsel %vm685, %v1201, -inf
        %v1295 = vmax.f32 %v1293, %v1294
        %v1296 = vsel %vm685, %v1202, -inf
        %v1297 = vmax.f32 %v1295, %v1296
        %v1298 = vsel %vm685, %v1203, -inf
        %v1299 = vmax.f32 %v1297, %v1298
        %v1300 = vsel %vm685, %v1204, -inf
        %v1301 = vmax.f32 %v1299, %v1300
        %v1302 = vsel %vm685, %v1205, -inf
        %v1303 = vmax.f32 %v1301, %v1302
        %v1304 = vsel %vm685, %v1206, -inf
        %v1305 = vmax.f32 %v1303, %v1304
        %v1306 = vsel %vm685, %v1207, -inf
        %v1307 = vsel %vm685, %v1208, -inf
        %v1308 = vmax.f32 %v1306, %v1307
        %v1309 = vsel %vm685, %v1209, -inf
        %v1310 = vmax.f32 %v1308, %v1309
        %v1311 = vsel %vm685, %v1210, -inf
        %v1312 = vmax.f32 %v1310, %v1311
        %v1313 = vsel %vm685, %v1211, -inf
        %v1314 = vmax.f32 %v1312, %v1313
        %v1315 = vsel %vm685, %v1212, -inf
        %v1316 = vmax.f32 %v1314, %v1315
        %v1317 = vsel %vm685, %v1213, -inf
        %v1318 = vmax.f32 %v1316, %v1317
        %v1319 = vsel %vm685, %v1214, -inf
        %v1320 = vmax.f32 %v1318, %v1319
        %v1321 = vsel %vm685, %v1215, -inf
        %v1322 = vsel %vm685, %v1216, -inf
        %v1323 = vmax.f32 %v1321, %v1322
        %v1324 = vsel %vm685, %v1217, -inf
        %v1325 = vmax.f32 %v1323, %v1324
        %v1326 = vsel %vm685, %v1218, -inf
        %v1327 = vmax.f32 %v1325, %v1326
        %v1328 = vsel %vm685, %v1219, -inf
        %v1329 = vmax.f32 %v1327, %v1328
        %v1330 = vsel %vm685, %v1220, -inf
        %v1331 = vmax.f32 %v1329, %v1330
        %v1332 = vsel %vm685, %v1221, -inf
        %v1333 = vmax.f32 %v1331, %v1332
        %v1334 = vsel %vm685, %v1222, -inf
        %v1335 = vmax.f32 %v1333, %v1334
        %v1336 = vsel %vm685, %v1223, -inf
        %v1337 = vsel %vm685, %v1224, -inf
        %v1338 = vmax.f32 %v1336, %v1337
        %v1339 = vsel %vm685, %v1225, -inf
        %v1340 = vmax.f32 %v1338, %v1339
        %v1341 = vsel %vm685, %v1226, -inf
        %v1342 = vmax.f32 %v1340, %v1341
        %v1343 = vsel %vm685, %v1227, -inf
        %v1344 = vmax.f32 %v1342, %v1343
        %v1345 = vsel %vm685, %v1228, -inf
        %v1346 = vmax.f32 %v1344, %v1345
        %v1347 = vsel %vm685, %v1229, -inf
        %v1348 = vmax.f32 %v1346, %v1347
        %v1349 = vsel %vm685, %v1230, -inf
        %v1350 = vmax.f32 %v1348, %v1349
        %v1351 = vperm.slane %v1245, 0
        %v1352 = vperm.slane %v1260, 0
        %v1353 = vperm.slane %v1275, 0
        %v1354 = vperm.slane %v1290, 0
        %v1355 = vperm.slane %v1305, 0
        %v1356 = vperm.slane %v1320, 0
        %v1357 = vperm.slane %v1335, 0
        %v1358 = vperm.slane %v1350, 0
        %vm1359 = vcmp.eq.f32.partialorder %v1167, %v1351
        %vm1360 = vcmp.eq.f32.partialorder %v1168, %v1351
        %vm1361 = vcmp.eq.f32.partialorder %v1169, %v1351
        %vm1362 = vcmp.eq.f32.partialorder %v1170, %v1351
        %vm1363 = vcmp.eq.f32.partialorder %v1171, %v1351
        %vm1364 = vcmp.eq.f32.partialorder %v1172, %v1351
        %vm1365 = vcmp.eq.f32.partialorder %v1173, %v1351
        %vm1366 = vcmp.eq.f32.partialorder %v1174, %v1351
        %vm1367 = vcmp.eq.f32.partialorder %v1175, %v1352
        %vm1368 = vcmp.eq.f32.partialorder %v1176, %v1352
        %vm1369 = vcmp.eq.f32.partialorder %v1177, %v1352
        %vm1370 = vcmp.eq.f32.partialorder %v1178, %v1352
        %vm1371 = vcmp.eq.f32.partialorder %v1179, %v1352
        %vm1372 = vcmp.eq.f32.partialorder %v1180, %v1352
        %vm1373 = vcmp.eq.f32.partialorder %v1181, %v1352
        %vm1374 = vcmp.eq.f32.partialorder %v1182, %v1352
        %vm1375 = vcmp.eq.f32.partialorder %v1183, %v1353
        %vm1376 = vcmp.eq.f32.partialorder %v1184, %v1353
        %vm1377 = vcmp.eq.f32.partialorder %v1185, %v1353
        %vm1378 = vcmp.eq.f32.partialorder %v1186, %v1353
        %vm1379 = vcmp.eq.f32.partialorder %v1187, %v1353
        %vm1380 = vcmp.eq.f32.partialorder %v1188, %v1353
        %vm1381 = vcmp.eq.f32.partialorder %v1189, %v1353
        %vm1382 = vcmp.eq.f32.partialorder %v1190, %v1353
        %vm1383 = vcmp.eq.f32.partialorder %v1191, %v1354
        %vm1384 = vcmp.eq.f32.partialorder %v1192, %v1354
        %vm1385 = vcmp.eq.f32.partialorder %v1193, %v1354
        %vm1386 = vcmp.eq.f32.partialorder %v1194, %v1354
        %vm1387 = vcmp.eq.f32.partialorder %v1195, %v1354
        %vm1388 = vcmp.eq.f32.partialorder %v1196, %v1354
        %vm1389 = vcmp.eq.f32.partialorder %v1197, %v1354
        %vm1390 = vcmp.eq.f32.partialorder %v1198, %v1354
        %vm1391 = vcmp.eq.f32.partialorder %v1199, %v1355
        %vm1392 = vcmp.eq.f32.partialorder %v1200, %v1355
        %vm1393 = vcmp.eq.f32.partialorder %v1201, %v1355
        %vm1394 = vcmp.eq.f32.partialorder %v1202, %v1355
        %vm1395 = vcmp.eq.f32.partialorder %v1203, %v1355
        %vm1396 = vcmp.eq.f32.partialorder %v1204, %v1355
        %vm1397 = vcmp.eq.f32.partialorder %v1205, %v1355
        %vm1398 = vcmp.eq.f32.partialorder %v1206, %v1355
        %vm1399 = vcmp.eq.f32.partialorder %v1207, %v1356
        %vm1400 = vcmp.eq.f32.partialorder %v1208, %v1356
        %vm1401 = vcmp.eq.f32.partialorder %v1209, %v1356
        %vm1402 = vcmp.eq.f32.partialorder %v1210, %v1356
        %vm1403 = vcmp.eq.f32.partialorder %v1211, %v1356
        %vm1404 = vcmp.eq.f32.partialorder %v1212, %v1356
        %vm1405 = vcmp.eq.f32.partialorder %v1213, %v1356
        %vm1406 = vcmp.eq.f32.partialorder %v1214, %v1356
        %vm1407 = vcmp.eq.f32.partialorder %v1215, %v1357
        %vm1408 = vcmp.eq.f32.partialorder %v1216, %v1357
        %vm1409 = vcmp.eq.f32.partialorder %v1217, %v1357
        %vm1410 = vcmp.eq.f32.partialorder %v1218, %v1357
        %vm1411 = vcmp.eq.f32.partialorder %v1219, %v1357
        %vm1412 = vcmp.eq.f32.partialorder %v1220, %v1357
        %vm1413 = vcmp.eq.f32.partialorder %v1221, %v1357
        %vm1414 = vcmp.eq.f32.partialorder %v1222, %v1357
        %vm1415 = vcmp.eq.f32.partialorder %v1223, %v1358
        %vm1416 = vcmp.eq.f32.partialorder %v1224, %v1358
        %vm1417 = vcmp.eq.f32.partialorder %v1225, %v1358
        %vm1418 = vcmp.eq.f32.partialorder %v1226, %v1358
        %vm1419 = vcmp.eq.f32.partialorder %v1227, %v1358
        %vm1420 = vcmp.eq.f32.partialorder %v1228, %v1358
        %vm1421 = vcmp.eq.f32.partialorder %v1229, %v1358
        %vm1422 = vcmp.eq.f32.partialorder %v1230, %v1358
        %v1423 = vsel %vm1359, %v306, 8
        %v1424 = vsel %vm1360, %v878, 8
        %v1425 = vsel %vm1361, %v879, 8
        %v1426 = vsel %vm1362, %v880, 8
        %v1427 = vsel %vm1363, %v881, 8
        %v1428 = vsel %vm1364, %v882, 8
        %v1429 = vsel %vm1365, %v883, 8
        %v1430 = vsel %vm1366, %v884, 8
        %v1431 = vsel %vm1367, %v306, 8
        %v1432 = vsel %vm1368, %v878, 8
        %v1433 = vsel %vm1369, %v879, 8
        %v1434 = vsel %vm1370, %v880, 8
        %v1435 = vsel %vm1371, %v881, 8
        %v1436 = vsel %vm1372, %v882, 8
        %v1437 = vsel %vm1373, %v883, 8
        %v1438 = vsel %vm1374, %v884, 8
        %v1439 = vsel %vm1375, %v306, 8
        %v1440 = vsel %vm1376, %v878, 8
        %v1441 = vsel %vm1377, %v879, 8
        %v1442 = vsel %vm1378, %v880, 8
        %v1443 = vsel %vm1379, %v881, 8
        %v1444 = vsel %vm1380, %v882, 8
        %v1445 = vsel %vm1381, %v883, 8
        %v1446 = vsel %vm1382, %v884, 8
        %v1447 = vsel %vm1383, %v306, 8
        %v1448 = vsel %vm1384, %v878, 8
        %v1449 = vsel %vm1385, %v879, 8
        %v1450 = vsel %vm1386, %v880, 8
        %v1451 = vsel %vm1387, %v881, 8
        %v1452 = vsel %vm1388, %v882, 8
        %v1453 = vsel %vm1389, %v883, 8
        %v1454 = vsel %vm1390, %v884, 8
        %v1455 = vsel %vm1391, %v306, 8
        %v1456 = vsel %vm1392, %v878, 8
        %v1457 = vsel %vm1393, %v879, 8
        %v1458 = vsel %vm1394, %v880, 8
        %v1459 = vsel %vm1395, %v881, 8
        %v1460 = vsel %vm1396, %v882, 8
        %v1461 = vsel %vm1397, %v883, 8
        %v1462 = vsel %vm1398, %v884, 8
        %v1463 = vsel %vm1399, %v306, 8
        %v1464 = vsel %vm1400, %v878, 8
        %v1465 = vsel %vm1401, %v879, 8
        %v1466 = vsel %vm1402, %v880, 8
        %v1467 = vsel %vm1403, %v881, 8
        %v1468 = vsel %vm1404, %v882, 8
        %v1469 = vsel %vm1405, %v883, 8
        %v1470 = vsel %vm1406, %v884, 8
        %v1471 = vsel %vm1407, %v306, 8
        %v1472 = vsel %vm1408, %v878, 8
        %v1473 = vsel %vm1409, %v879, 8
        %v1474 = vsel %vm1410, %v880, 8
        %v1475 = vsel %vm1411, %v881, 8
        %v1476 = vsel %vm1412, %v882, 8
        %v1477 = vsel %vm1413, %v883, 8
        %v1478 = vsel %vm1414, %v884, 8
        %v1479 = vsel %vm1415, %v306, 8
        %v1480 = vsel %vm1416, %v878, 8
        %v1481 = vsel %vm1417, %v879, 8
        %v1482 = vsel %vm1418, %v880, 8
        %v1483 = vsel %vm1419, %v881, 8
        %v1484 = vsel %vm1420, %v882, 8
        %v1485 = vsel %vm1421, %v883, 8
        %v1486 = vsel %vm1422, %v884, 8
        %v1487 = vsel %vm685, %v1423, 2147483647
        %v1488 = vsel %vm685, %v1424, 2147483647
        %vm1489 = vcmp.lt.s32.totalorder %v1487, %v1488
        %v1490 = vsel %vm1489, %v1487, %v1488
        %v1491 = vsel %vm685, %v1425, 2147483647
        %vm1492 = vcmp.lt.s32.totalorder %v1490, %v1491
        %v1493 = vsel %vm1492, %v1490, %v1491
        %v1494 = vsel %vm685, %v1426, 2147483647
        %vm1495 = vcmp.lt.s32.totalorder %v1493, %v1494
        %v1496 = vsel %vm1495, %v1493, %v1494
        %v1497 = vsel %vm685, %v1427, 2147483647
        %vm1498 = vcmp.lt.s32.totalorder %v1496, %v1497
        %v1499 = vsel %vm1498, %v1496, %v1497
        %v1500 = vsel %vm685, %v1428, 2147483647
        %vm1501 = vcmp.lt.s32.totalorder %v1499, %v1500
        %v1502 = vsel %vm1501, %v1499, %v1500
        %v1503 = vsel %vm685, %v1429, 2147483647
        %vm1504 = vcmp.lt.s32.totalorder %v1502, %v1503
        %v1505 = vsel %vm1504, %v1502, %v1503
        %v1506 = vsel %vm685, %v1430, 2147483647
        %vm1507 = vcmp.lt.s32.totalorder %v1505, %v1506
        %v1508 = vsel %vm1507, %v1505, %v1506
        %v1509 = vsel %vm685, %v1431, 2147483647
        %v1510 = vsel %vm685, %v1432, 2147483647
        %vm1511 = vcmp.lt.s32.totalorder %v1509, %v1510
        %v1512 = vsel %vm1511, %v1509, %v1510
        %v1513 = vsel %vm685, %v1433, 2147483647
        %vm1514 = vcmp.lt.s32.totalorder %v1512, %v1513
        %v1515 = vsel %vm1514, %v1512, %v1513
        %v1516 = vsel %vm685, %v1434, 2147483647
        %vm1517 = vcmp.lt.s32.totalorder %v1515, %v1516
        %v1518 = vsel %vm1517, %v1515, %v1516
        %v1519 = vsel %vm685, %v1435, 2147483647
        %vm1520 = vcmp.lt.s32.totalorder %v1518, %v1519
        %v1521 = vsel %vm1520, %v1518, %v1519
        %v1522 = vsel %vm685, %v1436, 2147483647
        %vm1523 = vcmp.lt.s32.totalorder %v1521, %v1522
        %v1524 = vsel %vm1523, %v1521, %v1522
        %v1525 = vsel %vm685, %v1437, 2147483647
        %vm1526 = vcmp.lt.s32.totalorder %v1524, %v1525
        %v1527 = vsel %vm1526, %v1524, %v1525
        %v1528 = vsel %vm685, %v1438, 2147483647
        %vm1529 = vcmp.lt.s32.totalorder %v1527, %v1528
        %v1530 = vsel %vm1529, %v1527, %v1528
        %v1531 = vsel %vm685, %v1439, 2147483647
        %v1532 = vsel %vm685, %v1440, 2147483647
        %vm1533 = vcmp.lt.s32.totalorder %v1531, %v1532
        %v1534 = vsel %vm1533, %v1531, %v1532
        %v1535 = vsel %vm685, %v1441, 2147483647
        %vm1536 = vcmp.lt.s32.totalorder %v1534, %v1535
        %v1537 = vsel %vm1536, %v1534, %v1535
        %v1538 = vsel %vm685, %v1442, 2147483647
        %vm1539 = vcmp.lt.s32.totalorder %v1537, %v1538
        %v1540 = vsel %vm1539, %v1537, %v1538
        %v1541 = vsel %vm685, %v1443, 2147483647
        %vm1542 = vcmp.lt.s32.totalorder %v1540, %v1541
        %v1543 = vsel %vm1542, %v1540, %v1541
        %v1544 = vsel %vm685, %v1444, 2147483647
        %vm1545 = vcmp.lt.s32.totalorder %v1543, %v1544
        %v1546 = vsel %vm1545, %v1543, %v1544
        %v1547 = vsel %vm685, %v1445, 2147483647
        %vm1548 = vcmp.lt.s32.totalorder %v1546, %v1547
        %v1549 = vsel %vm1548, %v1546, %v1547
        %v1550 = vsel %vm685, %v1446, 2147483647
        %vm1551 = vcmp.lt.s32.totalorder %v1549, %v1550
        %v1552 = vsel %vm1551, %v1549, %v1550
        %v1553 = vsel %vm685, %v1447, 2147483647
        %v1554 = vsel %vm685, %v1448, 2147483647
        %vm1555 = vcmp.lt.s32.totalorder %v1553, %v1554
        %v1556 = vsel %vm1555, %v1553, %v1554
        %v1557 = vsel %vm685, %v1449, 2147483647
        %vm1558 = vcmp.lt.s32.totalorder %v1556, %v1557
        %v1559 = vsel %vm1558, %v1556, %v1557
        %v1560 = vsel %vm685, %v1450, 2147483647
        %vm1561 = vcmp.lt.s32.totalorder %v1559, %v1560
        %v1562 = vsel %vm1561, %v1559, %v1560
        %v1563 = vsel %vm685, %v1451, 2147483647
        %vm1564 = vcmp.lt.s32.totalorder %v1562, %v1563
        %v1565 = vsel %vm1564, %v1562, %v1563
        %v1566 = vsel %vm685, %v1452, 2147483647
        %vm1567 = vcmp.lt.s32.totalorder %v1565, %v1566
        %v1568 = vsel %vm1567, %v1565, %v1566
        %v1569 = vsel %vm685, %v1453, 2147483647
        %vm1570 = vcmp.lt.s32.totalorder %v1568, %v1569
        %v1571 = vsel %vm1570, %v1568, %v1569
        %v1572 = vsel %vm685, %v1454, 2147483647
        %vm1573 = vcmp.lt.s32.totalorder %v1571, %v1572
        %v1574 = vsel %vm1573, %v1571, %v1572
        %v1575 = vsel %vm685, %v1455, 2147483647
        %v1576 = vsel %vm685, %v1456, 2147483647
        %vm1577 = vcmp.lt.s32.totalorder %v1575, %v1576
        %v1578 = vsel %vm1577, %v1575, %v1576
        %v1579 = vsel %vm685, %v1457, 2147483647
        %vm1580 = vcmp.lt.s32.totalorder %v1578, %v1579
        %v1581 = vsel %vm1580, %v1578, %v1579
        %v1582 = vsel %vm685, %v1458, 2147483647
        %vm1583 = vcmp.lt.s32.totalorder %v1581, %v1582
        %v1584 = vsel %vm1583, %v1581, %v1582
        %v1585 = vsel %vm685, %v1459, 2147483647
        %vm1586 = vcmp.lt.s32.totalorder %v1584, %v1585
        %v1587 = vsel %vm1586, %v1584, %v1585
        %v1588 = vsel %vm685, %v1460, 2147483647
        %vm1589 = vcmp.lt.s32.totalorder %v1587, %v1588
        %v1590 = vsel %vm1589, %v1587, %v1588
        %v1591 = vsel %vm685, %v1461, 2147483647
        %vm1592 = vcmp.lt.s32.totalorder %v1590, %v1591
        %v1593 = vsel %vm1592, %v1590, %v1591
        %v1594 = vsel %vm685, %v1462, 2147483647
        %vm1595 = vcmp.lt.s32.totalorder %v1593, %v1594
        %v1596 = vsel %vm1595, %v1593, %v1594
        %v1597 = vsel %vm685, %v1463, 2147483647
        %v1598 = vsel %vm685, %v1464, 2147483647
        %vm1599 = vcmp.lt.s32.totalorder %v1597, %v1598
        %v1600 = vsel %vm1599, %v1597, %v1598
        %v1601 = vsel %vm685, %v1465, 2147483647
        %vm1602 = vcmp.lt.s32.totalorder %v1600, %v1601
        %v1603 = vsel %vm1602, %v1600, %v1601
        %v1604 = vsel %vm685, %v1466, 2147483647
        %vm1605 = vcmp.lt.s32.totalorder %v1603, %v1604
        %v1606 = vsel %vm1605, %v1603, %v1604
        %v1607 = vsel %vm685, %v1467, 2147483647
        %vm1608 = vcmp.lt.s32.totalorder %v1606, %v1607
        %v1609 = vsel %vm1608, %v1606, %v1607
        %v1610 = vsel %vm685, %v1468, 2147483647
        %vm1611 = vcmp.lt.s32.totalorder %v1609, %v1610
        %v1612 = vsel %vm1611, %v1609, %v1610
        %v1613 = vsel %vm685, %v1469, 2147483647
        %vm1614 = vcmp.lt.s32.totalorder %v1612, %v1613
        %v1615 = vsel %vm1614, %v1612, %v1613
        %v1616 = vsel %vm685, %v1470, 2147483647
        %vm1617 = vcmp.lt.s32.totalorder %v1615, %v1616
        %v1618 = vsel %vm1617, %v1615, %v1616
        %v1619 = vsel %vm685, %v1471, 2147483647
        %v1620 = vsel %vm685, %v1472, 2147483647
        %vm1621 = vcmp.lt.s32.totalorder %v1619, %v1620
        %v1622 = vsel %vm1621, %v1619, %v1620
        %v1623 = vsel %vm685, %v1473, 2147483647
        %vm1624 = vcmp.lt.s32.totalorder %v1622, %v1623
        %v1625 = vsel %vm1624, %v1622, %v1623
        %v1626 = vsel %vm685, %v1474, 2147483647
        %vm1627 = vcmp.lt.s32.totalorder %v1625, %v1626
        %v1628 = vsel %vm1627, %v1625, %v1626
        %v1629 = vsel %vm685, %v1475, 2147483647
        %vm1630 = vcmp.lt.s32.totalorder %v1628, %v1629
        %v1631 = vsel %vm1630, %v1628, %v1629
        %v1632 = vsel %vm685, %v1476, 2147483647
        %vm1633 = vcmp.lt.s32.totalorder %v1631, %v1632
        %v1634 = vsel %vm1633, %v1631, %v1632
        %v1635 = vsel %vm685, %v1477, 2147483647
        %vm1636 = vcmp.lt.s32.totalorder %v1634, %v1635
        %v1637 = vsel %vm1636, %v1634, %v1635
        %v1638 = vsel %vm685, %v1478, 2147483647
        %vm1639 = vcmp.lt.s32.totalorder %v1637, %v1638
        %v1640 = vsel %vm1639, %v1637, %v1638
        %v1641 = vsel %vm685, %v1479, 2147483647
        %v1642 = vsel %vm685, %v1480, 2147483647
        %vm1643 = vcmp.lt.s32.totalorder %v1641, %v1642
        %v1644 = vsel %vm1643, %v1641, %v1642
        %v1645 = vsel %vm685, %v1481, 2147483647
        %vm1646 = vcmp.lt.s32.totalorder %v1644, %v1645
        %v1647 = vsel %vm1646, %v1644, %v1645
        %v1648 = vsel %vm685, %v1482, 2147483647
        %vm1649 = vcmp.lt.s32.totalorder %v1647, %v1648
        %v1650 = vsel %vm1649, %v1647, %v1648
        %v1651 = vsel %vm685, %v1483, 2147483647
        %vm1652 = vcmp.lt.s32.totalorder %v1650, %v1651
        %v1653 = vsel %vm1652, %v1650, %v1651
        %v1654 = vsel %vm685, %v1484, 2147483647
        %vm1655 = vcmp.lt.s32.totalorder %v1653, %v1654
        %v1656 = vsel %vm1655, %v1653, %v1654
        %v1657 = vsel %vm685, %v1485, 2147483647
        %vm1658 = vcmp.lt.s32.totalorder %v1656, %v1657
        %v1659 = vsel %vm1658, %v1656, %v1657
        %v1660 = vsel %vm685, %v1486, 2147483647
        %vm1661 = vcmp.lt.s32.totalorder %v1659, %v1660
        %v1662 = vsel %vm1661, %v1659, %v1660
        %v1663 = vrot.slane %v1530, 7
        %v1664 = vsel %vm453, %v1663, %v1508
        %v1665 = vrot.slane %v1552, 6
        %v1666 = vsel %vm455, %v1665, %v1664
        %v1667 = vrot.slane %v1574, 5
        %v1668 = vsel %vm457, %v1667, %v1666
        %v1669 = vrot.slane %v1596, 4
        %v1670 = vsel %vm459, %v1669, %v1668
        %v1671 = vrot.slane %v1618, 3
        %v1672 = vsel %vm461, %v1671, %v1670
        %v1673 = vrot.slane %v1640, 2
        %v1674 = vsel %vm463, %v1673, %v1672
        %v1675 = vrot.slane %v1662, 1
        %v1676 = vsel %vm465, %v1675, %v1674
        %s1677 = scalar_lea.vmem [#allocation2], 16
        %1678 = vst [vmem:[%s1677] sm:$0xff] %v1676
        %s1679 = scalar_lea.vmem %s218, 16 [#allocation3]
        %v1680 = vld [vmem:[%s1679] sm:$0xff]
        %v1682 = vrot.slane %v1680, 1
        %v1683 = vrot.slane %v1680, 2
        %v1684 = vrot.slane %v1680, 3
        %v1685 = vrot.slane %v1680, 4
        %v1686 = vrot.slane %v1680, 5
        %v1687 = vrot.slane %v1680, 6
        %v1688 = vrot.slane %v1680, 7
        %v1697 = vadd.f32 %v1245, %v1680
        %v1698 = vadd.f32 %v1260, %v1682
        %v1699 = vadd.f32 %v1275, %v1683
        %v1700 = vadd.f32 %v1290, %v1684
        %v1701 = vadd.f32 %v1305, %v1685
        %v1702 = vadd.f32 %v1320, %v1686
        %v1703 = vadd.f32 %v1335, %v1687
        %v1704 = vadd.f32 %v1350, %v1688
        %v1705 = vadd.f32 %v1697, %v255
        %v1706 = vadd.f32 %v1698, %v501
        %v1707 = vadd.f32 %v1699, %v502
        %v1708 = vadd.f32 %v1700, %v503
        %v1709 = vadd.f32 %v1701, %v504
        %v1710 = vadd.f32 %v1702, %v505
        %v1711 = vadd.f32 %v1703, %v506
        %v1712 = vadd.f32 %v1704, %v507
        %v1713 = vadd.f32 %v1697, %v262
        %v1714 = vadd.f32 %v1698, %v508
        %v1715 = vadd.f32 %v1699, %v509
        %v1716 = vadd.f32 %v1700, %v510
        %v1717 = vadd.f32 %v1701, %v511
        %v1718 = vadd.f32 %v1702, %v512
        %v1719 = vadd.f32 %v1703, %v513
        %v1720 = vadd.f32 %v1704, %v514
        %v1721 = vadd.f32 %v1697, %v269
        %v1722 = vadd.f32 %v1698, %v515
        %v1723 = vadd.f32 %v1699, %v516
        %v1724 = vadd.f32 %v1700, %v517
        %v1725 = vadd.f32 %v1701, %v518
        %v1726 = vadd.f32 %v1702, %v519
        %v1727 = vadd.f32 %v1703, %v520
        %v1728 = vadd.f32 %v1704, %v521
        %v1729 = vadd.f32 %v1697, %v276
        %v1730 = vadd.f32 %v1698, %v522
        %v1731 = vadd.f32 %v1699, %v523
        %v1732 = vadd.f32 %v1700, %v524
        %v1733 = vadd.f32 %v1701, %v525
        %v1734 = vadd.f32 %v1702, %v526
        %v1735 = vadd.f32 %v1703, %v527
        %v1736 = vadd.f32 %v1704, %v528
        %v1737 = vadd.f32 %v1697, %v283
        %v1738 = vadd.f32 %v1698, %v529
        %v1739 = vadd.f32 %v1699, %v530
        %v1740 = vadd.f32 %v1700, %v531
        %v1741 = vadd.f32 %v1701, %v532
        %v1742 = vadd.f32 %v1702, %v533
        %v1743 = vadd.f32 %v1703, %v534
        %v1744 = vadd.f32 %v1704, %v535
        %v1745 = vadd.f32 %v1697, %v290
        %v1746 = vadd.f32 %v1698, %v536
        %v1747 = vadd.f32 %v1699, %v537
        %v1748 = vadd.f32 %v1700, %v538
        %v1749 = vadd.f32 %v1701, %v539
        %v1750 = vadd.f32 %v1702, %v540
        %v1751 = vadd.f32 %v1703, %v541
        %v1752 = vadd.f32 %v1704, %v542
        %v1753 = vadd.f32 %v1697, %v297
        %v1754 = vadd.f32 %v1698, %v543
        %v1755 = vadd.f32 %v1699, %v544
        %v1756 = vadd.f32 %v1700, %v545
        %v1757 = vadd.f32 %v1701, %v546
        %v1758 = vadd.f32 %v1702, %v547
        %v1759 = vadd.f32 %v1703, %v548
        %v1760 = vadd.f32 %v1704, %v549
        %v1761 = vadd.f32 %v1697, %v304
        %v1762 = vadd.f32 %v1698, %v550
        %v1763 = vadd.f32 %v1699, %v551
        %v1764 = vadd.f32 %v1700, %v552
        %v1765 = vadd.f32 %v1701, %v553
        %v1766 = vadd.f32 %v1702, %v554
        %v1767 = vadd.f32 %v1703, %v555
        %v1768 = vadd.f32 %v1704, %v556
        %v1769 = vsel %vm685, %v1705, -inf
        %v1770 = vsel %vm685, %v1706, -inf
        %v1771 = vmax.f32 %v1769, %v1770
        %v1772 = vsel %vm685, %v1707, -inf
        %v1773 = vmax.f32 %v1771, %v1772
        %v1774 = vsel %vm685, %v1708, -inf
        %v1775 = vmax.f32 %v1773, %v1774
        %v1776 = vsel %vm685, %v1709, -inf
        %v1777 = vmax.f32 %v1775, %v1776
        %v1778 = vsel %vm685, %v1710, -inf
        %v1779 = vmax.f32 %v1777, %v1778
        %v1780 = vsel %vm685, %v1711, -inf
        %v1781 = vmax.f32 %v1779, %v1780
        %v1782 = vsel %vm685, %v1712, -inf
        %v1783 = vmax.f32 %v1781, %v1782
        %v1784 = vsel %vm685, %v1713, -inf
        %v1785 = vsel %vm685, %v1714, -inf
        %v1786 = vmax.f32 %v1784, %v1785
        %v1787 = vsel %vm685, %v1715, -inf
        %v1788 = vmax.f32 %v1786, %v1787
        %v1789 = vsel %vm685, %v1716, -inf
        %v1790 = vmax.f32 %v1788, %v1789
        %v1791 = vsel %vm685, %v1717, -inf
        %v1792 = vmax.f32 %v1790, %v1791
        %v1793 = vsel %vm685, %v1718, -inf
        %v1794 = vmax.f32 %v1792, %v1793
        %v1795 = vsel %vm685, %v1719, -inf
        %v1796 = vmax.f32 %v1794, %v1795
        %v1797 = vsel %vm685, %v1720, -inf
        %v1798 = vmax.f32 %v1796, %v1797
        %v1799 = vsel %vm685, %v1721, -inf
        %v1800 = vsel %vm685, %v1722, -inf
        %v1801 = vmax.f32 %v1799, %v1800
        %v1802 = vsel %vm685, %v1723, -inf
        %v1803 = vmax.f32 %v1801, %v1802
        %v1804 = vsel %vm685, %v1724, -inf
        %v1805 = vmax.f32 %v1803, %v1804
        %v1806 = vsel %vm685, %v1725, -inf
        %v1807 = vmax.f32 %v1805, %v1806
        %v1808 = vsel %vm685, %v1726, -inf
        %v1809 = vmax.f32 %v1807, %v1808
        %v1810 = vsel %vm685, %v1727, -inf
        %v1811 = vmax.f32 %v1809, %v1810
        %v1812 = vsel %vm685, %v1728, -inf
        %v1813 = vmax.f32 %v1811, %v1812
        %v1814 = vsel %vm685, %v1729, -inf
        %v1815 = vsel %vm685, %v1730, -inf
        %v1816 = vmax.f32 %v1814, %v1815
        %v1817 = vsel %vm685, %v1731, -inf
        %v1818 = vmax.f32 %v1816, %v1817
        %v1819 = vsel %vm685, %v1732, -inf
        %v1820 = vmax.f32 %v1818, %v1819
        %v1821 = vsel %vm685, %v1733, -inf
        %v1822 = vmax.f32 %v1820, %v1821
        %v1823 = vsel %vm685, %v1734, -inf
        %v1824 = vmax.f32 %v1822, %v1823
        %v1825 = vsel %vm685, %v1735, -inf
        %v1826 = vmax.f32 %v1824, %v1825
        %v1827 = vsel %vm685, %v1736, -inf
        %v1828 = vmax.f32 %v1826, %v1827
        %v1829 = vsel %vm685, %v1737, -inf
        %v1830 = vsel %vm685, %v1738, -inf
        %v1831 = vmax.f32 %v1829, %v1830
        %v1832 = vsel %vm685, %v1739, -inf
        %v1833 = vmax.f32 %v1831, %v1832
        %v1834 = vsel %vm685, %v1740, -inf
        %v1835 = vmax.f32 %v1833, %v1834
        %v1836 = vsel %vm685, %v1741, -inf
        %v1837 = vmax.f32 %v1835, %v1836
        %v1838 = vsel %vm685, %v1742, -inf
        %v1839 = vmax.f32 %v1837, %v1838
        %v1840 = vsel %vm685, %v1743, -inf
        %v1841 = vmax.f32 %v1839, %v1840
        %v1842 = vsel %vm685, %v1744, -inf
        %v1843 = vmax.f32 %v1841, %v1842
        %v1844 = vsel %vm685, %v1745, -inf
        %v1845 = vsel %vm685, %v1746, -inf
        %v1846 = vmax.f32 %v1844, %v1845
        %v1847 = vsel %vm685, %v1747, -inf
        %v1848 = vmax.f32 %v1846, %v1847
        %v1849 = vsel %vm685, %v1748, -inf
        %v1850 = vmax.f32 %v1848, %v1849
        %v1851 = vsel %vm685, %v1749, -inf
        %v1852 = vmax.f32 %v1850, %v1851
        %v1853 = vsel %vm685, %v1750, -inf
        %v1854 = vmax.f32 %v1852, %v1853
        %v1855 = vsel %vm685, %v1751, -inf
        %v1856 = vmax.f32 %v1854, %v1855
        %v1857 = vsel %vm685, %v1752, -inf
        %v1858 = vmax.f32 %v1856, %v1857
        %v1859 = vsel %vm685, %v1753, -inf
        %v1860 = vsel %vm685, %v1754, -inf
        %v1861 = vmax.f32 %v1859, %v1860
        %v1862 = vsel %vm685, %v1755, -inf
        %v1863 = vmax.f32 %v1861, %v1862
        %v1864 = vsel %vm685, %v1756, -inf
        %v1865 = vmax.f32 %v1863, %v1864
        %v1866 = vsel %vm685, %v1757, -inf
        %v1867 = vmax.f32 %v1865, %v1866
        %v1868 = vsel %vm685, %v1758, -inf
        %v1869 = vmax.f32 %v1867, %v1868
        %v1870 = vsel %vm685, %v1759, -inf
        %v1871 = vmax.f32 %v1869, %v1870
        %v1872 = vsel %vm685, %v1760, -inf
        %v1873 = vmax.f32 %v1871, %v1872
        %v1874 = vsel %vm685, %v1761, -inf
        %v1875 = vsel %vm685, %v1762, -inf
        %v1876 = vmax.f32 %v1874, %v1875
        %v1877 = vsel %vm685, %v1763, -inf
        %v1878 = vmax.f32 %v1876, %v1877
        %v1879 = vsel %vm685, %v1764, -inf
        %v1880 = vmax.f32 %v1878, %v1879
        %v1881 = vsel %vm685, %v1765, -inf
        %v1882 = vmax.f32 %v1880, %v1881
        %v1883 = vsel %vm685, %v1766, -inf
        %v1884 = vmax.f32 %v1882, %v1883
        %v1885 = vsel %vm685, %v1767, -inf
        %v1886 = vmax.f32 %v1884, %v1885
        %v1887 = vsel %vm685, %v1768, -inf
        %v1888 = vmax.f32 %v1886, %v1887
        %v1889 = vperm.slane %v1783, 0
        %v1890 = vperm.slane %v1798, 0
        %v1891 = vperm.slane %v1813, 0
        %v1892 = vperm.slane %v1828, 0
        %v1893 = vperm.slane %v1843, 0
        %v1894 = vperm.slane %v1858, 0
        %v1895 = vperm.slane %v1873, 0
        %v1896 = vperm.slane %v1888, 0
        %vm1897 = vcmp.eq.f32.partialorder %v1705, %v1889
        %vm1898 = vcmp.eq.f32.partialorder %v1706, %v1889
        %vm1899 = vcmp.eq.f32.partialorder %v1707, %v1889
        %vm1900 = vcmp.eq.f32.partialorder %v1708, %v1889
        %vm1901 = vcmp.eq.f32.partialorder %v1709, %v1889
        %vm1902 = vcmp.eq.f32.partialorder %v1710, %v1889
        %vm1903 = vcmp.eq.f32.partialorder %v1711, %v1889
        %vm1904 = vcmp.eq.f32.partialorder %v1712, %v1889
        %vm1905 = vcmp.eq.f32.partialorder %v1713, %v1890
        %vm1906 = vcmp.eq.f32.partialorder %v1714, %v1890
        %vm1907 = vcmp.eq.f32.partialorder %v1715, %v1890
        %vm1908 = vcmp.eq.f32.partialorder %v1716, %v1890
        %vm1909 = vcmp.eq.f32.partialorder %v1717, %v1890
        %vm1910 = vcmp.eq.f32.partialorder %v1718, %v1890
        %vm1911 = vcmp.eq.f32.partialorder %v1719, %v1890
        %vm1912 = vcmp.eq.f32.partialorder %v1720, %v1890
        %vm1913 = vcmp.eq.f32.partialorder %v1721, %v1891
        %vm1914 = vcmp.eq.f32.partialorder %v1722, %v1891
        %vm1915 = vcmp.eq.f32.partialorder %v1723, %v1891
        %vm1916 = vcmp.eq.f32.partialorder %v1724, %v1891
        %vm1917 = vcmp.eq.f32.partialorder %v1725, %v1891
        %vm1918 = vcmp.eq.f32.partialorder %v1726, %v1891
        %vm1919 = vcmp.eq.f32.partialorder %v1727, %v1891
        %vm1920 = vcmp.eq.f32.partialorder %v1728, %v1891
        %vm1921 = vcmp.eq.f32.partialorder %v1729, %v1892
        %vm1922 = vcmp.eq.f32.partialorder %v1730, %v1892
        %vm1923 = vcmp.eq.f32.partialorder %v1731, %v1892
        %vm1924 = vcmp.eq.f32.partialorder %v1732, %v1892
        %vm1925 = vcmp.eq.f32.partialorder %v1733, %v1892
        %vm1926 = vcmp.eq.f32.partialorder %v1734, %v1892
        %vm1927 = vcmp.eq.f32.partialorder %v1735, %v1892
        %vm1928 = vcmp.eq.f32.partialorder %v1736, %v1892
        %vm1929 = vcmp.eq.f32.partialorder %v1737, %v1893
        %vm1930 = vcmp.eq.f32.partialorder %v1738, %v1893
        %vm1931 = vcmp.eq.f32.partialorder %v1739, %v1893
        %vm1932 = vcmp.eq.f32.partialorder %v1740, %v1893
        %vm1933 = vcmp.eq.f32.partialorder %v1741, %v1893
        %vm1934 = vcmp.eq.f32.partialorder %v1742, %v1893
        %vm1935 = vcmp.eq.f32.partialorder %v1743, %v1893
        %vm1936 = vcmp.eq.f32.partialorder %v1744, %v1893
        %vm1937 = vcmp.eq.f32.partialorder %v1745, %v1894
        %vm1938 = vcmp.eq.f32.partialorder %v1746, %v1894
        %vm1939 = vcmp.eq.f32.partialorder %v1747, %v1894
        %vm1940 = vcmp.eq.f32.partialorder %v1748, %v1894
        %vm1941 = vcmp.eq.f32.partialorder %v1749, %v1894
        %vm1942 = vcmp.eq.f32.partialorder %v1750, %v1894
        %vm1943 = vcmp.eq.f32.partialorder %v1751, %v1894
        %vm1944 = vcmp.eq.f32.partialorder %v1752, %v1894
        %vm1945 = vcmp.eq.f32.partialorder %v1753, %v1895
        %vm1946 = vcmp.eq.f32.partialorder %v1754, %v1895
        %vm1947 = vcmp.eq.f32.partialorder %v1755, %v1895
        %vm1948 = vcmp.eq.f32.partialorder %v1756, %v1895
        %vm1949 = vcmp.eq.f32.partialorder %v1757, %v1895
        %vm1950 = vcmp.eq.f32.partialorder %v1758, %v1895
        %vm1951 = vcmp.eq.f32.partialorder %v1759, %v1895
        %vm1952 = vcmp.eq.f32.partialorder %v1760, %v1895
        %vm1953 = vcmp.eq.f32.partialorder %v1761, %v1896
        %vm1954 = vcmp.eq.f32.partialorder %v1762, %v1896
        %vm1955 = vcmp.eq.f32.partialorder %v1763, %v1896
        %vm1956 = vcmp.eq.f32.partialorder %v1764, %v1896
        %vm1957 = vcmp.eq.f32.partialorder %v1765, %v1896
        %vm1958 = vcmp.eq.f32.partialorder %v1766, %v1896
        %vm1959 = vcmp.eq.f32.partialorder %v1767, %v1896
        %vm1960 = vcmp.eq.f32.partialorder %v1768, %v1896
        %v1961 = vsel %vm1897, %v306, 8
        %v1962 = vsel %vm1898, %v878, 8
        %v1963 = vsel %vm1899, %v879, 8
        %v1964 = vsel %vm1900, %v880, 8
        %v1965 = vsel %vm1901, %v881, 8
        %v1966 = vsel %vm1902, %v882, 8
        %v1967 = vsel %vm1903, %v883, 8
        %v1968 = vsel %vm1904, %v884, 8
        %v1969 = vsel %vm1905, %v306, 8
        %v1970 = vsel %vm1906, %v878, 8
        %v1971 = vsel %vm1907, %v879, 8
        %v1972 = vsel %vm1908, %v880, 8
        %v1973 = vsel %vm1909, %v881, 8
        %v1974 = vsel %vm1910, %v882, 8
        %v1975 = vsel %vm1911, %v883, 8
        %v1976 = vsel %vm1912, %v884, 8
        %v1977 = vsel %vm1913, %v306, 8
        %v1978 = vsel %vm1914, %v878, 8
        %v1979 = vsel %vm1915, %v879, 8
        %v1980 = vsel %vm1916, %v880, 8
        %v1981 = vsel %vm1917, %v881, 8
        %v1982 = vsel %vm1918, %v882, 8
        %v1983 = vsel %vm1919, %v883, 8
        %v1984 = vsel %vm1920, %v884, 8
        %v1985 = vsel %vm1921, %v306, 8
        %v1986 = vsel %vm1922, %v878, 8
        %v1987 = vsel %vm1923, %v879, 8
        %v1988 = vsel %vm1924, %v880, 8
        %v1989 = vsel %vm1925, %v881, 8
        %v1990 = vsel %vm1926, %v882, 8
        %v1991 = vsel %vm1927, %v883, 8
        %v1992 = vsel %vm1928, %v884, 8
        %v1993 = vsel %vm1929, %v306, 8
        %v1994 = vsel %vm1930, %v878, 8
        %v1995 = vsel %vm1931, %v879, 8
        %v1996 = vsel %vm1932, %v880, 8
        %v1997 = vsel %vm1933, %v881, 8
        %v1998 = vsel %vm1934, %v882, 8
        %v1999 = vsel %vm1935, %v883, 8
        %v2000 = vsel %vm1936, %v884, 8
        %v2001 = vsel %vm1937, %v306, 8
        %v2002 = vsel %vm1938, %v878, 8
        %v2003 = vsel %vm1939, %v879, 8
        %v2004 = vsel %vm1940, %v880, 8
        %v2005 = vsel %vm1941, %v881, 8
        %v2006 = vsel %vm1942, %v882, 8
        %v2007 = vsel %vm1943, %v883, 8
        %v2008 = vsel %vm1944, %v884, 8
        %v2009 = vsel %vm1945, %v306, 8
        %v2010 = vsel %vm1946, %v878, 8
        %v2011 = vsel %vm1947, %v879, 8
        %v2012 = vsel %vm1948, %v880, 8
        %v2013 = vsel %vm1949, %v881, 8
        %v2014 = vsel %vm1950, %v882, 8
        %v2015 = vsel %vm1951, %v883, 8
        %v2016 = vsel %vm1952, %v884, 8
        %v2017 = vsel %vm1953, %v306, 8
        %v2018 = vsel %vm1954, %v878, 8
        %v2019 = vsel %vm1955, %v879, 8
        %v2020 = vsel %vm1956, %v880, 8
        %v2021 = vsel %vm1957, %v881, 8
        %v2022 = vsel %vm1958, %v882, 8
        %v2023 = vsel %vm1959, %v883, 8
        %v2024 = vsel %vm1960, %v884, 8
        %v2025 = vsel %vm685, %v1961, 2147483647
        %v2026 = vsel %vm685, %v1962, 2147483647
        %vm2027 = vcmp.lt.s32.totalorder %v2025, %v2026
        %v2028 = vsel %vm2027, %v2025, %v2026
        %v2029 = vsel %vm685, %v1963, 2147483647
        %vm2030 = vcmp.lt.s32.totalorder %v2028, %v2029
        %v2031 = vsel %vm2030, %v2028, %v2029
        %v2032 = vsel %vm685, %v1964, 2147483647
        %vm2033 = vcmp.lt.s32.totalorder %v2031, %v2032
        %v2034 = vsel %vm2033, %v2031, %v2032
        %v2035 = vsel %vm685, %v1965, 2147483647
        %vm2036 = vcmp.lt.s32.totalorder %v2034, %v2035
        %v2037 = vsel %vm2036, %v2034, %v2035
        %v2038 = vsel %vm685, %v1966, 2147483647
        %vm2039 = vcmp.lt.s32.totalorder %v2037, %v2038
        %v2040 = vsel %vm2039, %v2037, %v2038
        %v2041 = vsel %vm685, %v1967, 2147483647
        %vm2042 = vcmp.lt.s32.totalorder %v2040, %v2041
        %v2043 = vsel %vm2042, %v2040, %v2041
        %v2044 = vsel %vm685, %v1968, 2147483647
        %vm2045 = vcmp.lt.s32.totalorder %v2043, %v2044
        %v2046 = vsel %vm2045, %v2043, %v2044
        %v2047 = vsel %vm685, %v1969, 2147483647
        %v2048 = vsel %vm685, %v1970, 2147483647
        %vm2049 = vcmp.lt.s32.totalorder %v2047, %v2048
        %v2050 = vsel %vm2049, %v2047, %v2048
        %v2051 = vsel %vm685, %v1971, 2147483647
        %vm2052 = vcmp.lt.s32.totalorder %v2050, %v2051
        %v2053 = vsel %vm2052, %v2050, %v2051
        %v2054 = vsel %vm685, %v1972, 2147483647
        %vm2055 = vcmp.lt.s32.totalorder %v2053, %v2054
        %v2056 = vsel %vm2055, %v2053, %v2054
        %v2057 = vsel %vm685, %v1973, 2147483647
        %vm2058 = vcmp.lt.s32.totalorder %v2056, %v2057
        %v2059 = vsel %vm2058, %v2056, %v2057
        %v2060 = vsel %vm685, %v1974, 2147483647
        %vm2061 = vcmp.lt.s32.totalorder %v2059, %v2060
        %v2062 = vsel %vm2061, %v2059, %v2060
        %v2063 = vsel %vm685, %v1975, 2147483647
        %vm2064 = vcmp.lt.s32.totalorder %v2062, %v2063
        %v2065 = vsel %vm2064, %v2062, %v2063
        %v2066 = vsel %vm685, %v1976, 2147483647
        %vm2067 = vcmp.lt.s32.totalorder %v2065, %v2066
        %v2068 = vsel %vm2067, %v2065, %v2066
        %v2069 = vsel %vm685, %v1977, 2147483647
        %v2070 = vsel %vm685, %v1978, 2147483647
        %vm2071 = vcmp.lt.s32.totalorder %v2069, %v2070
        %v2072 = vsel %vm2071, %v2069, %v2070
        %v2073 = vsel %vm685, %v1979, 2147483647
        %vm2074 = vcmp.lt.s32.totalorder %v2072, %v2073
        %v2075 = vsel %vm2074, %v2072, %v2073
        %v2076 = vsel %vm685, %v1980, 2147483647
        %vm2077 = vcmp.lt.s32.totalorder %v2075, %v2076
        %v2078 = vsel %vm2077, %v2075, %v2076
        %v2079 = vsel %vm685, %v1981, 2147483647
        %vm2080 = vcmp.lt.s32.totalorder %v2078, %v2079
        %v2081 = vsel %vm2080, %v2078, %v2079
        %v2082 = vsel %vm685, %v1982, 2147483647
        %vm2083 = vcmp.lt.s32.totalorder %v2081, %v2082
        %v2084 = vsel %vm2083, %v2081, %v2082
        %v2085 = vsel %vm685, %v1983, 2147483647
        %vm2086 = vcmp.lt.s32.totalorder %v2084, %v2085
        %v2087 = vsel %vm2086, %v2084, %v2085
        %v2088 = vsel %vm685, %v1984, 2147483647
        %vm2089 = vcmp.lt.s32.totalorder %v2087, %v2088
        %v2090 = vsel %vm2089, %v2087, %v2088
        %v2091 = vsel %vm685, %v1985, 2147483647
        %v2092 = vsel %vm685, %v1986, 2147483647
        %vm2093 = vcmp.lt.s32.totalorder %v2091, %v2092
        %v2094 = vsel %vm2093, %v2091, %v2092
        %v2095 = vsel %vm685, %v1987, 2147483647
        %vm2096 = vcmp.lt.s32.totalorder %v2094, %v2095
        %v2097 = vsel %vm2096, %v2094, %v2095
        %v2098 = vsel %vm685, %v1988, 2147483647
        %vm2099 = vcmp.lt.s32.totalorder %v2097, %v2098
        %v2100 = vsel %vm2099, %v2097, %v2098
        %v2101 = vsel %vm685, %v1989, 2147483647
        %vm2102 = vcmp.lt.s32.totalorder %v2100, %v2101
        %v2103 = vsel %vm2102, %v2100, %v2101
        %v2104 = vsel %vm685, %v1990, 2147483647
        %vm2105 = vcmp.lt.s32.totalorder %v2103, %v2104
        %v2106 = vsel %vm2105, %v2103, %v2104
        %v2107 = vsel %vm685, %v1991, 2147483647
        %vm2108 = vcmp.lt.s32.totalorder %v2106, %v2107
        %v2109 = vsel %vm2108, %v2106, %v2107
        %v2110 = vsel %vm685, %v1992, 2147483647
        %vm2111 = vcmp.lt.s32.totalorder %v2109, %v2110
        %v2112 = vsel %vm2111, %v2109, %v2110
        %v2113 = vsel %vm685, %v1993, 2147483647
        %v2114 = vsel %vm685, %v1994, 2147483647
        %vm2115 = vcmp.lt.s32.totalorder %v2113, %v2114
        %v2116 = vsel %vm2115, %v2113, %v2114
        %v2117 = vsel %vm685, %v1995, 2147483647
        %vm2118 = vcmp.lt.s32.totalorder %v2116, %v2117
        %v2119 = vsel %vm2118, %v2116, %v2117
        %v2120 = vsel %vm685, %v1996, 2147483647
        %vm2121 = vcmp.lt.s32.totalorder %v2119, %v2120
        %v2122 = vsel %vm2121, %v2119, %v2120
        %v2123 = vsel %vm685, %v1997, 2147483647
        %vm2124 = vcmp.lt.s32.totalorder %v2122, %v2123
        %v2125 = vsel %vm2124, %v2122, %v2123
        %v2126 = vsel %vm685, %v1998, 2147483647
        %vm2127 = vcmp.lt.s32.totalorder %v2125, %v2126
        %v2128 = vsel %vm2127, %v2125, %v2126
        %v2129 = vsel %vm685, %v1999, 2147483647
        %vm2130 = vcmp.lt.s32.totalorder %v2128, %v2129
        %v2131 = vsel %vm2130, %v2128, %v2129
        %v2132 = vsel %vm685, %v2000, 2147483647
        %vm2133 = vcmp.lt.s32.totalorder %v2131, %v2132
        %v2134 = vsel %vm2133, %v2131, %v2132
        %v2135 = vsel %vm685, %v2001, 2147483647
        %v2136 = vsel %vm685, %v2002, 2147483647
        %vm2137 = vcmp.lt.s32.totalorder %v2135, %v2136
        %v2138 = vsel %vm2137, %v2135, %v2136
        %v2139 = vsel %vm685, %v2003, 2147483647
        %vm2140 = vcmp.lt.s32.totalorder %v2138, %v2139
        %v2141 = vsel %vm2140, %v2138, %v2139
        %v2142 = vsel %vm685, %v2004, 2147483647
        %vm2143 = vcmp.lt.s32.totalorder %v2141, %v2142
        %v2144 = vsel %vm2143, %v2141, %v2142
        %v2145 = vsel %vm685, %v2005, 2147483647
        %vm2146 = vcmp.lt.s32.totalorder %v2144, %v2145
        %v2147 = vsel %vm2146, %v2144, %v2145
        %v2148 = vsel %vm685, %v2006, 2147483647
        %vm2149 = vcmp.lt.s32.totalorder %v2147, %v2148
        %v2150 = vsel %vm2149, %v2147, %v2148
        %v2151 = vsel %vm685, %v2007, 2147483647
        %vm2152 = vcmp.lt.s32.totalorder %v2150, %v2151
        %v2153 = vsel %vm2152, %v2150, %v2151
        %v2154 = vsel %vm685, %v2008, 2147483647
        %vm2155 = vcmp.lt.s32.totalorder %v2153, %v2154
        %v2156 = vsel %vm2155, %v2153, %v2154
        %v2157 = vsel %vm685, %v2009, 2147483647
        %v2158 = vsel %vm685, %v2010, 2147483647
        %vm2159 = vcmp.lt.s32.totalorder %v2157, %v2158
        %v2160 = vsel %vm2159, %v2157, %v2158
        %v2161 = vsel %vm685, %v2011, 2147483647
        %vm2162 = vcmp.lt.s32.totalorder %v2160, %v2161
        %v2163 = vsel %vm2162, %v2160, %v2161
        %v2164 = vsel %vm685, %v2012, 2147483647
        %vm2165 = vcmp.lt.s32.totalorder %v2163, %v2164
        %v2166 = vsel %vm2165, %v2163, %v2164
        %v2167 = vsel %vm685, %v2013, 2147483647
        %vm2168 = vcmp.lt.s32.totalorder %v2166, %v2167
        %v2169 = vsel %vm2168, %v2166, %v2167
        %v2170 = vsel %vm685, %v2014, 2147483647
        %vm2171 = vcmp.lt.s32.totalorder %v2169, %v2170
        %v2172 = vsel %vm2171, %v2169, %v2170
        %v2173 = vsel %vm685, %v2015, 2147483647
        %vm2174 = vcmp.lt.s32.totalorder %v2172, %v2173
        %v2175 = vsel %vm2174, %v2172, %v2173
        %v2176 = vsel %vm685, %v2016, 2147483647
        %vm2177 = vcmp.lt.s32.totalorder %v2175, %v2176
        %v2178 = vsel %vm2177, %v2175, %v2176
        %v2179 = vsel %vm685, %v2017, 2147483647
        %v2180 = vsel %vm685, %v2018, 2147483647
        %vm2181 = vcmp.lt.s32.totalorder %v2179, %v2180
        %v2182 = vsel %vm2181, %v2179, %v2180
        %v2183 = vsel %vm685, %v2019, 2147483647
        %vm2184 = vcmp.lt.s32.totalorder %v2182, %v2183
        %v2185 = vsel %vm2184, %v2182, %v2183
        %v2186 = vsel %vm685, %v2020, 2147483647
        %vm2187 = vcmp.lt.s32.totalorder %v2185, %v2186
        %v2188 = vsel %vm2187, %v2185, %v2186
        %v2189 = vsel %vm685, %v2021, 2147483647
        %vm2190 = vcmp.lt.s32.totalorder %v2188, %v2189
        %v2191 = vsel %vm2190, %v2188, %v2189
        %v2192 = vsel %vm685, %v2022, 2147483647
        %vm2193 = vcmp.lt.s32.totalorder %v2191, %v2192
        %v2194 = vsel %vm2193, %v2191, %v2192
        %v2195 = vsel %vm685, %v2023, 2147483647
        %vm2196 = vcmp.lt.s32.totalorder %v2194, %v2195
        %v2197 = vsel %vm2196, %v2194, %v2195
        %v2198 = vsel %vm685, %v2024, 2147483647
        %vm2199 = vcmp.lt.s32.totalorder %v2197, %v2198
        %v2200 = vsel %vm2199, %v2197, %v2198
        %v2201 = vrot.slane %v2068, 7
        %v2202 = vsel %vm453, %v2201, %v2046
        %v2203 = vrot.slane %v2090, 6
        %v2204 = vsel %vm455, %v2203, %v2202
        %v2205 = vrot.slane %v2112, 5
        %v2206 = vsel %vm457, %v2205, %v2204
        %v2207 = vrot.slane %v2134, 4
        %v2208 = vsel %vm459, %v2207, %v2206
        %v2209 = vrot.slane %v2156, 3
        %v2210 = vsel %vm461, %v2209, %v2208
        %v2211 = vrot.slane %v2178, 2
        %v2212 = vsel %vm463, %v2211, %v2210
        %v2213 = vrot.slane %v2200, 1
        %v2214 = vsel %vm465, %v2213, %v2212
        %s2215 = scalar_lea.vmem [#allocation2], 24
        %2216 = vst [vmem:[%s2215] sm:$0xff] %v2214
        %s2217 = scalar_lea.vmem %s218, 24 [#allocation3]
        %v2218 = vld [vmem:[%s2217] sm:$0xff]
        %v2220 = vrot.slane %v2218, 1
        %v2221 = vrot.slane %v2218, 2
        %v2222 = vrot.slane %v2218, 3
        %v2223 = vrot.slane %v2218, 4
        %v2224 = vrot.slane %v2218, 5
        %v2225 = vrot.slane %v2218, 6
        %v2226 = vrot.slane %v2218, 7
        %v2235 = vadd.f32 %v1783, %v2218
        %v2236 = vadd.f32 %v1798, %v2220
        %v2237 = vadd.f32 %v1813, %v2221
        %v2238 = vadd.f32 %v1828, %v2222
        %v2239 = vadd.f32 %v1843, %v2223
        %v2240 = vadd.f32 %v1858, %v2224
        %v2241 = vadd.f32 %v1873, %v2225
        %v2242 = vadd.f32 %v1888, %v2226
        %v2243 = vadd.f32 %v2235, %v255
        %v2244 = vadd.f32 %v2236, %v501
        %v2245 = vadd.f32 %v2237, %v502
        %v2246 = vadd.f32 %v2238, %v503
        %v2247 = vadd.f32 %v2239, %v504
        %v2248 = vadd.f32 %v2240, %v505
        %v2249 = vadd.f32 %v2241, %v506
        %v2250 = vadd.f32 %v2242, %v507
        %v2251 = vadd.f32 %v2235, %v262
        %v2252 = vadd.f32 %v2236, %v508
        %v2253 = vadd.f32 %v2237, %v509
        %v2254 = vadd.f32 %v2238, %v510
        %v2255 = vadd.f32 %v2239, %v511
        %v2256 = vadd.f32 %v2240, %v512
        %v2257 = vadd.f32 %v2241, %v513
        %v2258 = vadd.f32 %v2242, %v514
        %v2259 = vadd.f32 %v2235, %v269
        %v2260 = vadd.f32 %v2236, %v515
        %v2261 = vadd.f32 %v2237, %v516
        %v2262 = vadd.f32 %v2238, %v517
        %v2263 = vadd.f32 %v2239, %v518
        %v2264 = vadd.f32 %v2240, %v519
        %v2265 = vadd.f32 %v2241, %v520
        %v2266 = vadd.f32 %v2242, %v521
        %v2267 = vadd.f32 %v2235, %v276
        %v2268 = vadd.f32 %v2236, %v522
        %v2269 = vadd.f32 %v2237, %v523
        %v2270 = vadd.f32 %v2238, %v524
        %v2271 = vadd.f32 %v2239, %v525
        %v2272 = vadd.f32 %v2240, %v526
        %v2273 = vadd.f32 %v2241, %v527
        %v2274 = vadd.f32 %v2242, %v528
        %v2275 = vadd.f32 %v2235, %v283
        %v2276 = vadd.f32 %v2236, %v529
        %v2277 = vadd.f32 %v2237, %v530
        %v2278 = vadd.f32 %v2238, %v531
        %v2279 = vadd.f32 %v2239, %v532
        %v2280 = vadd.f32 %v2240, %v533
        %v2281 = vadd.f32 %v2241, %v534
        %v2282 = vadd.f32 %v2242, %v535
        %v2283 = vadd.f32 %v2235, %v290
        %v2284 = vadd.f32 %v2236, %v536
        %v2285 = vadd.f32 %v2237, %v537
        %v2286 = vadd.f32 %v2238, %v538
        %v2287 = vadd.f32 %v2239, %v539
        %v2288 = vadd.f32 %v2240, %v540
        %v2289 = vadd.f32 %v2241, %v541
        %v2290 = vadd.f32 %v2242, %v542
        %v2291 = vadd.f32 %v2235, %v297
        %v2292 = vadd.f32 %v2236, %v543
        %v2293 = vadd.f32 %v2237, %v544
        %v2294 = vadd.f32 %v2238, %v545
        %v2295 = vadd.f32 %v2239, %v546
        %v2296 = vadd.f32 %v2240, %v547
        %v2297 = vadd.f32 %v2241, %v548
        %v2298 = vadd.f32 %v2242, %v549
        %v2299 = vadd.f32 %v2235, %v304
        %v2300 = vadd.f32 %v2236, %v550
        %v2301 = vadd.f32 %v2237, %v551
        %v2302 = vadd.f32 %v2238, %v552
        %v2303 = vadd.f32 %v2239, %v553
        %v2304 = vadd.f32 %v2240, %v554
        %v2305 = vadd.f32 %v2241, %v555
        %v2306 = vadd.f32 %v2242, %v556
        %v2307 = vsel %vm685, %v2243, -inf
        %v2308 = vsel %vm685, %v2244, -inf
        %v2309 = vmax.f32 %v2307, %v2308
        %v2310 = vsel %vm685, %v2245, -inf
        %v2311 = vmax.f32 %v2309, %v2310
        %v2312 = vsel %vm685, %v2246, -inf
        %v2313 = vmax.f32 %v2311, %v2312
        %v2314 = vsel %vm685, %v2247, -inf
        %v2315 = vmax.f32 %v2313, %v2314
        %v2316 = vsel %vm685, %v2248, -inf
        %v2317 = vmax.f32 %v2315, %v2316
        %v2318 = vsel %vm685, %v2249, -inf
        %v2319 = vmax.f32 %v2317, %v2318
        %v2320 = vsel %vm685, %v2250, -inf
        %v2321 = vmax.f32 %v2319, %v2320
        %v2322 = vsel %vm685, %v2251, -inf
        %v2323 = vsel %vm685, %v2252, -inf
        %v2324 = vmax.f32 %v2322, %v2323
        %v2325 = vsel %vm685, %v2253, -inf
        %v2326 = vmax.f32 %v2324, %v2325
        %v2327 = vsel %vm685, %v2254, -inf
        %v2328 = vmax.f32 %v2326, %v2327
        %v2329 = vsel %vm685, %v2255, -inf
        %v2330 = vmax.f32 %v2328, %v2329
        %v2331 = vsel %vm685, %v2256, -inf
        %v2332 = vmax.f32 %v2330, %v2331
        %v2333 = vsel %vm685, %v2257, -inf
        %v2334 = vmax.f32 %v2332, %v2333
        %v2335 = vsel %vm685, %v2258, -inf
        %v2336 = vmax.f32 %v2334, %v2335
        %v2337 = vsel %vm685, %v2259, -inf
        %v2338 = vsel %vm685, %v2260, -inf
        %v2339 = vmax.f32 %v2337, %v2338
        %v2340 = vsel %vm685, %v2261, -inf
        %v2341 = vmax.f32 %v2339, %v2340
        %v2342 = vsel %vm685, %v2262, -inf
        %v2343 = vmax.f32 %v2341, %v2342
        %v2344 = vsel %vm685, %v2263, -inf
        %v2345 = vmax.f32 %v2343, %v2344
        %v2346 = vsel %vm685, %v2264, -inf
        %v2347 = vmax.f32 %v2345, %v2346
        %v2348 = vsel %vm685, %v2265, -inf
        %v2349 = vmax.f32 %v2347, %v2348
        %v2350 = vsel %vm685, %v2266, -inf
        %v2351 = vmax.f32 %v2349, %v2350
        %v2352 = vsel %vm685, %v2267, -inf
        %v2353 = vsel %vm685, %v2268, -inf
        %v2354 = vmax.f32 %v2352, %v2353
        %v2355 = vsel %vm685, %v2269, -inf
        %v2356 = vmax.f32 %v2354, %v2355
        %v2357 = vsel %vm685, %v2270, -inf
        %v2358 = vmax.f32 %v2356, %v2357
        %v2359 = vsel %vm685, %v2271, -inf
        %v2360 = vmax.f32 %v2358, %v2359
        %v2361 = vsel %vm685, %v2272, -inf
        %v2362 = vmax.f32 %v2360, %v2361
        %v2363 = vsel %vm685, %v2273, -inf
        %v2364 = vmax.f32 %v2362, %v2363
        %v2365 = vsel %vm685, %v2274, -inf
        %v2366 = vmax.f32 %v2364, %v2365
        %v2367 = vsel %vm685, %v2275, -inf
        %v2368 = vsel %vm685, %v2276, -inf
        %v2369 = vmax.f32 %v2367, %v2368
        %v2370 = vsel %vm685, %v2277, -inf
        %v2371 = vmax.f32 %v2369, %v2370
        %v2372 = vsel %vm685, %v2278, -inf
        %v2373 = vmax.f32 %v2371, %v2372
        %v2374 = vsel %vm685, %v2279, -inf
        %v2375 = vmax.f32 %v2373, %v2374
        %v2376 = vsel %vm685, %v2280, -inf
        %v2377 = vmax.f32 %v2375, %v2376
        %v2378 = vsel %vm685, %v2281, -inf
        %v2379 = vmax.f32 %v2377, %v2378
        %v2380 = vsel %vm685, %v2282, -inf
        %v2381 = vmax.f32 %v2379, %v2380
        %v2382 = vsel %vm685, %v2283, -inf
        %v2383 = vsel %vm685, %v2284, -inf
        %v2384 = vmax.f32 %v2382, %v2383
        %v2385 = vsel %vm685, %v2285, -inf
        %v2386 = vmax.f32 %v2384, %v2385
        %v2387 = vsel %vm685, %v2286, -inf
        %v2388 = vmax.f32 %v2386, %v2387
        %v2389 = vsel %vm685, %v2287, -inf
        %v2390 = vmax.f32 %v2388, %v2389
        %v2391 = vsel %vm685, %v2288, -inf
        %v2392 = vmax.f32 %v2390, %v2391
        %v2393 = vsel %vm685, %v2289, -inf
        %v2394 = vmax.f32 %v2392, %v2393
        %v2395 = vsel %vm685, %v2290, -inf
        %v2396 = vmax.f32 %v2394, %v2395
        %v2397 = vsel %vm685, %v2291, -inf
        %v2398 = vsel %vm685, %v2292, -inf
        %v2399 = vmax.f32 %v2397, %v2398
        %v2400 = vsel %vm685, %v2293, -inf
        %v2401 = vmax.f32 %v2399, %v2400
        %v2402 = vsel %vm685, %v2294, -inf
        %v2403 = vmax.f32 %v2401, %v2402
        %v2404 = vsel %vm685, %v2295, -inf
        %v2405 = vmax.f32 %v2403, %v2404
        %v2406 = vsel %vm685, %v2296, -inf
        %v2407 = vmax.f32 %v2405, %v2406
        %v2408 = vsel %vm685, %v2297, -inf
        %v2409 = vmax.f32 %v2407, %v2408
        %v2410 = vsel %vm685, %v2298, -inf
        %v2411 = vmax.f32 %v2409, %v2410
        %v2412 = vsel %vm685, %v2299, -inf
        %v2413 = vsel %vm685, %v2300, -inf
        %v2414 = vmax.f32 %v2412, %v2413
        %v2415 = vsel %vm685, %v2301, -inf
        %v2416 = vmax.f32 %v2414, %v2415
        %v2417 = vsel %vm685, %v2302, -inf
        %v2418 = vmax.f32 %v2416, %v2417
        %v2419 = vsel %vm685, %v2303, -inf
        %v2420 = vmax.f32 %v2418, %v2419
        %v2421 = vsel %vm685, %v2304, -inf
        %v2422 = vmax.f32 %v2420, %v2421
        %v2423 = vsel %vm685, %v2305, -inf
        %v2424 = vmax.f32 %v2422, %v2423
        %v2425 = vsel %vm685, %v2306, -inf
        %v2426 = vmax.f32 %v2424, %v2425
        %v2427 = vperm.slane %v2321, 0
        %v2428 = vperm.slane %v2336, 0
        %v2429 = vperm.slane %v2351, 0
        %v2430 = vperm.slane %v2366, 0
        %v2431 = vperm.slane %v2381, 0
        %v2432 = vperm.slane %v2396, 0
        %v2433 = vperm.slane %v2411, 0
        %v2434 = vperm.slane %v2426, 0
        %vm2435 = vcmp.eq.f32.partialorder %v2243, %v2427
        %vm2436 = vcmp.eq.f32.partialorder %v2244, %v2427
        %vm2437 = vcmp.eq.f32.partialorder %v2245, %v2427
        %vm2438 = vcmp.eq.f32.partialorder %v2246, %v2427
        %vm2439 = vcmp.eq.f32.partialorder %v2247, %v2427
        %vm2440 = vcmp.eq.f32.partialorder %v2248, %v2427
        %vm2441 = vcmp.eq.f32.partialorder %v2249, %v2427
        %vm2442 = vcmp.eq.f32.partialorder %v2250, %v2427
        %vm2443 = vcmp.eq.f32.partialorder %v2251, %v2428
        %vm2444 = vcmp.eq.f32.partialorder %v2252, %v2428
        %vm2445 = vcmp.eq.f32.partialorder %v2253, %v2428
        %vm2446 = vcmp.eq.f32.partialorder %v2254, %v2428
        %vm2447 = vcmp.eq.f32.partialorder %v2255, %v2428
        %vm2448 = vcmp.eq.f32.partialorder %v2256, %v2428
        %vm2449 = vcmp.eq.f32.partialorder %v2257, %v2428
        %vm2450 = vcmp.eq.f32.partialorder %v2258, %v2428
        %vm2451 = vcmp.eq.f32.partialorder %v2259, %v2429
        %vm2452 = vcmp.eq.f32.partialorder %v2260, %v2429
        %vm2453 = vcmp.eq.f32.partialorder %v2261, %v2429
        %vm2454 = vcmp.eq.f32.partialorder %v2262, %v2429
        %vm2455 = vcmp.eq.f32.partialorder %v2263, %v2429
        %vm2456 = vcmp.eq.f32.partialorder %v2264, %v2429
        %vm2457 = vcmp.eq.f32.partialorder %v2265, %v2429
        %vm2458 = vcmp.eq.f32.partialorder %v2266, %v2429
        %vm2459 = vcmp.eq.f32.partialorder %v2267, %v2430
        %vm2460 = vcmp.eq.f32.partialorder %v2268, %v2430
        %vm2461 = vcmp.eq.f32.partialorder %v2269, %v2430
        %vm2462 = vcmp.eq.f32.partialorder %v2270, %v2430
        %vm2463 = vcmp.eq.f32.partialorder %v2271, %v2430
        %vm2464 = vcmp.eq.f32.partialorder %v2272, %v2430
        %vm2465 = vcmp.eq.f32.partialorder %v2273, %v2430
        %vm2466 = vcmp.eq.f32.partialorder %v2274, %v2430
        %vm2467 = vcmp.eq.f32.partialorder %v2275, %v2431
        %vm2468 = vcmp.eq.f32.partialorder %v2276, %v2431
        %vm2469 = vcmp.eq.f32.partialorder %v2277, %v2431
        %vm2470 = vcmp.eq.f32.partialorder %v2278, %v2431
        %vm2471 = vcmp.eq.f32.partialorder %v2279, %v2431
        %vm2472 = vcmp.eq.f32.partialorder %v2280, %v2431
        %vm2473 = vcmp.eq.f32.partialorder %v2281, %v2431
        %vm2474 = vcmp.eq.f32.partialorder %v2282, %v2431
        %vm2475 = vcmp.eq.f32.partialorder %v2283, %v2432
        %vm2476 = vcmp.eq.f32.partialorder %v2284, %v2432
        %vm2477 = vcmp.eq.f32.partialorder %v2285, %v2432
        %vm2478 = vcmp.eq.f32.partialorder %v2286, %v2432
        %vm2479 = vcmp.eq.f32.partialorder %v2287, %v2432
        %vm2480 = vcmp.eq.f32.partialorder %v2288, %v2432
        %vm2481 = vcmp.eq.f32.partialorder %v2289, %v2432
        %vm2482 = vcmp.eq.f32.partialorder %v2290, %v2432
        %vm2483 = vcmp.eq.f32.partialorder %v2291, %v2433
        %vm2484 = vcmp.eq.f32.partialorder %v2292, %v2433
        %vm2485 = vcmp.eq.f32.partialorder %v2293, %v2433
        %vm2486 = vcmp.eq.f32.partialorder %v2294, %v2433
        %vm2487 = vcmp.eq.f32.partialorder %v2295, %v2433
        %vm2488 = vcmp.eq.f32.partialorder %v2296, %v2433
        %vm2489 = vcmp.eq.f32.partialorder %v2297, %v2433
        %vm2490 = vcmp.eq.f32.partialorder %v2298, %v2433
        %vm2491 = vcmp.eq.f32.partialorder %v2299, %v2434
        %vm2492 = vcmp.eq.f32.partialorder %v2300, %v2434
        %vm2493 = vcmp.eq.f32.partialorder %v2301, %v2434
        %vm2494 = vcmp.eq.f32.partialorder %v2302, %v2434
        %vm2495 = vcmp.eq.f32.partialorder %v2303, %v2434
        %vm2496 = vcmp.eq.f32.partialorder %v2304, %v2434
        %vm2497 = vcmp.eq.f32.partialorder %v2305, %v2434
        %vm2498 = vcmp.eq.f32.partialorder %v2306, %v2434
        %v2499 = vsel %vm2435, %v306, 8
        %v2500 = vsel %vm2436, %v878, 8
        %v2501 = vsel %vm2437, %v879, 8
        %v2502 = vsel %vm2438, %v880, 8
        %v2503 = vsel %vm2439, %v881, 8
        %v2504 = vsel %vm2440, %v882, 8
        %v2505 = vsel %vm2441, %v883, 8
        %v2506 = vsel %vm2442, %v884, 8
        %v2507 = vsel %vm2443, %v306, 8
        %v2508 = vsel %vm2444, %v878, 8
        %v2509 = vsel %vm2445, %v879, 8
        %v2510 = vsel %vm2446, %v880, 8
        %v2511 = vsel %vm2447, %v881, 8
        %v2512 = vsel %vm2448, %v882, 8
        %v2513 = vsel %vm2449, %v883, 8
        %v2514 = vsel %vm2450, %v884, 8
        %v2515 = vsel %vm2451, %v306, 8
        %v2516 = vsel %vm2452, %v878, 8
        %v2517 = vsel %vm2453, %v879, 8
        %v2518 = vsel %vm2454, %v880, 8
        %v2519 = vsel %vm2455, %v881, 8
        %v2520 = vsel %vm2456, %v882, 8
        %v2521 = vsel %vm2457, %v883, 8
        %v2522 = vsel %vm2458, %v884, 8
        %v2523 = vsel %vm2459, %v306, 8
        %v2524 = vsel %vm2460, %v878, 8
        %v2525 = vsel %vm2461, %v879, 8
        %v2526 = vsel %vm2462, %v880, 8
        %v2527 = vsel %vm2463, %v881, 8
        %v2528 = vsel %vm2464, %v882, 8
        %v2529 = vsel %vm2465, %v883, 8
        %v2530 = vsel %vm2466, %v884, 8
        %v2531 = vsel %vm2467, %v306, 8
        %v2532 = vsel %vm2468, %v878, 8
        %v2533 = vsel %vm2469, %v879, 8
        %v2534 = vsel %vm2470, %v880, 8
        %v2535 = vsel %vm2471, %v881, 8
        %v2536 = vsel %vm2472, %v882, 8
        %v2537 = vsel %vm2473, %v883, 8
        %v2538 = vsel %vm2474, %v884, 8
        %v2539 = vsel %vm2475, %v306, 8
        %v2540 = vsel %vm2476, %v878, 8
        %v2541 = vsel %vm2477, %v879, 8
        %v2542 = vsel %vm2478, %v880, 8
        %v2543 = vsel %vm2479, %v881, 8
        %v2544 = vsel %vm2480, %v882, 8
        %v2545 = vsel %vm2481, %v883, 8
        %v2546 = vsel %vm2482, %v884, 8
        %v2547 = vsel %vm2483, %v306, 8
        %v2548 = vsel %vm2484, %v878, 8
        %v2549 = vsel %vm2485, %v879, 8
        %v2550 = vsel %vm2486, %v880, 8
        %v2551 = vsel %vm2487, %v881, 8
        %v2552 = vsel %vm2488, %v882, 8
        %v2553 = vsel %vm2489, %v883, 8
        %v2554 = vsel %vm2490, %v884, 8
        %v2555 = vsel %vm2491, %v306, 8
        %v2556 = vsel %vm2492, %v878, 8
        %v2557 = vsel %vm2493, %v879, 8
        %v2558 = vsel %vm2494, %v880, 8
        %v2559 = vsel %vm2495, %v881, 8
        %v2560 = vsel %vm2496, %v882, 8
        %v2561 = vsel %vm2497, %v883, 8
        %v2562 = vsel %vm2498, %v884, 8
        %v2563 = vsel %vm685, %v2499, 2147483647
        %v2564 = vsel %vm685, %v2500, 2147483647
        %vm2565 = vcmp.lt.s32.totalorder %v2563, %v2564
        %v2566 = vsel %vm2565, %v2563, %v2564
        %v2567 = vsel %vm685, %v2501, 2147483647
        %vm2568 = vcmp.lt.s32.totalorder %v2566, %v2567
        %v2569 = vsel %vm2568, %v2566, %v2567
        %v2570 = vsel %vm685, %v2502, 2147483647
        %vm2571 = vcmp.lt.s32.totalorder %v2569, %v2570
        %v2572 = vsel %vm2571, %v2569, %v2570
        %v2573 = vsel %vm685, %v2503, 2147483647
        %vm2574 = vcmp.lt.s32.totalorder %v2572, %v2573
        %v2575 = vsel %vm2574, %v2572, %v2573
        %v2576 = vsel %vm685, %v2504, 2147483647
        %vm2577 = vcmp.lt.s32.totalorder %v2575, %v2576
        %v2578 = vsel %vm2577, %v2575, %v2576
        %v2579 = vsel %vm685, %v2505, 2147483647
        %vm2580 = vcmp.lt.s32.totalorder %v2578, %v2579
        %v2581 = vsel %vm2580, %v2578, %v2579
        %v2582 = vsel %vm685, %v2506, 2147483647
        %vm2583 = vcmp.lt.s32.totalorder %v2581, %v2582
        %v2584 = vsel %vm2583, %v2581, %v2582
        %v2585 = vsel %vm685, %v2507, 2147483647
        %v2586 = vsel %vm685, %v2508, 2147483647
        %vm2587 = vcmp.lt.s32.totalorder %v2585, %v2586
        %v2588 = vsel %vm2587, %v2585, %v2586
        %v2589 = vsel %vm685, %v2509, 2147483647
        %vm2590 = vcmp.lt.s32.totalorder %v2588, %v2589
        %v2591 = vsel %vm2590, %v2588, %v2589
        %v2592 = vsel %vm685, %v2510, 2147483647
        %vm2593 = vcmp.lt.s32.totalorder %v2591, %v2592
        %v2594 = vsel %vm2593, %v2591, %v2592
        %v2595 = vsel %vm685, %v2511, 2147483647
        %vm2596 = vcmp.lt.s32.totalorder %v2594, %v2595
        %v2597 = vsel %vm2596, %v2594, %v2595
        %v2598 = vsel %vm685, %v2512, 2147483647
        %vm2599 = vcmp.lt.s32.totalorder %v2597, %v2598
        %v2600 = vsel %vm2599, %v2597, %v2598
        %v2601 = vsel %vm685, %v2513, 2147483647
        %vm2602 = vcmp.lt.s32.totalorder %v2600, %v2601
        %v2603 = vsel %vm2602, %v2600, %v2601
        %v2604 = vsel %vm685, %v2514, 2147483647
        %vm2605 = vcmp.lt.s32.totalorder %v2603, %v2604
        %v2606 = vsel %vm2605, %v2603, %v2604
        %v2607 = vsel %vm685, %v2515, 2147483647
        %v2608 = vsel %vm685, %v2516, 2147483647
        %vm2609 = vcmp.lt.s32.totalorder %v2607, %v2608
        %v2610 = vsel %vm2609, %v2607, %v2608
        %v2611 = vsel %vm685, %v2517, 2147483647
        %vm2612 = vcmp.lt.s32.totalorder %v2610, %v2611
        %v2613 = vsel %vm2612, %v2610, %v2611
        %v2614 = vsel %vm685, %v2518, 2147483647
        %vm2615 = vcmp.lt.s32.totalorder %v2613, %v2614
        %v2616 = vsel %vm2615, %v2613, %v2614
        %v2617 = vsel %vm685, %v2519, 2147483647
        %vm2618 = vcmp.lt.s32.totalorder %v2616, %v2617
        %v2619 = vsel %vm2618, %v2616, %v2617
        %v2620 = vsel %vm685, %v2520, 2147483647
        %vm2621 = vcmp.lt.s32.totalorder %v2619, %v2620
        %v2622 = vsel %vm2621, %v2619, %v2620
        %v2623 = vsel %vm685, %v2521, 2147483647
        %vm2624 = vcmp.lt.s32.totalorder %v2622, %v2623
        %v2625 = vsel %vm2624, %v2622, %v2623
        %v2626 = vsel %vm685, %v2522, 2147483647
        %vm2627 = vcmp.lt.s32.totalorder %v2625, %v2626
        %v2628 = vsel %vm2627, %v2625, %v2626
        %v2629 = vsel %vm685, %v2523, 2147483647
        %v2630 = vsel %vm685, %v2524, 2147483647
        %vm2631 = vcmp.lt.s32.totalorder %v2629, %v2630
        %v2632 = vsel %vm2631, %v2629, %v2630
        %v2633 = vsel %vm685, %v2525, 2147483647
        %vm2634 = vcmp.lt.s32.totalorder %v2632, %v2633
        %v2635 = vsel %vm2634, %v2632, %v2633
        %v2636 = vsel %vm685, %v2526, 2147483647
        %vm2637 = vcmp.lt.s32.totalorder %v2635, %v2636
        %v2638 = vsel %vm2637, %v2635, %v2636
        %v2639 = vsel %vm685, %v2527, 2147483647
        %vm2640 = vcmp.lt.s32.totalorder %v2638, %v2639
        %v2641 = vsel %vm2640, %v2638, %v2639
        %v2642 = vsel %vm685, %v2528, 2147483647
        %vm2643 = vcmp.lt.s32.totalorder %v2641, %v2642
        %v2644 = vsel %vm2643, %v2641, %v2642
        %v2645 = vsel %vm685, %v2529, 2147483647
        %vm2646 = vcmp.lt.s32.totalorder %v2644, %v2645
        %v2647 = vsel %vm2646, %v2644, %v2645
        %v2648 = vsel %vm685, %v2530, 2147483647
        %vm2649 = vcmp.lt.s32.totalorder %v2647, %v2648
        %v2650 = vsel %vm2649, %v2647, %v2648
        %v2651 = vsel %vm685, %v2531, 2147483647
        %v2652 = vsel %vm685, %v2532, 2147483647
        %vm2653 = vcmp.lt.s32.totalorder %v2651, %v2652
        %v2654 = vsel %vm2653, %v2651, %v2652
        %v2655 = vsel %vm685, %v2533, 2147483647
        %vm2656 = vcmp.lt.s32.totalorder %v2654, %v2655
        %v2657 = vsel %vm2656, %v2654, %v2655
        %v2658 = vsel %vm685, %v2534, 2147483647
        %vm2659 = vcmp.lt.s32.totalorder %v2657, %v2658
        %v2660 = vsel %vm2659, %v2657, %v2658
        %v2661 = vsel %vm685, %v2535, 2147483647
        %vm2662 = vcmp.lt.s32.totalorder %v2660, %v2661
        %v2663 = vsel %vm2662, %v2660, %v2661
        %v2664 = vsel %vm685, %v2536, 2147483647
        %vm2665 = vcmp.lt.s32.totalorder %v2663, %v2664
        %v2666 = vsel %vm2665, %v2663, %v2664
        %v2667 = vsel %vm685, %v2537, 2147483647
        %vm2668 = vcmp.lt.s32.totalorder %v2666, %v2667
        %v2669 = vsel %vm2668, %v2666, %v2667
        %v2670 = vsel %vm685, %v2538, 2147483647
        %vm2671 = vcmp.lt.s32.totalorder %v2669, %v2670
        %v2672 = vsel %vm2671, %v2669, %v2670
        %v2673 = vsel %vm685, %v2539, 2147483647
        %v2674 = vsel %vm685, %v2540, 2147483647
        %vm2675 = vcmp.lt.s32.totalorder %v2673, %v2674
        %v2676 = vsel %vm2675, %v2673, %v2674
        %v2677 = vsel %vm685, %v2541, 2147483647
        %vm2678 = vcmp.lt.s32.totalorder %v2676, %v2677
        %v2679 = vsel %vm2678, %v2676, %v2677
        %v2680 = vsel %vm685, %v2542, 2147483647
        %vm2681 = vcmp.lt.s32.totalorder %v2679, %v2680
        %v2682 = vsel %vm2681, %v2679, %v2680
        %v2683 = vsel %vm685, %v2543, 2147483647
        %vm2684 = vcmp.lt.s32.totalorder %v2682, %v2683
        %v2685 = vsel %vm2684, %v2682, %v2683
        %v2686 = vsel %vm685, %v2544, 2147483647
        %vm2687 = vcmp.lt.s32.totalorder %v2685, %v2686
        %v2688 = vsel %vm2687, %v2685, %v2686
        %v2689 = vsel %vm685, %v2545, 2147483647
        %vm2690 = vcmp.lt.s32.totalorder %v2688, %v2689
        %v2691 = vsel %vm2690, %v2688, %v2689
        %v2692 = vsel %vm685, %v2546, 2147483647
        %vm2693 = vcmp.lt.s32.totalorder %v2691, %v2692
        %v2694 = vsel %vm2693, %v2691, %v2692
        %v2695 = vsel %vm685, %v2547, 2147483647
        %v2696 = vsel %vm685, %v2548, 2147483647
        %vm2697 = vcmp.lt.s32.totalorder %v2695, %v2696
        %v2698 = vsel %vm2697, %v2695, %v2696
        %v2699 = vsel %vm685, %v2549, 2147483647
        %vm2700 = vcmp.lt.s32.totalorder %v2698, %v2699
        %v2701 = vsel %vm2700, %v2698, %v2699
        %v2702 = vsel %vm685, %v2550, 2147483647
        %vm2703 = vcmp.lt.s32.totalorder %v2701, %v2702
        %v2704 = vsel %vm2703, %v2701, %v2702
        %v2705 = vsel %vm685, %v2551, 2147483647
        %vm2706 = vcmp.lt.s32.totalorder %v2704, %v2705
        %v2707 = vsel %vm2706, %v2704, %v2705
        %v2708 = vsel %vm685, %v2552, 2147483647
        %vm2709 = vcmp.lt.s32.totalorder %v2707, %v2708
        %v2710 = vsel %vm2709, %v2707, %v2708
        %v2711 = vsel %vm685, %v2553, 2147483647
        %vm2712 = vcmp.lt.s32.totalorder %v2710, %v2711
        %v2713 = vsel %vm2712, %v2710, %v2711
        %v2714 = vsel %vm685, %v2554, 2147483647
        %vm2715 = vcmp.lt.s32.totalorder %v2713, %v2714
        %v2716 = vsel %vm2715, %v2713, %v2714
        %v2717 = vsel %vm685, %v2555, 2147483647
        %v2718 = vsel %vm685, %v2556, 2147483647
        %vm2719 = vcmp.lt.s32.totalorder %v2717, %v2718
        %v2720 = vsel %vm2719, %v2717, %v2718
        %v2721 = vsel %vm685, %v2557, 2147483647
        %vm2722 = vcmp.lt.s32.totalorder %v2720, %v2721
        %v2723 = vsel %vm2722, %v2720, %v2721
        %v2724 = vsel %vm685, %v2558, 2147483647
        %vm2725 = vcmp.lt.s32.totalorder %v2723, %v2724
        %v2726 = vsel %vm2725, %v2723, %v2724
        %v2727 = vsel %vm685, %v2559, 2147483647
        %vm2728 = vcmp.lt.s32.totalorder %v2726, %v2727
        %v2729 = vsel %vm2728, %v2726, %v2727
        %v2730 = vsel %vm685, %v2560, 2147483647
        %vm2731 = vcmp.lt.s32.totalorder %v2729, %v2730
        %v2732 = vsel %vm2731, %v2729, %v2730
        %v2733 = vsel %vm685, %v2561, 2147483647
        %vm2734 = vcmp.lt.s32.totalorder %v2732, %v2733
        %v2735 = vsel %vm2734, %v2732, %v2733
        %v2736 = vsel %vm685, %v2562, 2147483647
        %vm2737 = vcmp.lt.s32.totalorder %v2735, %v2736
        %v2738 = vsel %vm2737, %v2735, %v2736
        %v2739 = vrot.slane %v2606, 7
        %v2740 = vsel %vm453, %v2739, %v2584
        %v2741 = vrot.slane %v2628, 6
        %v2742 = vsel %vm455, %v2741, %v2740
        %v2743 = vrot.slane %v2650, 5
        %v2744 = vsel %vm457, %v2743, %v2742
        %v2745 = vrot.slane %v2672, 4
        %v2746 = vsel %vm459, %v2745, %v2744
        %v2747 = vrot.slane %v2694, 3
        %v2748 = vsel %vm461, %v2747, %v2746
        %v2749 = vrot.slane %v2716, 2
        %v2750 = vsel %vm463, %v2749, %v2748
        %v2751 = vrot.slane %v2738, 1
        %v2752 = vsel %vm465, %v2751, %v2750
        %s2753 = scalar_lea.vmem [#allocation2], 32
        %2754 = vst [vmem:[%s2753] sm:$0xff] %v2752
        %s2755 = scalar_lea.vmem %s218, 32 [#allocation3]
        %v2756 = vld [vmem:[%s2755] sm:$0xff]
        %v2758 = vrot.slane %v2756, 1
        %v2759 = vrot.slane %v2756, 2
        %v2760 = vrot.slane %v2756, 3
        %v2761 = vrot.slane %v2756, 4
        %v2762 = vrot.slane %v2756, 5
        %v2763 = vrot.slane %v2756, 6
        %v2764 = vrot.slane %v2756, 7
        %v2773 = vadd.f32 %v2321, %v2756
        %v2774 = vadd.f32 %v2336, %v2758
        %v2775 = vadd.f32 %v2351, %v2759
        %v2776 = vadd.f32 %v2366, %v2760
        %v2777 = vadd.f32 %v2381, %v2761
        %v2778 = vadd.f32 %v2396, %v2762
        %v2779 = vadd.f32 %v2411, %v2763
        %v2780 = vadd.f32 %v2426, %v2764
        %v2781 = vadd.f32 %v2773, %v255
        %v2782 = vadd.f32 %v2774, %v501
        %v2783 = vadd.f32 %v2775, %v502
        %v2784 = vadd.f32 %v2776, %v503
        %v2785 = vadd.f32 %v2777, %v504
        %v2786 = vadd.f32 %v2778, %v505
        %v2787 = vadd.f32 %v2779, %v506
        %v2788 = vadd.f32 %v2780, %v507
        %v2789 = vadd.f32 %v2773, %v262
        %v2790 = vadd.f32 %v2774, %v508
        %v2791 = vadd.f32 %v2775, %v509
        %v2792 = vadd.f32 %v2776, %v510
        %v2793 = vadd.f32 %v2777, %v511
        %v2794 = vadd.f32 %v2778, %v512
        %v2795 = vadd.f32 %v2779, %v513
        %v2796 = vadd.f32 %v2780, %v514
        %v2797 = vadd.f32 %v2773, %v269
        %v2798 = vadd.f32 %v2774, %v515
        %v2799 = vadd.f32 %v2775, %v516
        %v2800 = vadd.f32 %v2776, %v517
        %v2801 = vadd.f32 %v2777, %v518
        %v2802 = vadd.f32 %v2778, %v519
        %v2803 = vadd.f32 %v2779, %v520
        %v2804 = vadd.f32 %v2780, %v521
        %v2805 = vadd.f32 %v2773, %v276
        %v2806 = vadd.f32 %v2774, %v522
        %v2807 = vadd.f32 %v2775, %v523
        %v2808 = vadd.f32 %v2776, %v524
        %v2809 = vadd.f32 %v2777, %v525
        %v2810 = vadd.f32 %v2778, %v526
        %v2811 = vadd.f32 %v2779, %v527
        %v2812 = vadd.f32 %v2780, %v528
        %v2813 = vadd.f32 %v2773, %v283
        %v2814 = vadd.f32 %v2774, %v529
        %v2815 = vadd.f32 %v2775, %v530
        %v2816 = vadd.f32 %v2776, %v531
        %v2817 = vadd.f32 %v2777, %v532
        %v2818 = vadd.f32 %v2778, %v533
        %v2819 = vadd.f32 %v2779, %v534
        %v2820 = vadd.f32 %v2780, %v535
        %v2821 = vadd.f32 %v2773, %v290
        %v2822 = vadd.f32 %v2774, %v536
        %v2823 = vadd.f32 %v2775, %v537
        %v2824 = vadd.f32 %v2776, %v538
        %v2825 = vadd.f32 %v2777, %v539
        %v2826 = vadd.f32 %v2778, %v540
        %v2827 = vadd.f32 %v2779, %v541
        %v2828 = vadd.f32 %v2780, %v542
        %v2829 = vadd.f32 %v2773, %v297
        %v2830 = vadd.f32 %v2774, %v543
        %v2831 = vadd.f32 %v2775, %v544
        %v2832 = vadd.f32 %v2776, %v545
        %v2833 = vadd.f32 %v2777, %v546
        %v2834 = vadd.f32 %v2778, %v547
        %v2835 = vadd.f32 %v2779, %v548
        %v2836 = vadd.f32 %v2780, %v549
        %v2837 = vadd.f32 %v2773, %v304
        %v2838 = vadd.f32 %v2774, %v550
        %v2839 = vadd.f32 %v2775, %v551
        %v2840 = vadd.f32 %v2776, %v552
        %v2841 = vadd.f32 %v2777, %v553
        %v2842 = vadd.f32 %v2778, %v554
        %v2843 = vadd.f32 %v2779, %v555
        %v2844 = vadd.f32 %v2780, %v556
        %v2845 = vsel %vm685, %v2781, -inf
        %v2846 = vsel %vm685, %v2782, -inf
        %v2847 = vmax.f32 %v2845, %v2846
        %v2848 = vsel %vm685, %v2783, -inf
        %v2849 = vmax.f32 %v2847, %v2848
        %v2850 = vsel %vm685, %v2784, -inf
        %v2851 = vmax.f32 %v2849, %v2850
        %v2852 = vsel %vm685, %v2785, -inf
        %v2853 = vmax.f32 %v2851, %v2852
        %v2854 = vsel %vm685, %v2786, -inf
        %v2855 = vmax.f32 %v2853, %v2854
        %v2856 = vsel %vm685, %v2787, -inf
        %v2857 = vmax.f32 %v2855, %v2856
        %v2858 = vsel %vm685, %v2788, -inf
        %v2859 = vmax.f32 %v2857, %v2858
        %v2860 = vsel %vm685, %v2789, -inf
        %v2861 = vsel %vm685, %v2790, -inf
        %v2862 = vmax.f32 %v2860, %v2861
        %v2863 = vsel %vm685, %v2791, -inf
        %v2864 = vmax.f32 %v2862, %v2863
        %v2865 = vsel %vm685, %v2792, -inf
        %v2866 = vmax.f32 %v2864, %v2865
        %v2867 = vsel %vm685, %v2793, -inf
        %v2868 = vmax.f32 %v2866, %v2867
        %v2869 = vsel %vm685, %v2794, -inf
        %v2870 = vmax.f32 %v2868, %v2869
        %v2871 = vsel %vm685, %v2795, -inf
        %v2872 = vmax.f32 %v2870, %v2871
        %v2873 = vsel %vm685, %v2796, -inf
        %v2874 = vmax.f32 %v2872, %v2873
        %v2875 = vsel %vm685, %v2797, -inf
        %v2876 = vsel %vm685, %v2798, -inf
        %v2877 = vmax.f32 %v2875, %v2876
        %v2878 = vsel %vm685, %v2799, -inf
        %v2879 = vmax.f32 %v2877, %v2878
        %v2880 = vsel %vm685, %v2800, -inf
        %v2881 = vmax.f32 %v2879, %v2880
        %v2882 = vsel %vm685, %v2801, -inf
        %v2883 = vmax.f32 %v2881, %v2882
        %v2884 = vsel %vm685, %v2802, -inf
        %v2885 = vmax.f32 %v2883, %v2884
        %v2886 = vsel %vm685, %v2803, -inf
        %v2887 = vmax.f32 %v2885, %v2886
        %v2888 = vsel %vm685, %v2804, -inf
        %v2889 = vmax.f32 %v2887, %v2888
        %v2890 = vsel %vm685, %v2805, -inf
        %v2891 = vsel %vm685, %v2806, -inf
        %v2892 = vmax.f32 %v2890, %v2891
        %v2893 = vsel %vm685, %v2807, -inf
        %v2894 = vmax.f32 %v2892, %v2893
        %v2895 = vsel %vm685, %v2808, -inf
        %v2896 = vmax.f32 %v2894, %v2895
        %v2897 = vsel %vm685, %v2809, -inf
        %v2898 = vmax.f32 %v2896, %v2897
        %v2899 = vsel %vm685, %v2810, -inf
        %v2900 = vmax.f32 %v2898, %v2899
        %v2901 = vsel %vm685, %v2811, -inf
        %v2902 = vmax.f32 %v2900, %v2901
        %v2903 = vsel %vm685, %v2812, -inf
        %v2904 = vmax.f32 %v2902, %v2903
        %v2905 = vsel %vm685, %v2813, -inf
        %v2906 = vsel %vm685, %v2814, -inf
        %v2907 = vmax.f32 %v2905, %v2906
        %v2908 = vsel %vm685, %v2815, -inf
        %v2909 = vmax.f32 %v2907, %v2908
        %v2910 = vsel %vm685, %v2816, -inf
        %v2911 = vmax.f32 %v2909, %v2910
        %v2912 = vsel %vm685, %v2817, -inf
        %v2913 = vmax.f32 %v2911, %v2912
        %v2914 = vsel %vm685, %v2818, -inf
        %v2915 = vmax.f32 %v2913, %v2914
        %v2916 = vsel %vm685, %v2819, -inf
        %v2917 = vmax.f32 %v2915, %v2916
        %v2918 = vsel %vm685, %v2820, -inf
        %v2919 = vmax.f32 %v2917, %v2918
        %v2920 = vsel %vm685, %v2821, -inf
        %v2921 = vsel %vm685, %v2822, -inf
        %v2922 = vmax.f32 %v2920, %v2921
        %v2923 = vsel %vm685, %v2823, -inf
        %v2924 = vmax.f32 %v2922, %v2923
        %v2925 = vsel %vm685, %v2824, -inf
        %v2926 = vmax.f32 %v2924, %v2925
        %v2927 = vsel %vm685, %v2825, -inf
        %v2928 = vmax.f32 %v2926, %v2927
        %v2929 = vsel %vm685, %v2826, -inf
        %v2930 = vmax.f32 %v2928, %v2929
        %v2931 = vsel %vm685, %v2827, -inf
        %v2932 = vmax.f32 %v2930, %v2931
        %v2933 = vsel %vm685, %v2828, -inf
        %v2934 = vmax.f32 %v2932, %v2933
        %v2935 = vsel %vm685, %v2829, -inf
        %v2936 = vsel %vm685, %v2830, -inf
        %v2937 = vmax.f32 %v2935, %v2936
        %v2938 = vsel %vm685, %v2831, -inf
        %v2939 = vmax.f32 %v2937, %v2938
        %v2940 = vsel %vm685, %v2832, -inf
        %v2941 = vmax.f32 %v2939, %v2940
        %v2942 = vsel %vm685, %v2833, -inf
        %v2943 = vmax.f32 %v2941, %v2942
        %v2944 = vsel %vm685, %v2834, -inf
        %v2945 = vmax.f32 %v2943, %v2944
        %v2946 = vsel %vm685, %v2835, -inf
        %v2947 = vmax.f32 %v2945, %v2946
        %v2948 = vsel %vm685, %v2836, -inf
        %v2949 = vmax.f32 %v2947, %v2948
        %v2950 = vsel %vm685, %v2837, -inf
        %v2951 = vsel %vm685, %v2838, -inf
        %v2952 = vmax.f32 %v2950, %v2951
        %v2953 = vsel %vm685, %v2839, -inf
        %v2954 = vmax.f32 %v2952, %v2953
        %v2955 = vsel %vm685, %v2840, -inf
        %v2956 = vmax.f32 %v2954, %v2955
        %v2957 = vsel %vm685, %v2841, -inf
        %v2958 = vmax.f32 %v2956, %v2957
        %v2959 = vsel %vm685, %v2842, -inf
        %v2960 = vmax.f32 %v2958, %v2959
        %v2961 = vsel %vm685, %v2843, -inf
        %v2962 = vmax.f32 %v2960, %v2961
        %v2963 = vsel %vm685, %v2844, -inf
        %v2964 = vmax.f32 %v2962, %v2963
        %v2965 = vperm.slane %v2859, 0
        %v2966 = vperm.slane %v2874, 0
        %v2967 = vperm.slane %v2889, 0
        %v2968 = vperm.slane %v2904, 0
        %v2969 = vperm.slane %v2919, 0
        %v2970 = vperm.slane %v2934, 0
        %v2971 = vperm.slane %v2949, 0
        %v2972 = vperm.slane %v2964, 0
        %vm2973 = vcmp.eq.f32.partialorder %v2781, %v2965
        %vm2974 = vcmp.eq.f32.partialorder %v2782, %v2965
        %vm2975 = vcmp.eq.f32.partialorder %v2783, %v2965
        %vm2976 = vcmp.eq.f32.partialorder %v2784, %v2965
        %vm2977 = vcmp.eq.f32.partialorder %v2785, %v2965
        %vm2978 = vcmp.eq.f32.partialorder %v2786, %v2965
        %vm2979 = vcmp.eq.f32.partialorder %v2787, %v2965
        %vm2980 = vcmp.eq.f32.partialorder %v2788, %v2965
        %vm2981 = vcmp.eq.f32.partialorder %v2789, %v2966
        %vm2982 = vcmp.eq.f32.partialorder %v2790, %v2966
        %vm2983 = vcmp.eq.f32.partialorder %v2791, %v2966
        %vm2984 = vcmp.eq.f32.partialorder %v2792, %v2966
        %vm2985 = vcmp.eq.f32.partialorder %v2793, %v2966
        %vm2986 = vcmp.eq.f32.partialorder %v2794, %v2966
        %vm2987 = vcmp.eq.f32.partialorder %v2795, %v2966
        %vm2988 = vcmp.eq.f32.partialorder %v2796, %v2966
        %vm2989 = vcmp.eq.f32.partialorder %v2797, %v2967
        %vm2990 = vcmp.eq.f32.partialorder %v2798, %v2967
        %vm2991 = vcmp.eq.f32.partialorder %v2799, %v2967
        %vm2992 = vcmp.eq.f32.partialorder %v2800, %v2967
        %vm2993 = vcmp.eq.f32.partialorder %v2801, %v2967
        %vm2994 = vcmp.eq.f32.partialorder %v2802, %v2967
        %vm2995 = vcmp.eq.f32.partialorder %v2803, %v2967
        %vm2996 = vcmp.eq.f32.partialorder %v2804, %v2967
        %vm2997 = vcmp.eq.f32.partialorder %v2805, %v2968
        %vm2998 = vcmp.eq.f32.partialorder %v2806, %v2968
        %vm2999 = vcmp.eq.f32.partialorder %v2807, %v2968
        %vm3000 = vcmp.eq.f32.partialorder %v2808, %v2968
        %vm3001 = vcmp.eq.f32.partialorder %v2809, %v2968
        %vm3002 = vcmp.eq.f32.partialorder %v2810, %v2968
        %vm3003 = vcmp.eq.f32.partialorder %v2811, %v2968
        %vm3004 = vcmp.eq.f32.partialorder %v2812, %v2968
        %vm3005 = vcmp.eq.f32.partialorder %v2813, %v2969
        %vm3006 = vcmp.eq.f32.partialorder %v2814, %v2969
        %vm3007 = vcmp.eq.f32.partialorder %v2815, %v2969
        %vm3008 = vcmp.eq.f32.partialorder %v2816, %v2969
        %vm3009 = vcmp.eq.f32.partialorder %v2817, %v2969
        %vm3010 = vcmp.eq.f32.partialorder %v2818, %v2969
        %vm3011 = vcmp.eq.f32.partialorder %v2819, %v2969
        %vm3012 = vcmp.eq.f32.partialorder %v2820, %v2969
        %vm3013 = vcmp.eq.f32.partialorder %v2821, %v2970
        %vm3014 = vcmp.eq.f32.partialorder %v2822, %v2970
        %vm3015 = vcmp.eq.f32.partialorder %v2823, %v2970
        %vm3016 = vcmp.eq.f32.partialorder %v2824, %v2970
        %vm3017 = vcmp.eq.f32.partialorder %v2825, %v2970
        %vm3018 = vcmp.eq.f32.partialorder %v2826, %v2970
        %vm3019 = vcmp.eq.f32.partialorder %v2827, %v2970
        %vm3020 = vcmp.eq.f32.partialorder %v2828, %v2970
        %vm3021 = vcmp.eq.f32.partialorder %v2829, %v2971
        %vm3022 = vcmp.eq.f32.partialorder %v2830, %v2971
        %vm3023 = vcmp.eq.f32.partialorder %v2831, %v2971
        %vm3024 = vcmp.eq.f32.partialorder %v2832, %v2971
        %vm3025 = vcmp.eq.f32.partialorder %v2833, %v2971
        %vm3026 = vcmp.eq.f32.partialorder %v2834, %v2971
        %vm3027 = vcmp.eq.f32.partialorder %v2835, %v2971
        %vm3028 = vcmp.eq.f32.partialorder %v2836, %v2971
        %vm3029 = vcmp.eq.f32.partialorder %v2837, %v2972
        %vm3030 = vcmp.eq.f32.partialorder %v2838, %v2972
        %vm3031 = vcmp.eq.f32.partialorder %v2839, %v2972
        %vm3032 = vcmp.eq.f32.partialorder %v2840, %v2972
        %vm3033 = vcmp.eq.f32.partialorder %v2841, %v2972
        %vm3034 = vcmp.eq.f32.partialorder %v2842, %v2972
        %vm3035 = vcmp.eq.f32.partialorder %v2843, %v2972
        %vm3036 = vcmp.eq.f32.partialorder %v2844, %v2972
        %v3037 = vsel %vm2973, %v306, 8
        %v3038 = vsel %vm2974, %v878, 8
        %v3039 = vsel %vm2975, %v879, 8
        %v3040 = vsel %vm2976, %v880, 8
        %v3041 = vsel %vm2977, %v881, 8
        %v3042 = vsel %vm2978, %v882, 8
        %v3043 = vsel %vm2979, %v883, 8
        %v3044 = vsel %vm2980, %v884, 8
        %v3045 = vsel %vm2981, %v306, 8
        %v3046 = vsel %vm2982, %v878, 8
        %v3047 = vsel %vm2983, %v879, 8
        %v3048 = vsel %vm2984, %v880, 8
        %v3049 = vsel %vm2985, %v881, 8
        %v3050 = vsel %vm2986, %v882, 8
        %v3051 = vsel %vm2987, %v883, 8
        %v3052 = vsel %vm2988, %v884, 8
        %v3053 = vsel %vm2989, %v306, 8
        %v3054 = vsel %vm2990, %v878, 8
        %v3055 = vsel %vm2991, %v879, 8
        %v3056 = vsel %vm2992, %v880, 8
        %v3057 = vsel %vm2993, %v881, 8
        %v3058 = vsel %vm2994, %v882, 8
        %v3059 = vsel %vm2995, %v883, 8
        %v3060 = vsel %vm2996, %v884, 8
        %v3061 = vsel %vm2997, %v306, 8
        %v3062 = vsel %vm2998, %v878, 8
        %v3063 = vsel %vm2999, %v879, 8
        %v3064 = vsel %vm3000, %v880, 8
        %v3065 = vsel %vm3001, %v881, 8
        %v3066 = vsel %vm3002, %v882, 8
        %v3067 = vsel %vm3003, %v883, 8
        %v3068 = vsel %vm3004, %v884, 8
        %v3069 = vsel %vm3005, %v306, 8
        %v3070 = vsel %vm3006, %v878, 8
        %v3071 = vsel %vm3007, %v879, 8
        %v3072 = vsel %vm3008, %v880, 8
        %v3073 = vsel %vm3009, %v881, 8
        %v3074 = vsel %vm3010, %v882, 8
        %v3075 = vsel %vm3011, %v883, 8
        %v3076 = vsel %vm3012, %v884, 8
        %v3077 = vsel %vm3013, %v306, 8
        %v3078 = vsel %vm3014, %v878, 8
        %v3079 = vsel %vm3015, %v879, 8
        %v3080 = vsel %vm3016, %v880, 8
        %v3081 = vsel %vm3017, %v881, 8
        %v3082 = vsel %vm3018, %v882, 8
        %v3083 = vsel %vm3019, %v883, 8
        %v3084 = vsel %vm3020, %v884, 8
        %v3085 = vsel %vm3021, %v306, 8
        %v3086 = vsel %vm3022, %v878, 8
        %v3087 = vsel %vm3023, %v879, 8
        %v3088 = vsel %vm3024, %v880, 8
        %v3089 = vsel %vm3025, %v881, 8
        %v3090 = vsel %vm3026, %v882, 8
        %v3091 = vsel %vm3027, %v883, 8
        %v3092 = vsel %vm3028, %v884, 8
        %v3093 = vsel %vm3029, %v306, 8
        %v3094 = vsel %vm3030, %v878, 8
        %v3095 = vsel %vm3031, %v879, 8
        %v3096 = vsel %vm3032, %v880, 8
        %v3097 = vsel %vm3033, %v881, 8
        %v3098 = vsel %vm3034, %v882, 8
        %v3099 = vsel %vm3035, %v883, 8
        %v3100 = vsel %vm3036, %v884, 8
        %v3101 = vsel %vm685, %v3037, 2147483647
        %v3102 = vsel %vm685, %v3038, 2147483647
        %vm3103 = vcmp.lt.s32.totalorder %v3101, %v3102
        %v3104 = vsel %vm3103, %v3101, %v3102
        %v3105 = vsel %vm685, %v3039, 2147483647
        %vm3106 = vcmp.lt.s32.totalorder %v3104, %v3105
        %v3107 = vsel %vm3106, %v3104, %v3105
        %v3108 = vsel %vm685, %v3040, 2147483647
        %vm3109 = vcmp.lt.s32.totalorder %v3107, %v3108
        %v3110 = vsel %vm3109, %v3107, %v3108
        %v3111 = vsel %vm685, %v3041, 2147483647
        %vm3112 = vcmp.lt.s32.totalorder %v3110, %v3111
        %v3113 = vsel %vm3112, %v3110, %v3111
        %v3114 = vsel %vm685, %v3042, 2147483647
        %vm3115 = vcmp.lt.s32.totalorder %v3113, %v3114
        %v3116 = vsel %vm3115, %v3113, %v3114
        %v3117 = vsel %vm685, %v3043, 2147483647
        %vm3118 = vcmp.lt.s32.totalorder %v3116, %v3117
        %v3119 = vsel %vm3118, %v3116, %v3117
        %v3120 = vsel %vm685, %v3044, 2147483647
        %vm3121 = vcmp.lt.s32.totalorder %v3119, %v3120
        %v3122 = vsel %vm3121, %v3119, %v3120
        %v3123 = vsel %vm685, %v3045, 2147483647
        %v3124 = vsel %vm685, %v3046, 2147483647
        %vm3125 = vcmp.lt.s32.totalorder %v3123, %v3124
        %v3126 = vsel %vm3125, %v3123, %v3124
        %v3127 = vsel %vm685, %v3047, 2147483647
        %vm3128 = vcmp.lt.s32.totalorder %v3126, %v3127
        %v3129 = vsel %vm3128, %v3126, %v3127
        %v3130 = vsel %vm685, %v3048, 2147483647
        %vm3131 = vcmp.lt.s32.totalorder %v3129, %v3130
        %v3132 = vsel %vm3131, %v3129, %v3130
        %v3133 = vsel %vm685, %v3049, 2147483647
        %vm3134 = vcmp.lt.s32.totalorder %v3132, %v3133
        %v3135 = vsel %vm3134, %v3132, %v3133
        %v3136 = vsel %vm685, %v3050, 2147483647
        %vm3137 = vcmp.lt.s32.totalorder %v3135, %v3136
        %v3138 = vsel %vm3137, %v3135, %v3136
        %v3139 = vsel %vm685, %v3051, 2147483647
        %vm3140 = vcmp.lt.s32.totalorder %v3138, %v3139
        %v3141 = vsel %vm3140, %v3138, %v3139
        %v3142 = vsel %vm685, %v3052, 2147483647
        %vm3143 = vcmp.lt.s32.totalorder %v3141, %v3142
        %v3144 = vsel %vm3143, %v3141, %v3142
        %v3145 = vsel %vm685, %v3053, 2147483647
        %v3146 = vsel %vm685, %v3054, 2147483647
        %vm3147 = vcmp.lt.s32.totalorder %v3145, %v3146
        %v3148 = vsel %vm3147, %v3145, %v3146
        %v3149 = vsel %vm685, %v3055, 2147483647
        %vm3150 = vcmp.lt.s32.totalorder %v3148, %v3149
        %v3151 = vsel %vm3150, %v3148, %v3149
        %v3152 = vsel %vm685, %v3056, 2147483647
        %vm3153 = vcmp.lt.s32.totalorder %v3151, %v3152
        %v3154 = vsel %vm3153, %v3151, %v3152
        %v3155 = vsel %vm685, %v3057, 2147483647
        %vm3156 = vcmp.lt.s32.totalorder %v3154, %v3155
        %v3157 = vsel %vm3156, %v3154, %v3155
        %v3158 = vsel %vm685, %v3058, 2147483647
        %vm3159 = vcmp.lt.s32.totalorder %v3157, %v3158
        %v3160 = vsel %vm3159, %v3157, %v3158
        %v3161 = vsel %vm685, %v3059, 2147483647
        %vm3162 = vcmp.lt.s32.totalorder %v3160, %v3161
        %v3163 = vsel %vm3162, %v3160, %v3161
        %v3164 = vsel %vm685, %v3060, 2147483647
        %vm3165 = vcmp.lt.s32.totalorder %v3163, %v3164
        %v3166 = vsel %vm3165, %v3163, %v3164
        %v3167 = vsel %vm685, %v3061, 2147483647
        %v3168 = vsel %vm685, %v3062, 2147483647
        %vm3169 = vcmp.lt.s32.totalorder %v3167, %v3168
        %v3170 = vsel %vm3169, %v3167, %v3168
        %v3171 = vsel %vm685, %v3063, 2147483647
        %vm3172 = vcmp.lt.s32.totalorder %v3170, %v3171
        %v3173 = vsel %vm3172, %v3170, %v3171
        %v3174 = vsel %vm685, %v3064, 2147483647
        %vm3175 = vcmp.lt.s32.totalorder %v3173, %v3174
        %v3176 = vsel %vm3175, %v3173, %v3174
        %v3177 = vsel %vm685, %v3065, 2147483647
        %vm3178 = vcmp.lt.s32.totalorder %v3176, %v3177
        %v3179 = vsel %vm3178, %v3176, %v3177
        %v3180 = vsel %vm685, %v3066, 2147483647
        %vm3181 = vcmp.lt.s32.totalorder %v3179, %v3180
        %v3182 = vsel %vm3181, %v3179, %v3180
        %v3183 = vsel %vm685, %v3067, 2147483647
        %vm3184 = vcmp.lt.s32.totalorder %v3182, %v3183
        %v3185 = vsel %vm3184, %v3182, %v3183
        %v3186 = vsel %vm685, %v3068, 2147483647
        %vm3187 = vcmp.lt.s32.totalorder %v3185, %v3186
        %v3188 = vsel %vm3187, %v3185, %v3186
        %v3189 = vsel %vm685, %v3069, 2147483647
        %v3190 = vsel %vm685, %v3070, 2147483647
        %vm3191 = vcmp.lt.s32.totalorder %v3189, %v3190
        %v3192 = vsel %vm3191, %v3189, %v3190
        %v3193 = vsel %vm685, %v3071, 2147483647
        %vm3194 = vcmp.lt.s32.totalorder %v3192, %v3193
        %v3195 = vsel %vm3194, %v3192, %v3193
        %v3196 = vsel %vm685, %v3072, 2147483647
        %vm3197 = vcmp.lt.s32.totalorder %v3195, %v3196
        %v3198 = vsel %vm3197, %v3195, %v3196
        %v3199 = vsel %vm685, %v3073, 2147483647
        %vm3200 = vcmp.lt.s32.totalorder %v3198, %v3199
        %v3201 = vsel %vm3200, %v3198, %v3199
        %v3202 = vsel %vm685, %v3074, 2147483647
        %vm3203 = vcmp.lt.s32.totalorder %v3201, %v3202
        %v3204 = vsel %vm3203, %v3201, %v3202
        %v3205 = vsel %vm685, %v3075, 2147483647
        %vm3206 = vcmp.lt.s32.totalorder %v3204, %v3205
        %v3207 = vsel %vm3206, %v3204, %v3205
        %v3208 = vsel %vm685, %v3076, 2147483647
        %vm3209 = vcmp.lt.s32.totalorder %v3207, %v3208
        %v3210 = vsel %vm3209, %v3207, %v3208
        %v3211 = vsel %vm685, %v3077, 2147483647
        %v3212 = vsel %vm685, %v3078, 2147483647
        %vm3213 = vcmp.lt.s32.totalorder %v3211, %v3212
        %v3214 = vsel %vm3213, %v3211, %v3212
        %v3215 = vsel %vm685, %v3079, 2147483647
        %vm3216 = vcmp.lt.s32.totalorder %v3214, %v3215
        %v3217 = vsel %vm3216, %v3214, %v3215
        %v3218 = vsel %vm685, %v3080, 2147483647
        %vm3219 = vcmp.lt.s32.totalorder %v3217, %v3218
        %v3220 = vsel %vm3219, %v3217, %v3218
        %v3221 = vsel %vm685, %v3081, 2147483647
        %vm3222 = vcmp.lt.s32.totalorder %v3220, %v3221
        %v3223 = vsel %vm3222, %v3220, %v3221
        %v3224 = vsel %vm685, %v3082, 2147483647
        %vm3225 = vcmp.lt.s32.totalorder %v3223, %v3224
        %v3226 = vsel %vm3225, %v3223, %v3224
        %v3227 = vsel %vm685, %v3083, 2147483647
        %vm3228 = vcmp.lt.s32.totalorder %v3226, %v3227
        %v3229 = vsel %vm3228, %v3226, %v3227
        %v3230 = vsel %vm685, %v3084, 2147483647
        %vm3231 = vcmp.lt.s32.totalorder %v3229, %v3230
        %v3232 = vsel %vm3231, %v3229, %v3230
        %v3233 = vsel %vm685, %v3085, 2147483647
        %v3234 = vsel %vm685, %v3086, 2147483647
        %vm3235 = vcmp.lt.s32.totalorder %v3233, %v3234
        %v3236 = vsel %vm3235, %v3233, %v3234
        %v3237 = vsel %vm685, %v3087, 2147483647
        %vm3238 = vcmp.lt.s32.totalorder %v3236, %v3237
        %v3239 = vsel %vm3238, %v3236, %v3237
        %v3240 = vsel %vm685, %v3088, 2147483647
        %vm3241 = vcmp.lt.s32.totalorder %v3239, %v3240
        %v3242 = vsel %vm3241, %v3239, %v3240
        %v3243 = vsel %vm685, %v3089, 2147483647
        %vm3244 = vcmp.lt.s32.totalorder %v3242, %v3243
        %v3245 = vsel %vm3244, %v3242, %v3243
        %v3246 = vsel %vm685, %v3090, 2147483647
        %vm3247 = vcmp.lt.s32.totalorder %v3245, %v3246
        %v3248 = vsel %vm3247, %v3245, %v3246
        %v3249 = vsel %vm685, %v3091, 2147483647
        %vm3250 = vcmp.lt.s32.totalorder %v3248, %v3249
        %v3251 = vsel %vm3250, %v3248, %v3249
        %v3252 = vsel %vm685, %v3092, 2147483647
        %vm3253 = vcmp.lt.s32.totalorder %v3251, %v3252
        %v3254 = vsel %vm3253, %v3251, %v3252
        %v3255 = vsel %vm685, %v3093, 2147483647
        %v3256 = vsel %vm685, %v3094, 2147483647
        %vm3257 = vcmp.lt.s32.totalorder %v3255, %v3256
        %v3258 = vsel %vm3257, %v3255, %v3256
        %v3259 = vsel %vm685, %v3095, 2147483647
        %vm3260 = vcmp.lt.s32.totalorder %v3258, %v3259
        %v3261 = vsel %vm3260, %v3258, %v3259
        %v3262 = vsel %vm685, %v3096, 2147483647
        %vm3263 = vcmp.lt.s32.totalorder %v3261, %v3262
        %v3264 = vsel %vm3263, %v3261, %v3262
        %v3265 = vsel %vm685, %v3097, 2147483647
        %vm3266 = vcmp.lt.s32.totalorder %v3264, %v3265
        %v3267 = vsel %vm3266, %v3264, %v3265
        %v3268 = vsel %vm685, %v3098, 2147483647
        %vm3269 = vcmp.lt.s32.totalorder %v3267, %v3268
        %v3270 = vsel %vm3269, %v3267, %v3268
        %v3271 = vsel %vm685, %v3099, 2147483647
        %vm3272 = vcmp.lt.s32.totalorder %v3270, %v3271
        %v3273 = vsel %vm3272, %v3270, %v3271
        %v3274 = vsel %vm685, %v3100, 2147483647
        %vm3275 = vcmp.lt.s32.totalorder %v3273, %v3274
        %v3276 = vsel %vm3275, %v3273, %v3274
        %v3277 = vrot.slane %v3144, 7
        %v3278 = vsel %vm453, %v3277, %v3122
        %v3279 = vrot.slane %v3166, 6
        %v3280 = vsel %vm455, %v3279, %v3278
        %v3281 = vrot.slane %v3188, 5
        %v3282 = vsel %vm457, %v3281, %v3280
        %v3283 = vrot.slane %v3210, 4
        %v3284 = vsel %vm459, %v3283, %v3282
        %v3285 = vrot.slane %v3232, 3
        %v3286 = vsel %vm461, %v3285, %v3284
        %v3287 = vrot.slane %v3254, 2
        %v3288 = vsel %vm463, %v3287, %v3286
        %v3289 = vrot.slane %v3276, 1
        %v3290 = vsel %vm465, %v3289, %v3288
        %s3291 = scalar_lea.vmem [#allocation2], 40
        %3292 = vst [vmem:[%s3291] sm:$0xff] %v3290
        %s3293 = scalar_lea.vmem %s218, 40 [#allocation3]
        %v3294 = vld [vmem:[%s3293] sm:$0xff]
        %v3296 = vrot.slane %v3294, 1
        %v3297 = vrot.slane %v3294, 2
        %v3298 = vrot.slane %v3294, 3
        %v3299 = vrot.slane %v3294, 4
        %v3300 = vrot.slane %v3294, 5
        %v3301 = vrot.slane %v3294, 6
        %v3302 = vrot.slane %v3294, 7
        %v3311 = vadd.f32 %v2859, %v3294
        %v3312 = vadd.f32 %v2874, %v3296
        %v3313 = vadd.f32 %v2889, %v3297
        %v3314 = vadd.f32 %v2904, %v3298
        %v3315 = vadd.f32 %v2919, %v3299
        %v3316 = vadd.f32 %v2934, %v3300
        %v3317 = vadd.f32 %v2949, %v3301
        %v3318 = vadd.f32 %v2964, %v3302
        %v3319 = vadd.f32 %v3311, %v255
        %v3320 = vadd.f32 %v3312, %v501
        %v3321 = vadd.f32 %v3313, %v502
        %v3322 = vadd.f32 %v3314, %v503
        %v3323 = vadd.f32 %v3315, %v504
        %v3324 = vadd.f32 %v3316, %v505
        %v3325 = vadd.f32 %v3317, %v506
        %v3326 = vadd.f32 %v3318, %v507
        %v3327 = vadd.f32 %v3311, %v262
        %v3328 = vadd.f32 %v3312, %v508
        %v3329 = vadd.f32 %v3313, %v509
        %v3330 = vadd.f32 %v3314, %v510
        %v3331 = vadd.f32 %v3315, %v511
        %v3332 = vadd.f32 %v3316, %v512
        %v3333 = vadd.f32 %v3317, %v513
        %v3334 = vadd.f32 %v3318, %v514
        %v3335 = vadd.f32 %v3311, %v269
        %v3336 = vadd.f32 %v3312, %v515
        %v3337 = vadd.f32 %v3313, %v516
        %v3338 = vadd.f32 %v3314, %v517
        %v3339 = vadd.f32 %v3315, %v518
        %v3340 = vadd.f32 %v3316, %v519
        %v3341 = vadd.f32 %v3317, %v520
        %v3342 = vadd.f32 %v3318, %v521
        %v3343 = vadd.f32 %v3311, %v276
        %v3344 = vadd.f32 %v3312, %v522
        %v3345 = vadd.f32 %v3313, %v523
        %v3346 = vadd.f32 %v3314, %v524
        %v3347 = vadd.f32 %v3315, %v525
        %v3348 = vadd.f32 %v3316, %v526
        %v3349 = vadd.f32 %v3317, %v527
        %v3350 = vadd.f32 %v3318, %v528
        %v3351 = vadd.f32 %v3311, %v283
        %v3352 = vadd.f32 %v3312, %v529
        %v3353 = vadd.f32 %v3313, %v530
        %v3354 = vadd.f32 %v3314, %v531
        %v3355 = vadd.f32 %v3315, %v532
        %v3356 = vadd.f32 %v3316, %v533
        %v3357 = vadd.f32 %v3317, %v534
        %v3358 = vadd.f32 %v3318, %v535
        %v3359 = vadd.f32 %v3311, %v290
        %v3360 = vadd.f32 %v3312, %v536
        %v3361 = vadd.f32 %v3313, %v537
        %v3362 = vadd.f32 %v3314, %v538
        %v3363 = vadd.f32 %v3315, %v539
        %v3364 = vadd.f32 %v3316, %v540
        %v3365 = vadd.f32 %v3317, %v541
        %v3366 = vadd.f32 %v3318, %v542
        %v3367 = vadd.f32 %v3311, %v297
        %v3368 = vadd.f32 %v3312, %v543
        %v3369 = vadd.f32 %v3313, %v544
        %v3370 = vadd.f32 %v3314, %v545
        %v3371 = vadd.f32 %v3315, %v546
        %v3372 = vadd.f32 %v3316, %v547
        %v3373 = vadd.f32 %v3317, %v548
        %v3374 = vadd.f32 %v3318, %v549
        %v3375 = vadd.f32 %v3311, %v304
        %v3376 = vadd.f32 %v3312, %v550
        %v3377 = vadd.f32 %v3313, %v551
        %v3378 = vadd.f32 %v3314, %v552
        %v3379 = vadd.f32 %v3315, %v553
        %v3380 = vadd.f32 %v3316, %v554
        %v3381 = vadd.f32 %v3317, %v555
        %v3382 = vadd.f32 %v3318, %v556
        %v3383 = vsel %vm685, %v3319, -inf
        %v3384 = vsel %vm685, %v3320, -inf
        %v3385 = vmax.f32 %v3383, %v3384
        %v3386 = vsel %vm685, %v3321, -inf
        %v3387 = vmax.f32 %v3385, %v3386
        %v3388 = vsel %vm685, %v3322, -inf
        %v3389 = vmax.f32 %v3387, %v3388
        %v3390 = vsel %vm685, %v3323, -inf
        %v3391 = vmax.f32 %v3389, %v3390
        %v3392 = vsel %vm685, %v3324, -inf
        %v3393 = vmax.f32 %v3391, %v3392
        %v3394 = vsel %vm685, %v3325, -inf
        %v3395 = vmax.f32 %v3393, %v3394
        %v3396 = vsel %vm685, %v3326, -inf
        %v3397 = vmax.f32 %v3395, %v3396
        %v3398 = vsel %vm685, %v3327, -inf
        %v3399 = vsel %vm685, %v3328, -inf
        %v3400 = vmax.f32 %v3398, %v3399
        %v3401 = vsel %vm685, %v3329, -inf
        %v3402 = vmax.f32 %v3400, %v3401
        %v3403 = vsel %vm685, %v3330, -inf
        %v3404 = vmax.f32 %v3402, %v3403
        %v3405 = vsel %vm685, %v3331, -inf
        %v3406 = vmax.f32 %v3404, %v3405
        %v3407 = vsel %vm685, %v3332, -inf
        %v3408 = vmax.f32 %v3406, %v3407
        %v3409 = vsel %vm685, %v3333, -inf
        %v3410 = vmax.f32 %v3408, %v3409
        %v3411 = vsel %vm685, %v3334, -inf
        %v3412 = vmax.f32 %v3410, %v3411
        %v3413 = vsel %vm685, %v3335, -inf
        %v3414 = vsel %vm685, %v3336, -inf
        %v3415 = vmax.f32 %v3413, %v3414
        %v3416 = vsel %vm685, %v3337, -inf
        %v3417 = vmax.f32 %v3415, %v3416
        %v3418 = vsel %vm685, %v3338, -inf
        %v3419 = vmax.f32 %v3417, %v3418
        %v3420 = vsel %vm685, %v3339, -inf
        %v3421 = vmax.f32 %v3419, %v3420
        %v3422 = vsel %vm685, %v3340, -inf
        %v3423 = vmax.f32 %v3421, %v3422
        %v3424 = vsel %vm685, %v3341, -inf
        %v3425 = vmax.f32 %v3423, %v3424
        %v3426 = vsel %vm685, %v3342, -inf
        %v3427 = vmax.f32 %v3425, %v3426
        %v3428 = vsel %vm685, %v3343, -inf
        %v3429 = vsel %vm685, %v3344, -inf
        %v3430 = vmax.f32 %v3428, %v3429
        %v3431 = vsel %vm685, %v3345, -inf
        %v3432 = vmax.f32 %v3430, %v3431
        %v3433 = vsel %vm685, %v3346, -inf
        %v3434 = vmax.f32 %v3432, %v3433
        %v3435 = vsel %vm685, %v3347, -inf
        %v3436 = vmax.f32 %v3434, %v3435
        %v3437 = vsel %vm685, %v3348, -inf
        %v3438 = vmax.f32 %v3436, %v3437
        %v3439 = vsel %vm685, %v3349, -inf
        %v3440 = vmax.f32 %v3438, %v3439
        %v3441 = vsel %vm685, %v3350, -inf
        %v3442 = vmax.f32 %v3440, %v3441
        %v3443 = vsel %vm685, %v3351, -inf
        %v3444 = vsel %vm685, %v3352, -inf
        %v3445 = vmax.f32 %v3443, %v3444
        %v3446 = vsel %vm685, %v3353, -inf
        %v3447 = vmax.f32 %v3445, %v3446
        %v3448 = vsel %vm685, %v3354, -inf
        %v3449 = vmax.f32 %v3447, %v3448
        %v3450 = vsel %vm685, %v3355, -inf
        %v3451 = vmax.f32 %v3449, %v3450
        %v3452 = vsel %vm685, %v3356, -inf
        %v3453 = vmax.f32 %v3451, %v3452
        %v3454 = vsel %vm685, %v3357, -inf
        %v3455 = vmax.f32 %v3453, %v3454
        %v3456 = vsel %vm685, %v3358, -inf
        %v3457 = vmax.f32 %v3455, %v3456
        %v3458 = vsel %vm685, %v3359, -inf
        %v3459 = vsel %vm685, %v3360, -inf
        %v3460 = vmax.f32 %v3458, %v3459
        %v3461 = vsel %vm685, %v3361, -inf
        %v3462 = vmax.f32 %v3460, %v3461
        %v3463 = vsel %vm685, %v3362, -inf
        %v3464 = vmax.f32 %v3462, %v3463
        %v3465 = vsel %vm685, %v3363, -inf
        %v3466 = vmax.f32 %v3464, %v3465
        %v3467 = vsel %vm685, %v3364, -inf
        %v3468 = vmax.f32 %v3466, %v3467
        %v3469 = vsel %vm685, %v3365, -inf
        %v3470 = vmax.f32 %v3468, %v3469
        %v3471 = vsel %vm685, %v3366, -inf
        %v3472 = vmax.f32 %v3470, %v3471
        %v3473 = vsel %vm685, %v3367, -inf
        %v3474 = vsel %vm685, %v3368, -inf
        %v3475 = vmax.f32 %v3473, %v3474
        %v3476 = vsel %vm685, %v3369, -inf
        %v3477 = vmax.f32 %v3475, %v3476
        %v3478 = vsel %vm685, %v3370, -inf
        %v3479 = vmax.f32 %v3477, %v3478
        %v3480 = vsel %vm685, %v3371, -inf
        %v3481 = vmax.f32 %v3479, %v3480
        %v3482 = vsel %vm685, %v3372, -inf
        %v3483 = vmax.f32 %v3481, %v3482
        %v3484 = vsel %vm685, %v3373, -inf
        %v3485 = vmax.f32 %v3483, %v3484
        %v3486 = vsel %vm685, %v3374, -inf
        %v3487 = vmax.f32 %v3485, %v3486
        %v3488 = vsel %vm685, %v3375, -inf
        %v3489 = vsel %vm685, %v3376, -inf
        %v3490 = vmax.f32 %v3488, %v3489
        %v3491 = vsel %vm685, %v3377, -inf
        %v3492 = vmax.f32 %v3490, %v3491
        %v3493 = vsel %vm685, %v3378, -inf
        %v3494 = vmax.f32 %v3492, %v3493
        %v3495 = vsel %vm685, %v3379, -inf
        %v3496 = vmax.f32 %v3494, %v3495
        %v3497 = vsel %vm685, %v3380, -inf
        %v3498 = vmax.f32 %v3496, %v3497
        %v3499 = vsel %vm685, %v3381, -inf
        %v3500 = vmax.f32 %v3498, %v3499
        %v3501 = vsel %vm685, %v3382, -inf
        %v3502 = vmax.f32 %v3500, %v3501
        %v3503 = vperm.slane %v3397, 0
        %v3504 = vperm.slane %v3412, 0
        %v3505 = vperm.slane %v3427, 0
        %v3506 = vperm.slane %v3442, 0
        %v3507 = vperm.slane %v3457, 0
        %v3508 = vperm.slane %v3472, 0
        %v3509 = vperm.slane %v3487, 0
        %v3510 = vperm.slane %v3502, 0
        %vm3511 = vcmp.eq.f32.partialorder %v3319, %v3503
        %vm3512 = vcmp.eq.f32.partialorder %v3320, %v3503
        %vm3513 = vcmp.eq.f32.partialorder %v3321, %v3503
        %vm3514 = vcmp.eq.f32.partialorder %v3322, %v3503
        %vm3515 = vcmp.eq.f32.partialorder %v3323, %v3503
        %vm3516 = vcmp.eq.f32.partialorder %v3324, %v3503
        %vm3517 = vcmp.eq.f32.partialorder %v3325, %v3503
        %vm3518 = vcmp.eq.f32.partialorder %v3326, %v3503
        %vm3519 = vcmp.eq.f32.partialorder %v3327, %v3504
        %vm3520 = vcmp.eq.f32.partialorder %v3328, %v3504
        %vm3521 = vcmp.eq.f32.partialorder %v3329, %v3504
        %vm3522 = vcmp.eq.f32.partialorder %v3330, %v3504
        %vm3523 = vcmp.eq.f32.partialorder %v3331, %v3504
        %vm3524 = vcmp.eq.f32.partialorder %v3332, %v3504
        %vm3525 = vcmp.eq.f32.partialorder %v3333, %v3504
        %vm3526 = vcmp.eq.f32.partialorder %v3334, %v3504
        %vm3527 = vcmp.eq.f32.partialorder %v3335, %v3505
        %vm3528 = vcmp.eq.f32.partialorder %v3336, %v3505
        %vm3529 = vcmp.eq.f32.partialorder %v3337, %v3505
        %vm3530 = vcmp.eq.f32.partialorder %v3338, %v3505
        %vm3531 = vcmp.eq.f32.partialorder %v3339, %v3505
        %vm3532 = vcmp.eq.f32.partialorder %v3340, %v3505
        %vm3533 = vcmp.eq.f32.partialorder %v3341, %v3505
        %vm3534 = vcmp.eq.f32.partialorder %v3342, %v3505
        %vm3535 = vcmp.eq.f32.partialorder %v3343, %v3506
        %vm3536 = vcmp.eq.f32.partialorder %v3344, %v3506
        %vm3537 = vcmp.eq.f32.partialorder %v3345, %v3506
        %vm3538 = vcmp.eq.f32.partialorder %v3346, %v3506
        %vm3539 = vcmp.eq.f32.partialorder %v3347, %v3506
        %vm3540 = vcmp.eq.f32.partialorder %v3348, %v3506
        %vm3541 = vcmp.eq.f32.partialorder %v3349, %v3506
        %vm3542 = vcmp.eq.f32.partialorder %v3350, %v3506
        %vm3543 = vcmp.eq.f32.partialorder %v3351, %v3507
        %vm3544 = vcmp.eq.f32.partialorder %v3352, %v3507
        %vm3545 = vcmp.eq.f32.partialorder %v3353, %v3507
        %vm3546 = vcmp.eq.f32.partialorder %v3354, %v3507
        %vm3547 = vcmp.eq.f32.partialorder %v3355, %v3507
        %vm3548 = vcmp.eq.f32.partialorder %v3356, %v3507
        %vm3549 = vcmp.eq.f32.partialorder %v3357, %v3507
        %vm3550 = vcmp.eq.f32.partialorder %v3358, %v3507
        %vm3551 = vcmp.eq.f32.partialorder %v3359, %v3508
        %vm3552 = vcmp.eq.f32.partialorder %v3360, %v3508
        %vm3553 = vcmp.eq.f32.partialorder %v3361, %v3508
        %vm3554 = vcmp.eq.f32.partialorder %v3362, %v3508
        %vm3555 = vcmp.eq.f32.partialorder %v3363, %v3508
        %vm3556 = vcmp.eq.f32.partialorder %v3364, %v3508
        %vm3557 = vcmp.eq.f32.partialorder %v3365, %v3508
        %vm3558 = vcmp.eq.f32.partialorder %v3366, %v3508
        %vm3559 = vcmp.eq.f32.partialorder %v3367, %v3509
        %vm3560 = vcmp.eq.f32.partialorder %v3368, %v3509
        %vm3561 = vcmp.eq.f32.partialorder %v3369, %v3509
        %vm3562 = vcmp.eq.f32.partialorder %v3370, %v3509
        %vm3563 = vcmp.eq.f32.partialorder %v3371, %v3509
        %vm3564 = vcmp.eq.f32.partialorder %v3372, %v3509
        %vm3565 = vcmp.eq.f32.partialorder %v3373, %v3509
        %vm3566 = vcmp.eq.f32.partialorder %v3374, %v3509
        %vm3567 = vcmp.eq.f32.partialorder %v3375, %v3510
        %vm3568 = vcmp.eq.f32.partialorder %v3376, %v3510
        %vm3569 = vcmp.eq.f32.partialorder %v3377, %v3510
        %vm3570 = vcmp.eq.f32.partialorder %v3378, %v3510
        %vm3571 = vcmp.eq.f32.partialorder %v3379, %v3510
        %vm3572 = vcmp.eq.f32.partialorder %v3380, %v3510
        %vm3573 = vcmp.eq.f32.partialorder %v3381, %v3510
        %vm3574 = vcmp.eq.f32.partialorder %v3382, %v3510
        %v3575 = vsel %vm3511, %v306, 8
        %v3576 = vsel %vm3512, %v878, 8
        %v3577 = vsel %vm3513, %v879, 8
        %v3578 = vsel %vm3514, %v880, 8
        %v3579 = vsel %vm3515, %v881, 8
        %v3580 = vsel %vm3516, %v882, 8
        %v3581 = vsel %vm3517, %v883, 8
        %v3582 = vsel %vm3518, %v884, 8
        %v3583 = vsel %vm3519, %v306, 8
        %v3584 = vsel %vm3520, %v878, 8
        %v3585 = vsel %vm3521, %v879, 8
        %v3586 = vsel %vm3522, %v880, 8
        %v3587 = vsel %vm3523, %v881, 8
        %v3588 = vsel %vm3524, %v882, 8
        %v3589 = vsel %vm3525, %v883, 8
        %v3590 = vsel %vm3526, %v884, 8
        %v3591 = vsel %vm3527, %v306, 8
        %v3592 = vsel %vm3528, %v878, 8
        %v3593 = vsel %vm3529, %v879, 8
        %v3594 = vsel %vm3530, %v880, 8
        %v3595 = vsel %vm3531, %v881, 8
        %v3596 = vsel %vm3532, %v882, 8
        %v3597 = vsel %vm3533, %v883, 8
        %v3598 = vsel %vm3534, %v884, 8
        %v3599 = vsel %vm3535, %v306, 8
        %v3600 = vsel %vm3536, %v878, 8
        %v3601 = vsel %vm3537, %v879, 8
        %v3602 = vsel %vm3538, %v880, 8
        %v3603 = vsel %vm3539, %v881, 8
        %v3604 = vsel %vm3540, %v882, 8
        %v3605 = vsel %vm3541, %v883, 8
        %v3606 = vsel %vm3542, %v884, 8
        %v3607 = vsel %vm3543, %v306, 8
        %v3608 = vsel %vm3544, %v878, 8
        %v3609 = vsel %vm3545, %v879, 8
        %v3610 = vsel %vm3546, %v880, 8
        %v3611 = vsel %vm3547, %v881, 8
        %v3612 = vsel %vm3548, %v882, 8
        %v3613 = vsel %vm3549, %v883, 8
        %v3614 = vsel %vm3550, %v884, 8
        %v3615 = vsel %vm3551, %v306, 8
        %v3616 = vsel %vm3552, %v878, 8
        %v3617 = vsel %vm3553, %v879, 8
        %v3618 = vsel %vm3554, %v880, 8
        %v3619 = vsel %vm3555, %v881, 8
        %v3620 = vsel %vm3556, %v882, 8
        %v3621 = vsel %vm3557, %v883, 8
        %v3622 = vsel %vm3558, %v884, 8
        %v3623 = vsel %vm3559, %v306, 8
        %v3624 = vsel %vm3560, %v878, 8
        %v3625 = vsel %vm3561, %v879, 8
        %v3626 = vsel %vm3562, %v880, 8
        %v3627 = vsel %vm3563, %v881, 8
        %v3628 = vsel %vm3564, %v882, 8
        %v3629 = vsel %vm3565, %v883, 8
        %v3630 = vsel %vm3566, %v884, 8
        %v3631 = vsel %vm3567, %v306, 8
        %v3632 = vsel %vm3568, %v878, 8
        %v3633 = vsel %vm3569, %v879, 8
        %v3634 = vsel %vm3570, %v880, 8
        %v3635 = vsel %vm3571, %v881, 8
        %v3636 = vsel %vm3572, %v882, 8
        %v3637 = vsel %vm3573, %v883, 8
        %v3638 = vsel %vm3574, %v884, 8
        %v3639 = vsel %vm685, %v3575, 2147483647
        %v3640 = vsel %vm685, %v3576, 2147483647
        %vm3641 = vcmp.lt.s32.totalorder %v3639, %v3640
        %v3642 = vsel %vm3641, %v3639, %v3640
        %v3643 = vsel %vm685, %v3577, 2147483647
        %vm3644 = vcmp.lt.s32.totalorder %v3642, %v3643
        %v3645 = vsel %vm3644, %v3642, %v3643
        %v3646 = vsel %vm685, %v3578, 2147483647
        %vm3647 = vcmp.lt.s32.totalorder %v3645, %v3646
        %v3648 = vsel %vm3647, %v3645, %v3646
        %v3649 = vsel %vm685, %v3579, 2147483647
        %vm3650 = vcmp.lt.s32.totalorder %v3648, %v3649
        %v3651 = vsel %vm3650, %v3648, %v3649
        %v3652 = vsel %vm685, %v3580, 2147483647
        %vm3653 = vcmp.lt.s32.totalorder %v3651, %v3652
        %v3654 = vsel %vm3653, %v3651, %v3652
        %v3655 = vsel %vm685, %v3581, 2147483647
        %vm3656 = vcmp.lt.s32.totalorder %v3654, %v3655
        %v3657 = vsel %vm3656, %v3654, %v3655
        %v3658 = vsel %vm685, %v3582, 2147483647
        %vm3659 = vcmp.lt.s32.totalorder %v3657, %v3658
        %v3660 = vsel %vm3659, %v3657, %v3658
        %v3661 = vsel %vm685, %v3583, 2147483647
        %v3662 = vsel %vm685, %v3584, 2147483647
        %vm3663 = vcmp.lt.s32.totalorder %v3661, %v3662
        %v3664 = vsel %vm3663, %v3661, %v3662
        %v3665 = vsel %vm685, %v3585, 2147483647
        %vm3666 = vcmp.lt.s32.totalorder %v3664, %v3665
        %v3667 = vsel %vm3666, %v3664, %v3665
        %v3668 = vsel %vm685, %v3586, 2147483647
        %vm3669 = vcmp.lt.s32.totalorder %v3667, %v3668
        %v3670 = vsel %vm3669, %v3667, %v3668
        %v3671 = vsel %vm685, %v3587, 2147483647
        %vm3672 = vcmp.lt.s32.totalorder %v3670, %v3671
        %v3673 = vsel %vm3672, %v3670, %v3671
        %v3674 = vsel %vm685, %v3588, 2147483647
        %vm3675 = vcmp.lt.s32.totalorder %v3673, %v3674
        %v3676 = vsel %vm3675, %v3673, %v3674
        %v3677 = vsel %vm685, %v3589, 2147483647
        %vm3678 = vcmp.lt.s32.totalorder %v3676, %v3677
        %v3679 = vsel %vm3678, %v3676, %v3677
        %v3680 = vsel %vm685, %v3590, 2147483647
        %vm3681 = vcmp.lt.s32.totalorder %v3679, %v3680
        %v3682 = vsel %vm3681, %v3679, %v3680
        %v3683 = vsel %vm685, %v3591, 2147483647
        %v3684 = vsel %vm685, %v3592, 2147483647
        %vm3685 = vcmp.lt.s32.totalorder %v3683, %v3684
        %v3686 = vsel %vm3685, %v3683, %v3684
        %v3687 = vsel %vm685, %v3593, 2147483647
        %vm3688 = vcmp.lt.s32.totalorder %v3686, %v3687
        %v3689 = vsel %vm3688, %v3686, %v3687
        %v3690 = vsel %vm685, %v3594, 2147483647
        %vm3691 = vcmp.lt.s32.totalorder %v3689, %v3690
        %v3692 = vsel %vm3691, %v3689, %v3690
        %v3693 = vsel %vm685, %v3595, 2147483647
        %vm3694 = vcmp.lt.s32.totalorder %v3692, %v3693
        %v3695 = vsel %vm3694, %v3692, %v3693
        %v3696 = vsel %vm685, %v3596, 2147483647
        %vm3697 = vcmp.lt.s32.totalorder %v3695, %v3696
        %v3698 = vsel %vm3697, %v3695, %v3696
        %v3699 = vsel %vm685, %v3597, 2147483647
        %vm3700 = vcmp.lt.s32.totalorder %v3698, %v3699
        %v3701 = vsel %vm3700, %v3698, %v3699
        %v3702 = vsel %vm685, %v3598, 2147483647
        %vm3703 = vcmp.lt.s32.totalorder %v3701, %v3702
        %v3704 = vsel %vm3703, %v3701, %v3702
        %v3705 = vsel %vm685, %v3599, 2147483647
        %v3706 = vsel %vm685, %v3600, 2147483647
        %vm3707 = vcmp.lt.s32.totalorder %v3705, %v3706
        %v3708 = vsel %vm3707, %v3705, %v3706
        %v3709 = vsel %vm685, %v3601, 2147483647
        %vm3710 = vcmp.lt.s32.totalorder %v3708, %v3709
        %v3711 = vsel %vm3710, %v3708, %v3709
        %v3712 = vsel %vm685, %v3602, 2147483647
        %vm3713 = vcmp.lt.s32.totalorder %v3711, %v3712
        %v3714 = vsel %vm3713, %v3711, %v3712
        %v3715 = vsel %vm685, %v3603, 2147483647
        %vm3716 = vcmp.lt.s32.totalorder %v3714, %v3715
        %v3717 = vsel %vm3716, %v3714, %v3715
        %v3718 = vsel %vm685, %v3604, 2147483647
        %vm3719 = vcmp.lt.s32.totalorder %v3717, %v3718
        %v3720 = vsel %vm3719, %v3717, %v3718
        %v3721 = vsel %vm685, %v3605, 2147483647
        %vm3722 = vcmp.lt.s32.totalorder %v3720, %v3721
        %v3723 = vsel %vm3722, %v3720, %v3721
        %v3724 = vsel %vm685, %v3606, 2147483647
        %vm3725 = vcmp.lt.s32.totalorder %v3723, %v3724
        %v3726 = vsel %vm3725, %v3723, %v3724
        %v3727 = vsel %vm685, %v3607, 2147483647
        %v3728 = vsel %vm685, %v3608, 2147483647
        %vm3729 = vcmp.lt.s32.totalorder %v3727, %v3728
        %v3730 = vsel %vm3729, %v3727, %v3728
        %v3731 = vsel %vm685, %v3609, 2147483647
        %vm3732 = vcmp.lt.s32.totalorder %v3730, %v3731
        %v3733 = vsel %vm3732, %v3730, %v3731
        %v3734 = vsel %vm685, %v3610, 2147483647
        %vm3735 = vcmp.lt.s32.totalorder %v3733, %v3734
        %v3736 = vsel %vm3735, %v3733, %v3734
        %v3737 = vsel %vm685, %v3611, 2147483647
        %vm3738 = vcmp.lt.s32.totalorder %v3736, %v3737
        %v3739 = vsel %vm3738, %v3736, %v3737
        %v3740 = vsel %vm685, %v3612, 2147483647
        %vm3741 = vcmp.lt.s32.totalorder %v3739, %v3740
        %v3742 = vsel %vm3741, %v3739, %v3740
        %v3743 = vsel %vm685, %v3613, 2147483647
        %vm3744 = vcmp.lt.s32.totalorder %v3742, %v3743
        %v3745 = vsel %vm3744, %v3742, %v3743
        %v3746 = vsel %vm685, %v3614, 2147483647
        %vm3747 = vcmp.lt.s32.totalorder %v3745, %v3746
        %v3748 = vsel %vm3747, %v3745, %v3746
        %v3749 = vsel %vm685, %v3615, 2147483647
        %v3750 = vsel %vm685, %v3616, 2147483647
        %vm3751 = vcmp.lt.s32.totalorder %v3749, %v3750
        %v3752 = vsel %vm3751, %v3749, %v3750
        %v3753 = vsel %vm685, %v3617, 2147483647
        %vm3754 = vcmp.lt.s32.totalorder %v3752, %v3753
        %v3755 = vsel %vm3754, %v3752, %v3753
        %v3756 = vsel %vm685, %v3618, 2147483647
        %vm3757 = vcmp.lt.s32.totalorder %v3755, %v3756
        %v3758 = vsel %vm3757, %v3755, %v3756
        %v3759 = vsel %vm685, %v3619, 2147483647
        %vm3760 = vcmp.lt.s32.totalorder %v3758, %v3759
        %v3761 = vsel %vm3760, %v3758, %v3759
        %v3762 = vsel %vm685, %v3620, 2147483647
        %vm3763 = vcmp.lt.s32.totalorder %v3761, %v3762
        %v3764 = vsel %vm3763, %v3761, %v3762
        %v3765 = vsel %vm685, %v3621, 2147483647
        %vm3766 = vcmp.lt.s32.totalorder %v3764, %v3765
        %v3767 = vsel %vm3766, %v3764, %v3765
        %v3768 = vsel %vm685, %v3622, 2147483647
        %vm3769 = vcmp.lt.s32.totalorder %v3767, %v3768
        %v3770 = vsel %vm3769, %v3767, %v3768
        %v3771 = vsel %vm685, %v3623, 2147483647
        %v3772 = vsel %vm685, %v3624, 2147483647
        %vm3773 = vcmp.lt.s32.totalorder %v3771, %v3772
        %v3774 = vsel %vm3773, %v3771, %v3772
        %v3775 = vsel %vm685, %v3625, 2147483647
        %vm3776 = vcmp.lt.s32.totalorder %v3774, %v3775
        %v3777 = vsel %vm3776, %v3774, %v3775
        %v3778 = vsel %vm685, %v3626, 2147483647
        %vm3779 = vcmp.lt.s32.totalorder %v3777, %v3778
        %v3780 = vsel %vm3779, %v3777, %v3778
        %v3781 = vsel %vm685, %v3627, 2147483647
        %vm3782 = vcmp.lt.s32.totalorder %v3780, %v3781
        %v3783 = vsel %vm3782, %v3780, %v3781
        %v3784 = vsel %vm685, %v3628, 2147483647
        %vm3785 = vcmp.lt.s32.totalorder %v3783, %v3784
        %v3786 = vsel %vm3785, %v3783, %v3784
        %v3787 = vsel %vm685, %v3629, 2147483647
        %vm3788 = vcmp.lt.s32.totalorder %v3786, %v3787
        %v3789 = vsel %vm3788, %v3786, %v3787
        %v3790 = vsel %vm685, %v3630, 2147483647
        %vm3791 = vcmp.lt.s32.totalorder %v3789, %v3790
        %v3792 = vsel %vm3791, %v3789, %v3790
        %v3793 = vsel %vm685, %v3631, 2147483647
        %v3794 = vsel %vm685, %v3632, 2147483647
        %vm3795 = vcmp.lt.s32.totalorder %v3793, %v3794
        %v3796 = vsel %vm3795, %v3793, %v3794
        %v3797 = vsel %vm685, %v3633, 2147483647
        %vm3798 = vcmp.lt.s32.totalorder %v3796, %v3797
        %v3799 = vsel %vm3798, %v3796, %v3797
        %v3800 = vsel %vm685, %v3634, 2147483647
        %vm3801 = vcmp.lt.s32.totalorder %v3799, %v3800
        %v3802 = vsel %vm3801, %v3799, %v3800
        %v3803 = vsel %vm685, %v3635, 2147483647
        %vm3804 = vcmp.lt.s32.totalorder %v3802, %v3803
        %v3805 = vsel %vm3804, %v3802, %v3803
        %v3806 = vsel %vm685, %v3636, 2147483647
        %vm3807 = vcmp.lt.s32.totalorder %v3805, %v3806
        %v3808 = vsel %vm3807, %v3805, %v3806
        %v3809 = vsel %vm685, %v3637, 2147483647
        %vm3810 = vcmp.lt.s32.totalorder %v3808, %v3809
        %v3811 = vsel %vm3810, %v3808, %v3809
        %v3812 = vsel %vm685, %v3638, 2147483647
        %vm3813 = vcmp.lt.s32.totalorder %v3811, %v3812
        %v3814 = vsel %vm3813, %v3811, %v3812
        %v3815 = vrot.slane %v3682, 7
        %v3816 = vsel %vm453, %v3815, %v3660
        %v3817 = vrot.slane %v3704, 6
        %v3818 = vsel %vm455, %v3817, %v3816
        %v3819 = vrot.slane %v3726, 5
        %v3820 = vsel %vm457, %v3819, %v3818
        %v3821 = vrot.slane %v3748, 4
        %v3822 = vsel %vm459, %v3821, %v3820
        %v3823 = vrot.slane %v3770, 3
        %v3824 = vsel %vm461, %v3823, %v3822
        %v3825 = vrot.slane %v3792, 2
        %v3826 = vsel %vm463, %v3825, %v3824
        %v3827 = vrot.slane %v3814, 1
        %v3828 = vsel %vm465, %v3827, %v3826
        %s3829 = scalar_lea.vmem [#allocation2], 48
        %3830 = vst [vmem:[%s3829] sm:$0xff] %v3828
        %s3831 = scalar_lea.vmem %s218, 48 [#allocation3]
        %v3832 = vld [vmem:[%s3831] sm:$0xff]
        %v3834 = vrot.slane %v3832, 1
        %v3835 = vrot.slane %v3832, 2
        %v3836 = vrot.slane %v3832, 3
        %v3837 = vrot.slane %v3832, 4
        %v3838 = vrot.slane %v3832, 5
        %v3839 = vrot.slane %v3832, 6
        %v3840 = vrot.slane %v3832, 7
        %v3849 = vadd.f32 %v3397, %v3832
        %v3850 = vadd.f32 %v3412, %v3834
        %v3851 = vadd.f32 %v3427, %v3835
        %v3852 = vadd.f32 %v3442, %v3836
        %v3853 = vadd.f32 %v3457, %v3837
        %v3854 = vadd.f32 %v3472, %v3838
        %v3855 = vadd.f32 %v3487, %v3839
        %v3856 = vadd.f32 %v3502, %v3840
        %v3857 = vadd.f32 %v3849, %v255
        %v3858 = vadd.f32 %v3850, %v501
        %v3859 = vadd.f32 %v3851, %v502
        %v3860 = vadd.f32 %v3852, %v503
        %v3861 = vadd.f32 %v3853, %v504
        %v3862 = vadd.f32 %v3854, %v505
        %v3863 = vadd.f32 %v3855, %v506
        %v3864 = vadd.f32 %v3856, %v507
        %v3865 = vadd.f32 %v3849, %v262
        %v3866 = vadd.f32 %v3850, %v508
        %v3867 = vadd.f32 %v3851, %v509
        %v3868 = vadd.f32 %v3852, %v510
        %v3869 = vadd.f32 %v3853, %v511
        %v3870 = vadd.f32 %v3854, %v512
        %v3871 = vadd.f32 %v3855, %v513
        %v3872 = vadd.f32 %v3856, %v514
        %v3873 = vadd.f32 %v3849, %v269
        %v3874 = vadd.f32 %v3850, %v515
        %v3875 = vadd.f32 %v3851, %v516
        %v3876 = vadd.f32 %v3852, %v517
        %v3877 = vadd.f32 %v3853, %v518
        %v3878 = vadd.f32 %v3854, %v519
        %v3879 = vadd.f32 %v3855, %v520
        %v3880 = vadd.f32 %v3856, %v521
        %v3881 = vadd.f32 %v3849, %v276
        %v3882 = vadd.f32 %v3850, %v522
        %v3883 = vadd.f32 %v3851, %v523
        %v3884 = vadd.f32 %v3852, %v524
        %v3885 = vadd.f32 %v3853, %v525
        %v3886 = vadd.f32 %v3854, %v526
        %v3887 = vadd.f32 %v3855, %v527
        %v3888 = vadd.f32 %v3856, %v528
        %v3889 = vadd.f32 %v3849, %v283
        %v3890 = vadd.f32 %v3850, %v529
        %v3891 = vadd.f32 %v3851, %v530
        %v3892 = vadd.f32 %v3852, %v531
        %v3893 = vadd.f32 %v3853, %v532
        %v3894 = vadd.f32 %v3854, %v533
        %v3895 = vadd.f32 %v3855, %v534
        %v3896 = vadd.f32 %v3856, %v535
        %v3897 = vadd.f32 %v3849, %v290
        %v3898 = vadd.f32 %v3850, %v536
        %v3899 = vadd.f32 %v3851, %v537
        %v3900 = vadd.f32 %v3852, %v538
        %v3901 = vadd.f32 %v3853, %v539
        %v3902 = vadd.f32 %v3854, %v540
        %v3903 = vadd.f32 %v3855, %v541
        %v3904 = vadd.f32 %v3856, %v542
        %v3905 = vadd.f32 %v3849, %v297
        %v3906 = vadd.f32 %v3850, %v543
        %v3907 = vadd.f32 %v3851, %v544
        %v3908 = vadd.f32 %v3852, %v545
        %v3909 = vadd.f32 %v3853, %v546
        %v3910 = vadd.f32 %v3854, %v547
        %v3911 = vadd.f32 %v3855, %v548
        %v3912 = vadd.f32 %v3856, %v549
        %v3913 = vadd.f32 %v3849, %v304
        %v3914 = vadd.f32 %v3850, %v550
        %v3915 = vadd.f32 %v3851, %v551
        %v3916 = vadd.f32 %v3852, %v552
        %v3917 = vadd.f32 %v3853, %v553
        %v3918 = vadd.f32 %v3854, %v554
        %v3919 = vadd.f32 %v3855, %v555
        %v3920 = vadd.f32 %v3856, %v556
        %v3921 = vsel %vm685, %v3857, -inf
        %v3922 = vsel %vm685, %v3858, -inf
        %v3923 = vmax.f32 %v3921, %v3922
        %v3924 = vsel %vm685, %v3859, -inf
        %v3925 = vmax.f32 %v3923, %v3924
        %v3926 = vsel %vm685, %v3860, -inf
        %v3927 = vmax.f32 %v3925, %v3926
        %v3928 = vsel %vm685, %v3861, -inf
        %v3929 = vmax.f32 %v3927, %v3928
        %v3930 = vsel %vm685, %v3862, -inf
        %v3931 = vmax.f32 %v3929, %v3930
        %v3932 = vsel %vm685, %v3863, -inf
        %v3933 = vmax.f32 %v3931, %v3932
        %v3934 = vsel %vm685, %v3864, -inf
        %v3935 = vmax.f32 %v3933, %v3934
        %v3936 = vsel %vm685, %v3865, -inf
        %v3937 = vsel %vm685, %v3866, -inf
        %v3938 = vmax.f32 %v3936, %v3937
        %v3939 = vsel %vm685, %v3867, -inf
        %v3940 = vmax.f32 %v3938, %v3939
        %v3941 = vsel %vm685, %v3868, -inf
        %v3942 = vmax.f32 %v3940, %v3941
        %v3943 = vsel %vm685, %v3869, -inf
        %v3944 = vmax.f32 %v3942, %v3943
        %v3945 = vsel %vm685, %v3870, -inf
        %v3946 = vmax.f32 %v3944, %v3945
        %v3947 = vsel %vm685, %v3871, -inf
        %v3948 = vmax.f32 %v3946, %v3947
        %v3949 = vsel %vm685, %v3872, -inf
        %v3950 = vmax.f32 %v3948, %v3949
        %v3951 = vsel %vm685, %v3873, -inf
        %v3952 = vsel %vm685, %v3874, -inf
        %v3953 = vmax.f32 %v3951, %v3952
        %v3954 = vsel %vm685, %v3875, -inf
        %v3955 = vmax.f32 %v3953, %v3954
        %v3956 = vsel %vm685, %v3876, -inf
        %v3957 = vmax.f32 %v3955, %v3956
        %v3958 = vsel %vm685, %v3877, -inf
        %v3959 = vmax.f32 %v3957, %v3958
        %v3960 = vsel %vm685, %v3878, -inf
        %v3961 = vmax.f32 %v3959, %v3960
        %v3962 = vsel %vm685, %v3879, -inf
        %v3963 = vmax.f32 %v3961, %v3962
        %v3964 = vsel %vm685, %v3880, -inf
        %v3965 = vmax.f32 %v3963, %v3964
        %v3966 = vsel %vm685, %v3881, -inf
        %v3967 = vsel %vm685, %v3882, -inf
        %v3968 = vmax.f32 %v3966, %v3967
        %v3969 = vsel %vm685, %v3883, -inf
        %v3970 = vmax.f32 %v3968, %v3969
        %v3971 = vsel %vm685, %v3884, -inf
        %v3972 = vmax.f32 %v3970, %v3971
        %v3973 = vsel %vm685, %v3885, -inf
        %v3974 = vmax.f32 %v3972, %v3973
        %v3975 = vsel %vm685, %v3886, -inf
        %v3976 = vmax.f32 %v3974, %v3975
        %v3977 = vsel %vm685, %v3887, -inf
        %v3978 = vmax.f32 %v3976, %v3977
        %v3979 = vsel %vm685, %v3888, -inf
        %v3980 = vmax.f32 %v3978, %v3979
        %v3981 = vsel %vm685, %v3889, -inf
        %v3982 = vsel %vm685, %v3890, -inf
        %v3983 = vmax.f32 %v3981, %v3982
        %v3984 = vsel %vm685, %v3891, -inf
        %v3985 = vmax.f32 %v3983, %v3984
        %v3986 = vsel %vm685, %v3892, -inf
        %v3987 = vmax.f32 %v3985, %v3986
        %v3988 = vsel %vm685, %v3893, -inf
        %v3989 = vmax.f32 %v3987, %v3988
        %v3990 = vsel %vm685, %v3894, -inf
        %v3991 = vmax.f32 %v3989, %v3990
        %v3992 = vsel %vm685, %v3895, -inf
        %v3993 = vmax.f32 %v3991, %v3992
        %v3994 = vsel %vm685, %v3896, -inf
        %v3995 = vmax.f32 %v3993, %v3994
        %v3996 = vsel %vm685, %v3897, -inf
        %v3997 = vsel %vm685, %v3898, -inf
        %v3998 = vmax.f32 %v3996, %v3997
        %v3999 = vsel %vm685, %v3899, -inf
        %v4000 = vmax.f32 %v3998, %v3999
        %v4001 = vsel %vm685, %v3900, -inf
        %v4002 = vmax.f32 %v4000, %v4001
        %v4003 = vsel %vm685, %v3901, -inf
        %v4004 = vmax.f32 %v4002, %v4003
        %v4005 = vsel %vm685, %v3902, -inf
        %v4006 = vmax.f32 %v4004, %v4005
        %v4007 = vsel %vm685, %v3903, -inf
        %v4008 = vmax.f32 %v4006, %v4007
        %v4009 = vsel %vm685, %v3904, -inf
        %v4010 = vmax.f32 %v4008, %v4009
        %v4011 = vsel %vm685, %v3905, -inf
        %v4012 = vsel %vm685, %v3906, -inf
        %v4013 = vmax.f32 %v4011, %v4012
        %v4014 = vsel %vm685, %v3907, -inf
        %v4015 = vmax.f32 %v4013, %v4014
        %v4016 = vsel %vm685, %v3908, -inf
        %v4017 = vmax.f32 %v4015, %v4016
        %v4018 = vsel %vm685, %v3909, -inf
        %v4019 = vmax.f32 %v4017, %v4018
        %v4020 = vsel %vm685, %v3910, -inf
        %v4021 = vmax.f32 %v4019, %v4020
        %v4022 = vsel %vm685, %v3911, -inf
        %v4023 = vmax.f32 %v4021, %v4022
        %v4024 = vsel %vm685, %v3912, -inf
        %v4025 = vmax.f32 %v4023, %v4024
        %v4026 = vsel %vm685, %v3913, -inf
        %v4027 = vsel %vm685, %v3914, -inf
        %v4028 = vmax.f32 %v4026, %v4027
        %v4029 = vsel %vm685, %v3915, -inf
        %v4030 = vmax.f32 %v4028, %v4029
        %v4031 = vsel %vm685, %v3916, -inf
        %v4032 = vmax.f32 %v4030, %v4031
        %v4033 = vsel %vm685, %v3917, -inf
        %v4034 = vmax.f32 %v4032, %v4033
        %v4035 = vsel %vm685, %v3918, -inf
        %v4036 = vmax.f32 %v4034, %v4035
        %v4037 = vsel %vm685, %v3919, -inf
        %v4038 = vmax.f32 %v4036, %v4037
        %v4039 = vsel %vm685, %v3920, -inf
        %v4040 = vmax.f32 %v4038, %v4039
        %v4041 = vperm.slane %v3935, 0
        %v4042 = vperm.slane %v3950, 0
        %v4043 = vperm.slane %v3965, 0
        %v4044 = vperm.slane %v3980, 0
        %v4045 = vperm.slane %v3995, 0
        %v4046 = vperm.slane %v4010, 0
        %v4047 = vperm.slane %v4025, 0
        %v4048 = vperm.slane %v4040, 0
        %vm4049 = vcmp.eq.f32.partialorder %v3857, %v4041
        %vm4050 = vcmp.eq.f32.partialorder %v3858, %v4041
        %vm4051 = vcmp.eq.f32.partialorder %v3859, %v4041
        %vm4052 = vcmp.eq.f32.partialorder %v3860, %v4041
        %vm4053 = vcmp.eq.f32.partialorder %v3861, %v4041
        %vm4054 = vcmp.eq.f32.partialorder %v3862, %v4041
        %vm4055 = vcmp.eq.f32.partialorder %v3863, %v4041
        %vm4056 = vcmp.eq.f32.partialorder %v3864, %v4041
        %vm4057 = vcmp.eq.f32.partialorder %v3865, %v4042
        %vm4058 = vcmp.eq.f32.partialorder %v3866, %v4042
        %vm4059 = vcmp.eq.f32.partialorder %v3867, %v4042
        %vm4060 = vcmp.eq.f32.partialorder %v3868, %v4042
        %vm4061 = vcmp.eq.f32.partialorder %v3869, %v4042
        %vm4062 = vcmp.eq.f32.partialorder %v3870, %v4042
        %vm4063 = vcmp.eq.f32.partialorder %v3871, %v4042
        %vm4064 = vcmp.eq.f32.partialorder %v3872, %v4042
        %vm4065 = vcmp.eq.f32.partialorder %v3873, %v4043
        %vm4066 = vcmp.eq.f32.partialorder %v3874, %v4043
        %vm4067 = vcmp.eq.f32.partialorder %v3875, %v4043
        %vm4068 = vcmp.eq.f32.partialorder %v3876, %v4043
        %vm4069 = vcmp.eq.f32.partialorder %v3877, %v4043
        %vm4070 = vcmp.eq.f32.partialorder %v3878, %v4043
        %vm4071 = vcmp.eq.f32.partialorder %v3879, %v4043
        %vm4072 = vcmp.eq.f32.partialorder %v3880, %v4043
        %vm4073 = vcmp.eq.f32.partialorder %v3881, %v4044
        %vm4074 = vcmp.eq.f32.partialorder %v3882, %v4044
        %vm4075 = vcmp.eq.f32.partialorder %v3883, %v4044
        %vm4076 = vcmp.eq.f32.partialorder %v3884, %v4044
        %vm4077 = vcmp.eq.f32.partialorder %v3885, %v4044
        %vm4078 = vcmp.eq.f32.partialorder %v3886, %v4044
        %vm4079 = vcmp.eq.f32.partialorder %v3887, %v4044
        %vm4080 = vcmp.eq.f32.partialorder %v3888, %v4044
        %vm4081 = vcmp.eq.f32.partialorder %v3889, %v4045
        %vm4082 = vcmp.eq.f32.partialorder %v3890, %v4045
        %vm4083 = vcmp.eq.f32.partialorder %v3891, %v4045
        %vm4084 = vcmp.eq.f32.partialorder %v3892, %v4045
        %vm4085 = vcmp.eq.f32.partialorder %v3893, %v4045
        %vm4086 = vcmp.eq.f32.partialorder %v3894, %v4045
        %vm4087 = vcmp.eq.f32.partialorder %v3895, %v4045
        %vm4088 = vcmp.eq.f32.partialorder %v3896, %v4045
        %vm4089 = vcmp.eq.f32.partialorder %v3897, %v4046
        %vm4090 = vcmp.eq.f32.partialorder %v3898, %v4046
        %vm4091 = vcmp.eq.f32.partialorder %v3899, %v4046
        %vm4092 = vcmp.eq.f32.partialorder %v3900, %v4046
        %vm4093 = vcmp.eq.f32.partialorder %v3901, %v4046
        %vm4094 = vcmp.eq.f32.partialorder %v3902, %v4046
        %vm4095 = vcmp.eq.f32.partialorder %v3903, %v4046
        %vm4096 = vcmp.eq.f32.partialorder %v3904, %v4046
        %vm4097 = vcmp.eq.f32.partialorder %v3905, %v4047
        %vm4098 = vcmp.eq.f32.partialorder %v3906, %v4047
        %vm4099 = vcmp.eq.f32.partialorder %v3907, %v4047
        %vm4100 = vcmp.eq.f32.partialorder %v3908, %v4047
        %vm4101 = vcmp.eq.f32.partialorder %v3909, %v4047
        %vm4102 = vcmp.eq.f32.partialorder %v3910, %v4047
        %vm4103 = vcmp.eq.f32.partialorder %v3911, %v4047
        %vm4104 = vcmp.eq.f32.partialorder %v3912, %v4047
        %vm4105 = vcmp.eq.f32.partialorder %v3913, %v4048
        %vm4106 = vcmp.eq.f32.partialorder %v3914, %v4048
        %vm4107 = vcmp.eq.f32.partialorder %v3915, %v4048
        %vm4108 = vcmp.eq.f32.partialorder %v3916, %v4048
        %vm4109 = vcmp.eq.f32.partialorder %v3917, %v4048
        %vm4110 = vcmp.eq.f32.partialorder %v3918, %v4048
        %vm4111 = vcmp.eq.f32.partialorder %v3919, %v4048
        %vm4112 = vcmp.eq.f32.partialorder %v3920, %v4048
        %v4113 = vsel %vm4049, %v306, 8
        %v4114 = vsel %vm4050, %v878, 8
        %v4115 = vsel %vm4051, %v879, 8
        %v4116 = vsel %vm4052, %v880, 8
        %v4117 = vsel %vm4053, %v881, 8
        %v4118 = vsel %vm4054, %v882, 8
        %v4119 = vsel %vm4055, %v883, 8
        %v4120 = vsel %vm4056, %v884, 8
        %v4121 = vsel %vm4057, %v306, 8
        %v4122 = vsel %vm4058, %v878, 8
        %v4123 = vsel %vm4059, %v879, 8
        %v4124 = vsel %vm4060, %v880, 8
        %v4125 = vsel %vm4061, %v881, 8
        %v4126 = vsel %vm4062, %v882, 8
        %v4127 = vsel %vm4063, %v883, 8
        %v4128 = vsel %vm4064, %v884, 8
        %v4129 = vsel %vm4065, %v306, 8
        %v4130 = vsel %vm4066, %v878, 8
        %v4131 = vsel %vm4067, %v879, 8
        %v4132 = vsel %vm4068, %v880, 8
        %v4133 = vsel %vm4069, %v881, 8
        %v4134 = vsel %vm4070, %v882, 8
        %v4135 = vsel %vm4071, %v883, 8
        %v4136 = vsel %vm4072, %v884, 8
        %v4137 = vsel %vm4073, %v306, 8
        %v4138 = vsel %vm4074, %v878, 8
        %v4139 = vsel %vm4075, %v879, 8
        %v4140 = vsel %vm4076, %v880, 8
        %v4141 = vsel %vm4077, %v881, 8
        %v4142 = vsel %vm4078, %v882, 8
        %v4143 = vsel %vm4079, %v883, 8
        %v4144 = vsel %vm4080, %v884, 8
        %v4145 = vsel %vm4081, %v306, 8
        %v4146 = vsel %vm4082, %v878, 8
        %v4147 = vsel %vm4083, %v879, 8
        %v4148 = vsel %vm4084, %v880, 8
        %v4149 = vsel %vm4085, %v881, 8
        %v4150 = vsel %vm4086, %v882, 8
        %v4151 = vsel %vm4087, %v883, 8
        %v4152 = vsel %vm4088, %v884, 8
        %v4153 = vsel %vm4089, %v306, 8
        %v4154 = vsel %vm4090, %v878, 8
        %v4155 = vsel %vm4091, %v879, 8
        %v4156 = vsel %vm4092, %v880, 8
        %v4157 = vsel %vm4093, %v881, 8
        %v4158 = vsel %vm4094, %v882, 8
        %v4159 = vsel %vm4095, %v883, 8
        %v4160 = vsel %vm4096, %v884, 8
        %v4161 = vsel %vm4097, %v306, 8
        %v4162 = vsel %vm4098, %v878, 8
        %v4163 = vsel %vm4099, %v879, 8
        %v4164 = vsel %vm4100, %v880, 8
        %v4165 = vsel %vm4101, %v881, 8
        %v4166 = vsel %vm4102, %v882, 8
        %v4167 = vsel %vm4103, %v883, 8
        %v4168 = vsel %vm4104, %v884, 8
        %v4169 = vsel %vm4105, %v306, 8
        %v4170 = vsel %vm4106, %v878, 8
        %v4171 = vsel %vm4107, %v879, 8
        %v4172 = vsel %vm4108, %v880, 8
        %v4173 = vsel %vm4109, %v881, 8
        %v4174 = vsel %vm4110, %v882, 8
        %v4175 = vsel %vm4111, %v883, 8
        %v4176 = vsel %vm4112, %v884, 8
        %v4177 = vsel %vm685, %v4113, 2147483647
        %v4178 = vsel %vm685, %v4114, 2147483647
        %vm4179 = vcmp.lt.s32.totalorder %v4177, %v4178
        %v4180 = vsel %vm4179, %v4177, %v4178
        %v4181 = vsel %vm685, %v4115, 2147483647
        %vm4182 = vcmp.lt.s32.totalorder %v4180, %v4181
        %v4183 = vsel %vm4182, %v4180, %v4181
        %v4184 = vsel %vm685, %v4116, 2147483647
        %vm4185 = vcmp.lt.s32.totalorder %v4183, %v4184
        %v4186 = vsel %vm4185, %v4183, %v4184
        %v4187 = vsel %vm685, %v4117, 2147483647
        %vm4188 = vcmp.lt.s32.totalorder %v4186, %v4187
        %v4189 = vsel %vm4188, %v4186, %v4187
        %v4190 = vsel %vm685, %v4118, 2147483647
        %vm4191 = vcmp.lt.s32.totalorder %v4189, %v4190
        %v4192 = vsel %vm4191, %v4189, %v4190
        %v4193 = vsel %vm685, %v4119, 2147483647
        %vm4194 = vcmp.lt.s32.totalorder %v4192, %v4193
        %v4195 = vsel %vm4194, %v4192, %v4193
        %v4196 = vsel %vm685, %v4120, 2147483647
        %vm4197 = vcmp.lt.s32.totalorder %v4195, %v4196
        %v4198 = vsel %vm4197, %v4195, %v4196
        %v4199 = vsel %vm685, %v4121, 2147483647
        %v4200 = vsel %vm685, %v4122, 2147483647
        %vm4201 = vcmp.lt.s32.totalorder %v4199, %v4200
        %v4202 = vsel %vm4201, %v4199, %v4200
        %v4203 = vsel %vm685, %v4123, 2147483647
        %vm4204 = vcmp.lt.s32.totalorder %v4202, %v4203
        %v4205 = vsel %vm4204, %v4202, %v4203
        %v4206 = vsel %vm685, %v4124, 2147483647
        %vm4207 = vcmp.lt.s32.totalorder %v4205, %v4206
        %v4208 = vsel %vm4207, %v4205, %v4206
        %v4209 = vsel %vm685, %v4125, 2147483647
        %vm4210 = vcmp.lt.s32.totalorder %v4208, %v4209
        %v4211 = vsel %vm4210, %v4208, %v4209
        %v4212 = vsel %vm685, %v4126, 2147483647
        %vm4213 = vcmp.lt.s32.totalorder %v4211, %v4212
        %v4214 = vsel %vm4213, %v4211, %v4212
        %v4215 = vsel %vm685, %v4127, 2147483647
        %vm4216 = vcmp.lt.s32.totalorder %v4214, %v4215
        %v4217 = vsel %vm4216, %v4214, %v4215
        %v4218 = vsel %vm685, %v4128, 2147483647
        %vm4219 = vcmp.lt.s32.totalorder %v4217, %v4218
        %v4220 = vsel %vm4219, %v4217, %v4218
        %v4221 = vsel %vm685, %v4129, 2147483647
        %v4222 = vsel %vm685, %v4130, 2147483647
        %vm4223 = vcmp.lt.s32.totalorder %v4221, %v4222
        %v4224 = vsel %vm4223, %v4221, %v4222
        %v4225 = vsel %vm685, %v4131, 2147483647
        %vm4226 = vcmp.lt.s32.totalorder %v4224, %v4225
        %v4227 = vsel %vm4226, %v4224, %v4225
        %v4228 = vsel %vm685, %v4132, 2147483647
        %vm4229 = vcmp.lt.s32.totalorder %v4227, %v4228
        %v4230 = vsel %vm4229, %v4227, %v4228
        %v4231 = vsel %vm685, %v4133, 2147483647
        %vm4232 = vcmp.lt.s32.totalorder %v4230, %v4231
        %v4233 = vsel %vm4232, %v4230, %v4231
        %v4234 = vsel %vm685, %v4134, 2147483647
        %vm4235 = vcmp.lt.s32.totalorder %v4233, %v4234
        %v4236 = vsel %vm4235, %v4233, %v4234
        %v4237 = vsel %vm685, %v4135, 2147483647
        %vm4238 = vcmp.lt.s32.totalorder %v4236, %v4237
        %v4239 = vsel %vm4238, %v4236, %v4237
        %v4240 = vsel %vm685, %v4136, 2147483647
        %vm4241 = vcmp.lt.s32.totalorder %v4239, %v4240
        %v4242 = vsel %vm4241, %v4239, %v4240
        %v4243 = vsel %vm685, %v4137, 2147483647
        %v4244 = vsel %vm685, %v4138, 2147483647
        %vm4245 = vcmp.lt.s32.totalorder %v4243, %v4244
        %v4246 = vsel %vm4245, %v4243, %v4244
        %v4247 = vsel %vm685, %v4139, 2147483647
        %vm4248 = vcmp.lt.s32.totalorder %v4246, %v4247
        %v4249 = vsel %vm4248, %v4246, %v4247
        %v4250 = vsel %vm685, %v4140, 2147483647
        %vm4251 = vcmp.lt.s32.totalorder %v4249, %v4250
        %v4252 = vsel %vm4251, %v4249, %v4250
        %v4253 = vsel %vm685, %v4141, 2147483647
        %vm4254 = vcmp.lt.s32.totalorder %v4252, %v4253
        %v4255 = vsel %vm4254, %v4252, %v4253
        %v4256 = vsel %vm685, %v4142, 2147483647
        %vm4257 = vcmp.lt.s32.totalorder %v4255, %v4256
        %v4258 = vsel %vm4257, %v4255, %v4256
        %v4259 = vsel %vm685, %v4143, 2147483647
        %vm4260 = vcmp.lt.s32.totalorder %v4258, %v4259
        %v4261 = vsel %vm4260, %v4258, %v4259
        %v4262 = vsel %vm685, %v4144, 2147483647
        %vm4263 = vcmp.lt.s32.totalorder %v4261, %v4262
        %v4264 = vsel %vm4263, %v4261, %v4262
        %v4265 = vsel %vm685, %v4145, 2147483647
        %v4266 = vsel %vm685, %v4146, 2147483647
        %vm4267 = vcmp.lt.s32.totalorder %v4265, %v4266
        %v4268 = vsel %vm4267, %v4265, %v4266
        %v4269 = vsel %vm685, %v4147, 2147483647
        %vm4270 = vcmp.lt.s32.totalorder %v4268, %v4269
        %v4271 = vsel %vm4270, %v4268, %v4269
        %v4272 = vsel %vm685, %v4148, 2147483647
        %vm4273 = vcmp.lt.s32.totalorder %v4271, %v4272
        %v4274 = vsel %vm4273, %v4271, %v4272
        %v4275 = vsel %vm685, %v4149, 2147483647
        %vm4276 = vcmp.lt.s32.totalorder %v4274, %v4275
        %v4277 = vsel %vm4276, %v4274, %v4275
        %v4278 = vsel %vm685, %v4150, 2147483647
        %vm4279 = vcmp.lt.s32.totalorder %v4277, %v4278
        %v4280 = vsel %vm4279, %v4277, %v4278
        %v4281 = vsel %vm685, %v4151, 2147483647
        %vm4282 = vcmp.lt.s32.totalorder %v4280, %v4281
        %v4283 = vsel %vm4282, %v4280, %v4281
        %v4284 = vsel %vm685, %v4152, 2147483647
        %vm4285 = vcmp.lt.s32.totalorder %v4283, %v4284
        %v4286 = vsel %vm4285, %v4283, %v4284
        %v4287 = vsel %vm685, %v4153, 2147483647
        %v4288 = vsel %vm685, %v4154, 2147483647
        %vm4289 = vcmp.lt.s32.totalorder %v4287, %v4288
        %v4290 = vsel %vm4289, %v4287, %v4288
        %v4291 = vsel %vm685, %v4155, 2147483647
        %vm4292 = vcmp.lt.s32.totalorder %v4290, %v4291
        %v4293 = vsel %vm4292, %v4290, %v4291
        %v4294 = vsel %vm685, %v4156, 2147483647
        %vm4295 = vcmp.lt.s32.totalorder %v4293, %v4294
        %v4296 = vsel %vm4295, %v4293, %v4294
        %v4297 = vsel %vm685, %v4157, 2147483647
        %vm4298 = vcmp.lt.s32.totalorder %v4296, %v4297
        %v4299 = vsel %vm4298, %v4296, %v4297
        %v4300 = vsel %vm685, %v4158, 2147483647
        %vm4301 = vcmp.lt.s32.totalorder %v4299, %v4300
        %v4302 = vsel %vm4301, %v4299, %v4300
        %v4303 = vsel %vm685, %v4159, 2147483647
        %vm4304 = vcmp.lt.s32.totalorder %v4302, %v4303
        %v4305 = vsel %vm4304, %v4302, %v4303
        %v4306 = vsel %vm685, %v4160, 2147483647
        %vm4307 = vcmp.lt.s32.totalorder %v4305, %v4306
        %v4308 = vsel %vm4307, %v4305, %v4306
        %v4309 = vsel %vm685, %v4161, 2147483647
        %v4310 = vsel %vm685, %v4162, 2147483647
        %vm4311 = vcmp.lt.s32.totalorder %v4309, %v4310
        %v4312 = vsel %vm4311, %v4309, %v4310
        %v4313 = vsel %vm685, %v4163, 2147483647
        %vm4314 = vcmp.lt.s32.totalorder %v4312, %v4313
        %v4315 = vsel %vm4314, %v4312, %v4313
        %v4316 = vsel %vm685, %v4164, 2147483647
        %vm4317 = vcmp.lt.s32.totalorder %v4315, %v4316
        %v4318 = vsel %vm4317, %v4315, %v4316
        %v4319 = vsel %vm685, %v4165, 2147483647
        %vm4320 = vcmp.lt.s32.totalorder %v4318, %v4319
        %v4321 = vsel %vm4320, %v4318, %v4319
        %v4322 = vsel %vm685, %v4166, 2147483647
        %vm4323 = vcmp.lt.s32.totalorder %v4321, %v4322
        %v4324 = vsel %vm4323, %v4321, %v4322
        %v4325 = vsel %vm685, %v4167, 2147483647
        %vm4326 = vcmp.lt.s32.totalorder %v4324, %v4325
        %v4327 = vsel %vm4326, %v4324, %v4325
        %v4328 = vsel %vm685, %v4168, 2147483647
        %vm4329 = vcmp.lt.s32.totalorder %v4327, %v4328
        %v4330 = vsel %vm4329, %v4327, %v4328
        %v4331 = vsel %vm685, %v4169, 2147483647
        %v4332 = vsel %vm685, %v4170, 2147483647
        %vm4333 = vcmp.lt.s32.totalorder %v4331, %v4332
        %v4334 = vsel %vm4333, %v4331, %v4332
        %v4335 = vsel %vm685, %v4171, 2147483647
        %vm4336 = vcmp.lt.s32.totalorder %v4334, %v4335
        %v4337 = vsel %vm4336, %v4334, %v4335
        %v4338 = vsel %vm685, %v4172, 2147483647
        %vm4339 = vcmp.lt.s32.totalorder %v4337, %v4338
        %v4340 = vsel %vm4339, %v4337, %v4338
        %v4341 = vsel %vm685, %v4173, 2147483647
        %vm4342 = vcmp.lt.s32.totalorder %v4340, %v4341
        %v4343 = vsel %vm4342, %v4340, %v4341
        %v4344 = vsel %vm685, %v4174, 2147483647
        %vm4345 = vcmp.lt.s32.totalorder %v4343, %v4344
        %v4346 = vsel %vm4345, %v4343, %v4344
        %v4347 = vsel %vm685, %v4175, 2147483647
        %vm4348 = vcmp.lt.s32.totalorder %v4346, %v4347
        %v4349 = vsel %vm4348, %v4346, %v4347
        %v4350 = vsel %vm685, %v4176, 2147483647
        %vm4351 = vcmp.lt.s32.totalorder %v4349, %v4350
        %v4352 = vsel %vm4351, %v4349, %v4350
        %v4353 = vrot.slane %v4220, 7
        %v4354 = vsel %vm453, %v4353, %v4198
        %v4355 = vrot.slane %v4242, 6
        %v4356 = vsel %vm455, %v4355, %v4354
        %v4357 = vrot.slane %v4264, 5
        %v4358 = vsel %vm457, %v4357, %v4356
        %v4359 = vrot.slane %v4286, 4
        %v4360 = vsel %vm459, %v4359, %v4358
        %v4361 = vrot.slane %v4308, 3
        %v4362 = vsel %vm461, %v4361, %v4360
        %v4363 = vrot.slane %v4330, 2
        %v4364 = vsel %vm463, %v4363, %v4362
        %v4365 = vrot.slane %v4352, 1
        %v4366 = vsel %vm465, %v4365, %v4364
        %s4367 = scalar_lea.vmem [#allocation2], 56
        %4368 = vst [vmem:[%s4367] sm:$0xff] %v4366
        %s4369 = scalar_lea.vmem %s218, 56 [#allocation3]
        %v4370 = vld [vmem:[%s4369] sm:$0xff]
        %v4372 = vrot.slane %v4370, 1
        %v4373 = vrot.slane %v4370, 2
        %v4374 = vrot.slane %v4370, 3
        %v4375 = vrot.slane %v4370, 4
        %v4376 = vrot.slane %v4370, 5
        %v4377 = vrot.slane %v4370, 6
        %v4378 = vrot.slane %v4370, 7
        %v4387 = vadd.f32 %v3935, %v4370
        %v4388 = vadd.f32 %v3950, %v4372
        %v4389 = vadd.f32 %v3965, %v4373
        %v4390 = vadd.f32 %v3980, %v4374
        %v4391 = vadd.f32 %v3995, %v4375
        %v4392 = vadd.f32 %v4010, %v4376
        %v4393 = vadd.f32 %v4025, %v4377
        %v4394 = vadd.f32 %v4040, %v4378
        %v4395 = vadd.f32 %v4387, %v255
        %v4396 = vadd.f32 %v4388, %v501
        %v4397 = vadd.f32 %v4389, %v502
        %v4398 = vadd.f32 %v4390, %v503
        %v4399 = vadd.f32 %v4391, %v504
        %v4400 = vadd.f32 %v4392, %v505
        %v4401 = vadd.f32 %v4393, %v506
        %v4402 = vadd.f32 %v4394, %v507
        %v4403 = vadd.f32 %v4387, %v262
        %v4404 = vadd.f32 %v4388, %v508
        %v4405 = vadd.f32 %v4389, %v509
        %v4406 = vadd.f32 %v4390, %v510
        %v4407 = vadd.f32 %v4391, %v511
        %v4408 = vadd.f32 %v4392, %v512
        %v4409 = vadd.f32 %v4393, %v513
        %v4410 = vadd.f32 %v4394, %v514
        %v4411 = vadd.f32 %v4387, %v269
        %v4412 = vadd.f32 %v4388, %v515
        %v4413 = vadd.f32 %v4389, %v516
        %v4414 = vadd.f32 %v4390, %v517
        %v4415 = vadd.f32 %v4391, %v518
        %v4416 = vadd.f32 %v4392, %v519
        %v4417 = vadd.f32 %v4393, %v520
        %v4418 = vadd.f32 %v4394, %v521
        %v4419 = vadd.f32 %v4387, %v276
        %v4420 = vadd.f32 %v4388, %v522
        %v4421 = vadd.f32 %v4389, %v523
        %v4422 = vadd.f32 %v4390, %v524
        %v4423 = vadd.f32 %v4391, %v525
        %v4424 = vadd.f32 %v4392, %v526
        %v4425 = vadd.f32 %v4393, %v527
        %v4426 = vadd.f32 %v4394, %v528
        %v4427 = vadd.f32 %v4387, %v283
        %v4428 = vadd.f32 %v4388, %v529
        %v4429 = vadd.f32 %v4389, %v530
        %v4430 = vadd.f32 %v4390, %v531
        %v4431 = vadd.f32 %v4391, %v532
        %v4432 = vadd.f32 %v4392, %v533
        %v4433 = vadd.f32 %v4393, %v534
        %v4434 = vadd.f32 %v4394, %v535
        %v4435 = vadd.f32 %v4387, %v290
        %v4436 = vadd.f32 %v4388, %v536
        %v4437 = vadd.f32 %v4389, %v537
        %v4438 = vadd.f32 %v4390, %v538
        %v4439 = vadd.f32 %v4391, %v539
        %v4440 = vadd.f32 %v4392, %v540
        %v4441 = vadd.f32 %v4393, %v541
        %v4442 = vadd.f32 %v4394, %v542
        %v4443 = vadd.f32 %v4387, %v297
        %v4444 = vadd.f32 %v4388, %v543
        %v4445 = vadd.f32 %v4389, %v544
        %v4446 = vadd.f32 %v4390, %v545
        %v4447 = vadd.f32 %v4391, %v546
        %v4448 = vadd.f32 %v4392, %v547
        %v4449 = vadd.f32 %v4393, %v548
        %v4450 = vadd.f32 %v4394, %v549
        %v4451 = vadd.f32 %v4387, %v304
        %v4452 = vadd.f32 %v4388, %v550
        %v4453 = vadd.f32 %v4389, %v551
        %v4454 = vadd.f32 %v4390, %v552
        %v4455 = vadd.f32 %v4391, %v553
        %v4456 = vadd.f32 %v4392, %v554
        %v4457 = vadd.f32 %v4393, %v555
        %v4458 = vadd.f32 %v4394, %v556
        %v4459 = vsel %vm685, %v4395, -inf
        %v4460 = vsel %vm685, %v4396, -inf
        %v4461 = vmax.f32 %v4459, %v4460
        %v4462 = vsel %vm685, %v4397, -inf
        %v4463 = vmax.f32 %v4461, %v4462
        %v4464 = vsel %vm685, %v4398, -inf
        %v4465 = vmax.f32 %v4463, %v4464
        %v4466 = vsel %vm685, %v4399, -inf
        %v4467 = vmax.f32 %v4465, %v4466
        %v4468 = vsel %vm685, %v4400, -inf
        %v4469 = vmax.f32 %v4467, %v4468
        %v4470 = vsel %vm685, %v4401, -inf
        %v4471 = vmax.f32 %v4469, %v4470
        %v4472 = vsel %vm685, %v4402, -inf
        %v4473 = vmax.f32 %v4471, %v4472
        %v4474 = vsel %vm685, %v4403, -inf
        %v4475 = vsel %vm685, %v4404, -inf
        %v4476 = vmax.f32 %v4474, %v4475
        %v4477 = vsel %vm685, %v4405, -inf
        %v4478 = vmax.f32 %v4476, %v4477
        %v4479 = vsel %vm685, %v4406, -inf
        %v4480 = vmax.f32 %v4478, %v4479
        %v4481 = vsel %vm685, %v4407, -inf
        %v4482 = vmax.f32 %v4480, %v4481
        %v4483 = vsel %vm685, %v4408, -inf
        %v4484 = vmax.f32 %v4482, %v4483
        %v4485 = vsel %vm685, %v4409, -inf
        %v4486 = vmax.f32 %v4484, %v4485
        %v4487 = vsel %vm685, %v4410, -inf
        %v4488 = vmax.f32 %v4486, %v4487
        %v4489 = vsel %vm685, %v4411, -inf
        %v4490 = vsel %vm685, %v4412, -inf
        %v4491 = vmax.f32 %v4489, %v4490
        %v4492 = vsel %vm685, %v4413, -inf
        %v4493 = vmax.f32 %v4491, %v4492
        %v4494 = vsel %vm685, %v4414, -inf
        %v4495 = vmax.f32 %v4493, %v4494
        %v4496 = vsel %vm685, %v4415, -inf
        %v4497 = vmax.f32 %v4495, %v4496
        %v4498 = vsel %vm685, %v4416, -inf
        %v4499 = vmax.f32 %v4497, %v4498
        %v4500 = vsel %vm685, %v4417, -inf
        %v4501 = vmax.f32 %v4499, %v4500
        %v4502 = vsel %vm685, %v4418, -inf
        %v4503 = vmax.f32 %v4501, %v4502
        %v4504 = vsel %vm685, %v4419, -inf
        %v4505 = vsel %vm685, %v4420, -inf
        %v4506 = vmax.f32 %v4504, %v4505
        %v4507 = vsel %vm685, %v4421, -inf
        %v4508 = vmax.f32 %v4506, %v4507
        %v4509 = vsel %vm685, %v4422, -inf
        %v4510 = vmax.f32 %v4508, %v4509
        %v4511 = vsel %vm685, %v4423, -inf
        %v4512 = vmax.f32 %v4510, %v4511
        %v4513 = vsel %vm685, %v4424, -inf
        %v4514 = vmax.f32 %v4512, %v4513
        %v4515 = vsel %vm685, %v4425, -inf
        %v4516 = vmax.f32 %v4514, %v4515
        %v4517 = vsel %vm685, %v4426, -inf
        %v4518 = vmax.f32 %v4516, %v4517
        %v4519 = vsel %vm685, %v4427, -inf
        %v4520 = vsel %vm685, %v4428, -inf
        %v4521 = vmax.f32 %v4519, %v4520
        %v4522 = vsel %vm685, %v4429, -inf
        %v4523 = vmax.f32 %v4521, %v4522
        %v4524 = vsel %vm685, %v4430, -inf
        %v4525 = vmax.f32 %v4523, %v4524
        %v4526 = vsel %vm685, %v4431, -inf
        %v4527 = vmax.f32 %v4525, %v4526
        %v4528 = vsel %vm685, %v4432, -inf
        %v4529 = vmax.f32 %v4527, %v4528
        %v4530 = vsel %vm685, %v4433, -inf
        %v4531 = vmax.f32 %v4529, %v4530
        %v4532 = vsel %vm685, %v4434, -inf
        %v4533 = vmax.f32 %v4531, %v4532
        %v4534 = vsel %vm685, %v4435, -inf
        %v4535 = vsel %vm685, %v4436, -inf
        %v4536 = vmax.f32 %v4534, %v4535
        %v4537 = vsel %vm685, %v4437, -inf
        %v4538 = vmax.f32 %v4536, %v4537
        %v4539 = vsel %vm685, %v4438, -inf
        %v4540 = vmax.f32 %v4538, %v4539
        %v4541 = vsel %vm685, %v4439, -inf
        %v4542 = vmax.f32 %v4540, %v4541
        %v4543 = vsel %vm685, %v4440, -inf
        %v4544 = vmax.f32 %v4542, %v4543
        %v4545 = vsel %vm685, %v4441, -inf
        %v4546 = vmax.f32 %v4544, %v4545
        %v4547 = vsel %vm685, %v4442, -inf
        %v4548 = vmax.f32 %v4546, %v4547
        %v4549 = vsel %vm685, %v4443, -inf
        %v4550 = vsel %vm685, %v4444, -inf
        %v4551 = vmax.f32 %v4549, %v4550
        %v4552 = vsel %vm685, %v4445, -inf
        %v4553 = vmax.f32 %v4551, %v4552
        %v4554 = vsel %vm685, %v4446, -inf
        %v4555 = vmax.f32 %v4553, %v4554
        %v4556 = vsel %vm685, %v4447, -inf
        %v4557 = vmax.f32 %v4555, %v4556
        %v4558 = vsel %vm685, %v4448, -inf
        %v4559 = vmax.f32 %v4557, %v4558
        %v4560 = vsel %vm685, %v4449, -inf
        %v4561 = vmax.f32 %v4559, %v4560
        %v4562 = vsel %vm685, %v4450, -inf
        %v4563 = vmax.f32 %v4561, %v4562
        %v4564 = vsel %vm685, %v4451, -inf
        %v4565 = vsel %vm685, %v4452, -inf
        %v4566 = vmax.f32 %v4564, %v4565
        %v4567 = vsel %vm685, %v4453, -inf
        %v4568 = vmax.f32 %v4566, %v4567
        %v4569 = vsel %vm685, %v4454, -inf
        %v4570 = vmax.f32 %v4568, %v4569
        %v4571 = vsel %vm685, %v4455, -inf
        %v4572 = vmax.f32 %v4570, %v4571
        %v4573 = vsel %vm685, %v4456, -inf
        %v4574 = vmax.f32 %v4572, %v4573
        %v4575 = vsel %vm685, %v4457, -inf
        %v4576 = vmax.f32 %v4574, %v4575
        %v4577 = vsel %vm685, %v4458, -inf
        %v4578 = vmax.f32 %v4576, %v4577
        %v4579 = vperm.slane %v4473, 0
        %v4580 = vperm.slane %v4488, 0
        %v4581 = vperm.slane %v4503, 0
        %v4582 = vperm.slane %v4518, 0
        %v4583 = vperm.slane %v4533, 0
        %v4584 = vperm.slane %v4548, 0
        %v4585 = vperm.slane %v4563, 0
        %v4586 = vperm.slane %v4578, 0
        %vm4587 = vcmp.eq.f32.partialorder %v4395, %v4579
        %vm4588 = vcmp.eq.f32.partialorder %v4396, %v4579
        %vm4589 = vcmp.eq.f32.partialorder %v4397, %v4579
        %vm4590 = vcmp.eq.f32.partialorder %v4398, %v4579
        %vm4591 = vcmp.eq.f32.partialorder %v4399, %v4579
        %vm4592 = vcmp.eq.f32.partialorder %v4400, %v4579
        %vm4593 = vcmp.eq.f32.partialorder %v4401, %v4579
        %vm4594 = vcmp.eq.f32.partialorder %v4402, %v4579
        %vm4595 = vcmp.eq.f32.partialorder %v4403, %v4580
        %vm4596 = vcmp.eq.f32.partialorder %v4404, %v4580
        %vm4597 = vcmp.eq.f32.partialorder %v4405, %v4580
        %vm4598 = vcmp.eq.f32.partialorder %v4406, %v4580
        %vm4599 = vcmp.eq.f32.partialorder %v4407, %v4580
        %vm4600 = vcmp.eq.f32.partialorder %v4408, %v4580
        %vm4601 = vcmp.eq.f32.partialorder %v4409, %v4580
        %vm4602 = vcmp.eq.f32.partialorder %v4410, %v4580
        %vm4603 = vcmp.eq.f32.partialorder %v4411, %v4581
        %vm4604 = vcmp.eq.f32.partialorder %v4412, %v4581
        %vm4605 = vcmp.eq.f32.partialorder %v4413, %v4581
        %vm4606 = vcmp.eq.f32.partialorder %v4414, %v4581
        %vm4607 = vcmp.eq.f32.partialorder %v4415, %v4581
        %vm4608 = vcmp.eq.f32.partialorder %v4416, %v4581
        %vm4609 = vcmp.eq.f32.partialorder %v4417, %v4581
        %vm4610 = vcmp.eq.f32.partialorder %v4418, %v4581
        %vm4611 = vcmp.eq.f32.partialorder %v4419, %v4582
        %vm4612 = vcmp.eq.f32.partialorder %v4420, %v4582
        %vm4613 = vcmp.eq.f32.partialorder %v4421, %v4582
        %vm4614 = vcmp.eq.f32.partialorder %v4422, %v4582
        %vm4615 = vcmp.eq.f32.partialorder %v4423, %v4582
        %vm4616 = vcmp.eq.f32.partialorder %v4424, %v4582
        %vm4617 = vcmp.eq.f32.partialorder %v4425, %v4582
        %vm4618 = vcmp.eq.f32.partialorder %v4426, %v4582
        %vm4619 = vcmp.eq.f32.partialorder %v4427, %v4583
        %vm4620 = vcmp.eq.f32.partialorder %v4428, %v4583
        %vm4621 = vcmp.eq.f32.partialorder %v4429, %v4583
        %vm4622 = vcmp.eq.f32.partialorder %v4430, %v4583
        %vm4623 = vcmp.eq.f32.partialorder %v4431, %v4583
        %vm4624 = vcmp.eq.f32.partialorder %v4432, %v4583
        %vm4625 = vcmp.eq.f32.partialorder %v4433, %v4583
        %vm4626 = vcmp.eq.f32.partialorder %v4434, %v4583
        %vm4627 = vcmp.eq.f32.partialorder %v4435, %v4584
        %vm4628 = vcmp.eq.f32.partialorder %v4436, %v4584
        %vm4629 = vcmp.eq.f32.partialorder %v4437, %v4584
        %vm4630 = vcmp.eq.f32.partialorder %v4438, %v4584
        %vm4631 = vcmp.eq.f32.partialorder %v4439, %v4584
        %vm4632 = vcmp.eq.f32.partialorder %v4440, %v4584
        %vm4633 = vcmp.eq.f32.partialorder %v4441, %v4584
        %vm4634 = vcmp.eq.f32.partialorder %v4442, %v4584
        %vm4635 = vcmp.eq.f32.partialorder %v4443, %v4585
        %vm4636 = vcmp.eq.f32.partialorder %v4444, %v4585
        %vm4637 = vcmp.eq.f32.partialorder %v4445, %v4585
        %vm4638 = vcmp.eq.f32.partialorder %v4446, %v4585
        %vm4639 = vcmp.eq.f32.partialorder %v4447, %v4585
        %vm4640 = vcmp.eq.f32.partialorder %v4448, %v4585
        %vm4641 = vcmp.eq.f32.partialorder %v4449, %v4585
        %vm4642 = vcmp.eq.f32.partialorder %v4450, %v4585
        %vm4643 = vcmp.eq.f32.partialorder %v4451, %v4586
        %vm4644 = vcmp.eq.f32.partialorder %v4452, %v4586
        %vm4645 = vcmp.eq.f32.partialorder %v4453, %v4586
        %vm4646 = vcmp.eq.f32.partialorder %v4454, %v4586
        %vm4647 = vcmp.eq.f32.partialorder %v4455, %v4586
        %vm4648 = vcmp.eq.f32.partialorder %v4456, %v4586
        %vm4649 = vcmp.eq.f32.partialorder %v4457, %v4586
        %vm4650 = vcmp.eq.f32.partialorder %v4458, %v4586
        %v4651 = vsel %vm4587, %v306, 8
        %v4652 = vsel %vm4588, %v878, 8
        %v4653 = vsel %vm4589, %v879, 8
        %v4654 = vsel %vm4590, %v880, 8
        %v4655 = vsel %vm4591, %v881, 8
        %v4656 = vsel %vm4592, %v882, 8
        %v4657 = vsel %vm4593, %v883, 8
        %v4658 = vsel %vm4594, %v884, 8
        %v4659 = vsel %vm4595, %v306, 8
        %v4660 = vsel %vm4596, %v878, 8
        %v4661 = vsel %vm4597, %v879, 8
        %v4662 = vsel %vm4598, %v880, 8
        %v4663 = vsel %vm4599, %v881, 8
        %v4664 = vsel %vm4600, %v882, 8
        %v4665 = vsel %vm4601, %v883, 8
        %v4666 = vsel %vm4602, %v884, 8
        %v4667 = vsel %vm4603, %v306, 8
        %v4668 = vsel %vm4604, %v878, 8
        %v4669 = vsel %vm4605, %v879, 8
        %v4670 = vsel %vm4606, %v880, 8
        %v4671 = vsel %vm4607, %v881, 8
        %v4672 = vsel %vm4608, %v882, 8
        %v4673 = vsel %vm4609, %v883, 8
        %v4674 = vsel %vm4610, %v884, 8
        %v4675 = vsel %vm4611, %v306, 8
        %v4676 = vsel %vm4612, %v878, 8
        %v4677 = vsel %vm4613, %v879, 8
        %v4678 = vsel %vm4614, %v880, 8
        %v4679 = vsel %vm4615, %v881, 8
        %v4680 = vsel %vm4616, %v882, 8
        %v4681 = vsel %vm4617, %v883, 8
        %v4682 = vsel %vm4618, %v884, 8
        %v4683 = vsel %vm4619, %v306, 8
        %v4684 = vsel %vm4620, %v878, 8
        %v4685 = vsel %vm4621, %v879, 8
        %v4686 = vsel %vm4622, %v880, 8
        %v4687 = vsel %vm4623, %v881, 8
        %v4688 = vsel %vm4624, %v882, 8
        %v4689 = vsel %vm4625, %v883, 8
        %v4690 = vsel %vm4626, %v884, 8
        %v4691 = vsel %vm4627, %v306, 8
        %v4692 = vsel %vm4628, %v878, 8
        %v4693 = vsel %vm4629, %v879, 8
        %v4694 = vsel %vm4630, %v880, 8
        %v4695 = vsel %vm4631, %v881, 8
        %v4696 = vsel %vm4632, %v882, 8
        %v4697 = vsel %vm4633, %v883, 8
        %v4698 = vsel %vm4634, %v884, 8
        %v4699 = vsel %vm4635, %v306, 8
        %v4700 = vsel %vm4636, %v878, 8
        %v4701 = vsel %vm4637, %v879, 8
        %v4702 = vsel %vm4638, %v880, 8
        %v4703 = vsel %vm4639, %v881, 8
        %v4704 = vsel %vm4640, %v882, 8
        %v4705 = vsel %vm4641, %v883, 8
        %v4706 = vsel %vm4642, %v884, 8
        %v4707 = vsel %vm4643, %v306, 8
        %v4708 = vsel %vm4644, %v878, 8
        %v4709 = vsel %vm4645, %v879, 8
        %v4710 = vsel %vm4646, %v880, 8
        %v4711 = vsel %vm4647, %v881, 8
        %v4712 = vsel %vm4648, %v882, 8
        %v4713 = vsel %vm4649, %v883, 8
        %v4714 = vsel %vm4650, %v884, 8
        %v4715 = vsel %vm685, %v4651, 2147483647
        %v4716 = vsel %vm685, %v4652, 2147483647
        %vm4717 = vcmp.lt.s32.totalorder %v4715, %v4716
        %v4718 = vsel %vm4717, %v4715, %v4716
        %v4719 = vsel %vm685, %v4653, 2147483647
        %vm4720 = vcmp.lt.s32.totalorder %v4718, %v4719
        %v4721 = vsel %vm4720, %v4718, %v4719
        %v4722 = vsel %vm685, %v4654, 2147483647
        %vm4723 = vcmp.lt.s32.totalorder %v4721, %v4722
        %v4724 = vsel %vm4723, %v4721, %v4722
        %v4725 = vsel %vm685, %v4655, 2147483647
        %vm4726 = vcmp.lt.s32.totalorder %v4724, %v4725
        %v4727 = vsel %vm4726, %v4724, %v4725
        %v4728 = vsel %vm685, %v4656, 2147483647
        %vm4729 = vcmp.lt.s32.totalorder %v4727, %v4728
        %v4730 = vsel %vm4729, %v4727, %v4728
        %v4731 = vsel %vm685, %v4657, 2147483647
        %vm4732 = vcmp.lt.s32.totalorder %v4730, %v4731
        %v4733 = vsel %vm4732, %v4730, %v4731
        %v4734 = vsel %vm685, %v4658, 2147483647
        %vm4735 = vcmp.lt.s32.totalorder %v4733, %v4734
        %v4736 = vsel %vm4735, %v4733, %v4734
        %v4737 = vsel %vm685, %v4659, 2147483647
        %v4738 = vsel %vm685, %v4660, 2147483647
        %vm4739 = vcmp.lt.s32.totalorder %v4737, %v4738
        %v4740 = vsel %vm4739, %v4737, %v4738
        %v4741 = vsel %vm685, %v4661, 2147483647
        %vm4742 = vcmp.lt.s32.totalorder %v4740, %v4741
        %v4743 = vsel %vm4742, %v4740, %v4741
        %v4744 = vsel %vm685, %v4662, 2147483647
        %vm4745 = vcmp.lt.s32.totalorder %v4743, %v4744
        %v4746 = vsel %vm4745, %v4743, %v4744
        %v4747 = vsel %vm685, %v4663, 2147483647
        %vm4748 = vcmp.lt.s32.totalorder %v4746, %v4747
        %v4749 = vsel %vm4748, %v4746, %v4747
        %v4750 = vsel %vm685, %v4664, 2147483647
        %vm4751 = vcmp.lt.s32.totalorder %v4749, %v4750
        %v4752 = vsel %vm4751, %v4749, %v4750
        %v4753 = vsel %vm685, %v4665, 2147483647
        %vm4754 = vcmp.lt.s32.totalorder %v4752, %v4753
        %v4755 = vsel %vm4754, %v4752, %v4753
        %v4756 = vsel %vm685, %v4666, 2147483647
        %vm4757 = vcmp.lt.s32.totalorder %v4755, %v4756
        %v4758 = vsel %vm4757, %v4755, %v4756
        %v4759 = vsel %vm685, %v4667, 2147483647
        %v4760 = vsel %vm685, %v4668, 2147483647
        %vm4761 = vcmp.lt.s32.totalorder %v4759, %v4760
        %v4762 = vsel %vm4761, %v4759, %v4760
        %v4763 = vsel %vm685, %v4669, 2147483647
        %vm4764 = vcmp.lt.s32.totalorder %v4762, %v4763
        %v4765 = vsel %vm4764, %v4762, %v4763
        %v4766 = vsel %vm685, %v4670, 2147483647
        %vm4767 = vcmp.lt.s32.totalorder %v4765, %v4766
        %v4768 = vsel %vm4767, %v4765, %v4766
        %v4769 = vsel %vm685, %v4671, 2147483647
        %vm4770 = vcmp.lt.s32.totalorder %v4768, %v4769
        %v4771 = vsel %vm4770, %v4768, %v4769
        %v4772 = vsel %vm685, %v4672, 2147483647
        %vm4773 = vcmp.lt.s32.totalorder %v4771, %v4772
        %v4774 = vsel %vm4773, %v4771, %v4772
        %v4775 = vsel %vm685, %v4673, 2147483647
        %vm4776 = vcmp.lt.s32.totalorder %v4774, %v4775
        %v4777 = vsel %vm4776, %v4774, %v4775
        %v4778 = vsel %vm685, %v4674, 2147483647
        %vm4779 = vcmp.lt.s32.totalorder %v4777, %v4778
        %v4780 = vsel %vm4779, %v4777, %v4778
        %v4781 = vsel %vm685, %v4675, 2147483647
        %v4782 = vsel %vm685, %v4676, 2147483647
        %vm4783 = vcmp.lt.s32.totalorder %v4781, %v4782
        %v4784 = vsel %vm4783, %v4781, %v4782
        %v4785 = vsel %vm685, %v4677, 2147483647
        %vm4786 = vcmp.lt.s32.totalorder %v4784, %v4785
        %v4787 = vsel %vm4786, %v4784, %v4785
        %v4788 = vsel %vm685, %v4678, 2147483647
        %vm4789 = vcmp.lt.s32.totalorder %v4787, %v4788
        %v4790 = vsel %vm4789, %v4787, %v4788
        %v4791 = vsel %vm685, %v4679, 2147483647
        %vm4792 = vcmp.lt.s32.totalorder %v4790, %v4791
        %v4793 = vsel %vm4792, %v4790, %v4791
        %v4794 = vsel %vm685, %v4680, 2147483647
        %vm4795 = vcmp.lt.s32.totalorder %v4793, %v4794
        %v4796 = vsel %vm4795, %v4793, %v4794
        %v4797 = vsel %vm685, %v4681, 2147483647
        %vm4798 = vcmp.lt.s32.totalorder %v4796, %v4797
        %v4799 = vsel %vm4798, %v4796, %v4797
        %v4800 = vsel %vm685, %v4682, 2147483647
        %vm4801 = vcmp.lt.s32.totalorder %v4799, %v4800
        %v4802 = vsel %vm4801, %v4799, %v4800
        %v4803 = vsel %vm685, %v4683, 2147483647
        %v4804 = vsel %vm685, %v4684, 2147483647
        %vm4805 = vcmp.lt.s32.totalorder %v4803, %v4804
        %v4806 = vsel %vm4805, %v4803, %v4804
        %v4807 = vsel %vm685, %v4685, 2147483647
        %vm4808 = vcmp.lt.s32.totalorder %v4806, %v4807
        %v4809 = vsel %vm4808, %v4806, %v4807
        %v4810 = vsel %vm685, %v4686, 2147483647
        %vm4811 = vcmp.lt.s32.totalorder %v4809, %v4810
        %v4812 = vsel %vm4811, %v4809, %v4810
        %v4813 = vsel %vm685, %v4687, 2147483647
        %vm4814 = vcmp.lt.s32.totalorder %v4812, %v4813
        %v4815 = vsel %vm4814, %v4812, %v4813
        %v4816 = vsel %vm685, %v4688, 2147483647
        %vm4817 = vcmp.lt.s32.totalorder %v4815, %v4816
        %v4818 = vsel %vm4817, %v4815, %v4816
        %v4819 = vsel %vm685, %v4689, 2147483647
        %vm4820 = vcmp.lt.s32.totalorder %v4818, %v4819
        %v4821 = vsel %vm4820, %v4818, %v4819
        %v4822 = vsel %vm685, %v4690, 2147483647
        %vm4823 = vcmp.lt.s32.totalorder %v4821, %v4822
        %v4824 = vsel %vm4823, %v4821, %v4822
        %v4825 = vsel %vm685, %v4691, 2147483647
        %v4826 = vsel %vm685, %v4692, 2147483647
        %vm4827 = vcmp.lt.s32.totalorder %v4825, %v4826
        %v4828 = vsel %vm4827, %v4825, %v4826
        %v4829 = vsel %vm685, %v4693, 2147483647
        %vm4830 = vcmp.lt.s32.totalorder %v4828, %v4829
        %v4831 = vsel %vm4830, %v4828, %v4829
        %v4832 = vsel %vm685, %v4694, 2147483647
        %vm4833 = vcmp.lt.s32.totalorder %v4831, %v4832
        %v4834 = vsel %vm4833, %v4831, %v4832
        %v4835 = vsel %vm685, %v4695, 2147483647
        %vm4836 = vcmp.lt.s32.totalorder %v4834, %v4835
        %v4837 = vsel %vm4836, %v4834, %v4835
        %v4838 = vsel %vm685, %v4696, 2147483647
        %vm4839 = vcmp.lt.s32.totalorder %v4837, %v4838
        %v4840 = vsel %vm4839, %v4837, %v4838
        %v4841 = vsel %vm685, %v4697, 2147483647
        %vm4842 = vcmp.lt.s32.totalorder %v4840, %v4841
        %v4843 = vsel %vm4842, %v4840, %v4841
        %v4844 = vsel %vm685, %v4698, 2147483647
        %vm4845 = vcmp.lt.s32.totalorder %v4843, %v4844
        %v4846 = vsel %vm4845, %v4843, %v4844
        %v4847 = vsel %vm685, %v4699, 2147483647
        %v4848 = vsel %vm685, %v4700, 2147483647
        %vm4849 = vcmp.lt.s32.totalorder %v4847, %v4848
        %v4850 = vsel %vm4849, %v4847, %v4848
        %v4851 = vsel %vm685, %v4701, 2147483647
        %vm4852 = vcmp.lt.s32.totalorder %v4850, %v4851
        %v4853 = vsel %vm4852, %v4850, %v4851
        %v4854 = vsel %vm685, %v4702, 2147483647
        %vm4855 = vcmp.lt.s32.totalorder %v4853, %v4854
        %v4856 = vsel %vm4855, %v4853, %v4854
        %v4857 = vsel %vm685, %v4703, 2147483647
        %vm4858 = vcmp.lt.s32.totalorder %v4856, %v4857
        %v4859 = vsel %vm4858, %v4856, %v4857
        %v4860 = vsel %vm685, %v4704, 2147483647
        %vm4861 = vcmp.lt.s32.totalorder %v4859, %v4860
        %v4862 = vsel %vm4861, %v4859, %v4860
        %v4863 = vsel %vm685, %v4705, 2147483647
        %vm4864 = vcmp.lt.s32.totalorder %v4862, %v4863
        %v4865 = vsel %vm4864, %v4862, %v4863
        %v4866 = vsel %vm685, %v4706, 2147483647
        %vm4867 = vcmp.lt.s32.totalorder %v4865, %v4866
        %v4868 = vsel %vm4867, %v4865, %v4866
        %v4869 = vsel %vm685, %v4707, 2147483647
        %v4870 = vsel %vm685, %v4708, 2147483647
        %vm4871 = vcmp.lt.s32.totalorder %v4869, %v4870
        %v4872 = vsel %vm4871, %v4869, %v4870
        %v4873 = vsel %vm685, %v4709, 2147483647
        %vm4874 = vcmp.lt.s32.totalorder %v4872, %v4873
        %v4875 = vsel %vm4874, %v4872, %v4873
        %v4876 = vsel %vm685, %v4710, 2147483647
        %vm4877 = vcmp.lt.s32.totalorder %v4875, %v4876
        %v4878 = vsel %vm4877, %v4875, %v4876
        %v4879 = vsel %vm685, %v4711, 2147483647
        %vm4880 = vcmp.lt.s32.totalorder %v4878, %v4879
        %v4881 = vsel %vm4880, %v4878, %v4879
        %v4882 = vsel %vm685, %v4712, 2147483647
        %vm4883 = vcmp.lt.s32.totalorder %v4881, %v4882
        %v4884 = vsel %vm4883, %v4881, %v4882
        %v4885 = vsel %vm685, %v4713, 2147483647
        %vm4886 = vcmp.lt.s32.totalorder %v4884, %v4885
        %v4887 = vsel %vm4886, %v4884, %v4885
        %v4888 = vsel %vm685, %v4714, 2147483647
        %vm4889 = vcmp.lt.s32.totalorder %v4887, %v4888
        %v4890 = vsel %vm4889, %v4887, %v4888
        %v4891 = vrot.slane %v4758, 7
        %v4892 = vsel %vm453, %v4891, %v4736
        %v4893 = vrot.slane %v4780, 6
        %v4894 = vsel %vm455, %v4893, %v4892
        %v4895 = vrot.slane %v4802, 5
        %v4896 = vsel %vm457, %v4895, %v4894
        %v4897 = vrot.slane %v4824, 4
        %v4898 = vsel %vm459, %v4897, %v4896
        %v4899 = vrot.slane %v4846, 3
        %v4900 = vsel %vm461, %v4899, %v4898
        %v4901 = vrot.slane %v4868, 2
        %v4902 = vsel %vm463, %v4901, %v4900
        %v4903 = vrot.slane %v4890, 1
        %v4904 = vsel %vm465, %v4903, %v4902
        %s4905 = scalar_lea.vmem [#allocation2], 64
        %4906 = vst [vmem:[%s4905] sm:$0xff] %v4904
        %s4907 = scalar_lea.vmem %s218, 64 [#allocation3]
        %v4908 = vld [vmem:[%s4907] sm:$0xff]
        %v4910 = vrot.slane %v4908, 1
        %v4911 = vrot.slane %v4908, 2
        %v4912 = vrot.slane %v4908, 3
        %v4913 = vrot.slane %v4908, 4
        %v4914 = vrot.slane %v4908, 5
        %v4915 = vrot.slane %v4908, 6
        %v4916 = vrot.slane %v4908, 7
        %v4925 = vadd.f32 %v4473, %v4908
        %v4926 = vadd.f32 %v4488, %v4910
        %v4927 = vadd.f32 %v4503, %v4911
        %v4928 = vadd.f32 %v4518, %v4912
        %v4929 = vadd.f32 %v4533, %v4913
        %v4930 = vadd.f32 %v4548, %v4914
        %v4931 = vadd.f32 %v4563, %v4915
        %v4932 = vadd.f32 %v4578, %v4916
        %v4933 = vadd.f32 %v4925, %v290
        %v4934 = vadd.f32 %v4926, %v536
        %v4935 = vadd.f32 %v4927, %v537
        %v4936 = vadd.f32 %v4928, %v538
        %v4937 = vadd.f32 %v4929, %v539
        %v4938 = vadd.f32 %v4930, %v540
        %v4939 = vadd.f32 %v4931, %v541
        %v4940 = vadd.f32 %v4932, %v542
        %v4941 = vsel %vm685, %v4933, -inf
        %v4942 = vsel %vm685, %v4934, -inf
        %v4943 = vsel %vm685, %v4935, -inf
        %v4944 = vsel %vm685, %v4936, -inf
        %v4945 = vsel %vm685, %v4937, -inf
        %v4946 = vmax.f32 %v4941, %v4945
        %v4947 = vsel %vm685, %v4938, -inf
        %v4948 = vmax.f32 %v4942, %v4947
        %v4949 = vsel %vm685, %v4939, -inf
        %v4950 = vmax.f32 %v4943, %v4949
        %v4951 = vsel %vm685, %v4940, -inf
        %v4952 = vmax.f32 %v4944, %v4951
        %v4953 = vmax.f32 %v4946, %v4948
        %v4954 = vmax.f32 %v4950, %v4952
        %v4955 = vmax.f32 %v4953, %v4954
        %v4956 = vperm.slane %v4955, 0
        %vm4957 = vcmp.eq.f32.partialorder %v4933, %v4956
        %vm4958 = vcmp.eq.f32.partialorder %v4934, %v4956
        %vm4959 = vcmp.eq.f32.partialorder %v4935, %v4956
        %vm4960 = vcmp.eq.f32.partialorder %v4936, %v4956
        %vm4961 = vcmp.eq.f32.partialorder %v4937, %v4956
        %vm4962 = vcmp.eq.f32.partialorder %v4938, %v4956
        %vm4963 = vcmp.eq.f32.partialorder %v4939, %v4956
        %vm4964 = vcmp.eq.f32.partialorder %v4940, %v4956
        %v4965 = vsel %vm4957, %v306, 8
        %v4966 = vsel %vm4958, %v878, 8
        %v4967 = vsel %vm4959, %v879, 8
        %v4968 = vsel %vm4960, %v880, 8
        %v4969 = vsel %vm4961, %v881, 8
        %v4970 = vsel %vm4962, %v882, 8
        %v4971 = vsel %vm4963, %v883, 8
        %v4972 = vsel %vm4964, %v884, 8
        %v4973 = vsel %vm685, %v4965, 2147483647
        %v4974 = vsel %vm685, %v4966, 2147483647
        %v4975 = vsel %vm685, %v4967, 2147483647
        %v4976 = vsel %vm685, %v4968, 2147483647
        %v4977 = vsel %vm685, %v4969, 2147483647
        %vm4978 = vcmp.lt.s32.totalorder %v4973, %v4977
        %v4979 = vsel %vm4978, %v4973, %v4977
        %v4980 = vsel %vm685, %v4970, 2147483647
        %vm4981 = vcmp.lt.s32.totalorder %v4974, %v4980
        %v4982 = vsel %vm4981, %v4974, %v4980
        %v4983 = vsel %vm685, %v4971, 2147483647
        %vm4984 = vcmp.lt.s32.totalorder %v4975, %v4983
        %v4985 = vsel %vm4984, %v4975, %v4983
        %v4986 = vsel %vm685, %v4972, 2147483647
        %vm4987 = vcmp.lt.s32.totalorder %v4976, %v4986
        %v4988 = vsel %vm4987, %v4976, %v4986
        %vm4989 = vcmp.lt.s32.totalorder %v4979, %v4982
        %v4990 = vsel %vm4989, %v4979, %v4982
        %vm4991 = vcmp.lt.s32.totalorder %v4985, %v4988
        %v4992 = vsel %vm4991, %v4985, %v4988
        %vm4993 = vcmp.lt.s32.totalorder %v4990, %v4992
        %v4994 = vsel %vm4993, %v4990, %v4992
        %4995 = vst [vmem:[%s235] sm:$0x1] %v4955
        %v4996 = vld [vmem:[%s4905] sm:$0xff]
        %v4997 = vperm.slane %v4994, 0
        %vm4998 = vcmp.eq.s32.totalorder %v306, %v4997
        %v4999 = vsel %vm4998, %v4996, 0
        %v5000 = vrot.slane %v4999, 4
        %v5001 = vadd.s32 %v4999, %v5000
        %v5002 = vrot.slane %v5001, 2
        %v5003 = vadd.s32 %v5001, %v5002
        %v5004 = vrot.slane %v5003, 1
        %v5005 = vadd.s32 %v5003, %v5004
        %v5006 = vld [vmem:[%s4367] sm:$0xff]
        %vm5007 = vcmp.eq.s32.totalorder %v306, %v5005
        %v5008 = vsel %vm5007, %v5006, 0
        %v5009 = vrot.slane %v5008, 4
        %v5010 = vadd.s32 %v5008, %v5009
        %v5011 = vrot.slane %v5010, 2
        %v5012 = vadd.s32 %v5010, %v5011
        %v5013 = vrot.slane %v5012, 1
        %v5014 = vadd.s32 %v5012, %v5013
        %v5015 = vld [vmem:[%s3829] sm:$0xff]
        %vm5016 = vcmp.eq.s32.totalorder %v306, %v5014
        %v5017 = vsel %vm5016, %v5015, 0
        %v5018 = vrot.slane %v5017, 4
        %v5019 = vadd.s32 %v5017, %v5018
        %v5020 = vrot.slane %v5019, 2
        %v5021 = vadd.s32 %v5019, %v5020
        %v5022 = vrot.slane %v5021, 1
        %v5023 = vadd.s32 %v5021, %v5022
        %v5024 = vld [vmem:[%s3291] sm:$0xff]
        %vm5025 = vcmp.eq.s32.totalorder %v306, %v5023
        %v5026 = vsel %vm5025, %v5024, 0
        %v5027 = vrot.slane %v5026, 4
        %v5028 = vadd.s32 %v5026, %v5027
        %v5029 = vrot.slane %v5028, 2
        %v5030 = vadd.s32 %v5028, %v5029
        %v5031 = vrot.slane %v5030, 1
        %v5032 = vadd.s32 %v5030, %v5031
        %v5033 = vld [vmem:[%s2753] sm:$0xff]
        %vm5034 = vcmp.eq.s32.totalorder %v306, %v5032
        %v5035 = vsel %vm5034, %v5033, 0
        %v5036 = vrot.slane %v5035, 4
        %v5037 = vadd.s32 %v5035, %v5036
        %v5038 = vrot.slane %v5037, 2
        %v5039 = vadd.s32 %v5037, %v5038
        %v5040 = vrot.slane %v5039, 1
        %v5041 = vadd.s32 %v5039, %v5040
        %v5042 = vld [vmem:[%s2215] sm:$0xff]
        %vm5043 = vcmp.eq.s32.totalorder %v306, %v5041
        %v5044 = vsel %vm5043, %v5042, 0
        %v5045 = vrot.slane %v5044, 4
        %v5046 = vadd.s32 %v5044, %v5045
        %v5047 = vrot.slane %v5046, 2
        %v5048 = vadd.s32 %v5046, %v5047
        %v5049 = vrot.slane %v5048, 1
        %v5050 = vadd.s32 %v5048, %v5049
        %v5051 = vld [vmem:[%s1677] sm:$0xff]
        %vm5052 = vcmp.eq.s32.totalorder %v306, %v5050
        %v5053 = vsel %vm5052, %v5051, 0
        %v5054 = vrot.slane %v5053, 4
        %v5055 = vadd.s32 %v5053, %v5054
        %v5056 = vrot.slane %v5055, 2
        %v5057 = vadd.s32 %v5055, %v5056
        %v5058 = vrot.slane %v5057, 1
        %v5059 = vadd.s32 %v5057, %v5058
        %v5060 = vld [vmem:[%s1139] sm:$0xff]
        %vm5061 = vcmp.eq.s32.totalorder %v306, %v5059
        %v5062 = vsel %vm5061, %v5060, 0
        %v5063 = vrot.slane %v5062, 4
        %v5064 = vadd.s32 %v5062, %v5063
        %v5065 = vrot.slane %v5064, 2
        %v5066 = vadd.s32 %v5064, %v5065
        %v5067 = vrot.slane %v5066, 1
        %v5068 = vadd.s32 %v5066, %v5067
        %v5069 = vsel %vm685, %v5068, %v5059
        %vm5070 = vcmask 1041408
        %v5071 = vsel %vm5070, %v5069, %v5050
        %vm5072 = vcmask 1042432
        %v5073 = vsel %vm5072, %v5071, %v5041
        %vm5074 = vcmask 1043456
        %v5075 = vsel %vm5074, %v5073, %v5032
        %vm5076 = vcmask 1044480
        %v5077 = vsel %vm5076, %v5075, %v5023
        %vm5078 = vcmask 1045504
        %v5079 = vsel %vm5078, %v5077, %v5014
        %vm5080 = vcmask 1046528
        %v5081 = vsel %vm5080, %v5079, %v5005
        %5082 = vst [vmem:[%s247] sm:$0xff] %v5081
        %5083 = vst [vmem:[%s247 + $0x8] sm:$0x1] %v4994
        %s5084 = sand.u32 %s73, 1
        %s5085 = scalar_lea.sflag [#allocation5], %s5084
        %s5086 = sand.u32 %s73, 1
        %s5087 = scalar_lea.vmem [#allocation4], %s5086
        %p5088 = scmp.lt.s32.totalorder %s18, 1
        %s5089 = scalar_select %p5088, %s18, 1
        %s5090 = smul.addr %s5089, 2
        %s5091 = smul.addr %s5090, 8
        %s5092 = scalar_lea.vmem %s3, %s5091
        // Predicated region
        $region67: #{crf_viterbi_batch.1} parent=61 // pred_check
          %p5093 = pneg %p83
        $region68: #{crf_viterbi_batch.1} parent=61 // pred_check_branch
          %5095 = sbr.rel (%p5093) target = $region70
        $region69: #{crf_viterbi_batch.1} parent=61 // pred_region
          %5097 = vsyncadd %s5085, 0
          %s5098 = scalar_lea.hbm %s2, %s18
          %s5100 = sshll.u32 %s5087, 4
          %s5101 = int_to_ptr.vmem [resolvable:$true] %s5100
          %s5102 = sshll.u32 %s5098, 4
          %s5103 = int_to_ptr.hbm [resolvable:$true] %s5102
          %5105 = dma.vmem_to_hbm [thread:$0]  %s5101, 16, %s5103, %s5085
        $region70: #{crf_viterbi_batch.1} parent=61 // pred_fallthru
          _
        // Predicated region
        $region71: #{crf_viterbi_batch.1} parent=61 // pred_check
          %p5106 = pneg %p109
        $region72: #{crf_viterbi_batch.1} parent=61 // pred_check_branch
          %5108 = sbr.rel (%p5106) target = $region74
        $region73: #{crf_viterbi_batch.1} parent=61 // pred_region
          _
        $region74: #{crf_viterbi_batch.1} parent=61 // pred_fallthru
          _
      $region62: #{crf_viterbi_batch.1} parent=5 // pred_fallthru
        _
      %p5109 = scmp.le.s32.totalorder 2, %s13
      // Predicated region
      $region75: #{crf_viterbi_batch.1} parent=5 // pred_check
        %p5110 = pneg %p5109
      $region76: #{crf_viterbi_batch.1} parent=5 // pred_check_branch
        %5112 = sbr.rel (%p5110) target = $region78
      $region77: #{crf_viterbi_batch.1} parent=5 // pred_region
        %s5113 = ssub.s32 %s13, 2
        // Predicated region
        $region79: #{crf_viterbi_batch.1} parent=77 // pred_check
          %p5114 = pneg %p89
        $region80: #{crf_viterbi_batch.1} parent=77 // pred_check_branch
          %5116 = sbr.rel (%p5114) target = $region82
        $region81: #{crf_viterbi_batch.1} parent=77 // pred_region
          %s5117 = sand.u32 %s74, 1
          %s5118 = scalar_lea.sflag [#allocation5], %s5117
          %s5119 = sand.u32 %s74, 1
          %s5120 = scalar_lea.vmem [#allocation4], %s5119
          %5122 = dma.done %s5118, 16
        $region82: #{crf_viterbi_batch.1} parent=77 // pred_fallthru
          _
        // Predicated region
        $region83: #{crf_viterbi_batch.1} parent=77 // pred_check
          %p5123 = pneg %p115
        $region84: #{crf_viterbi_batch.1} parent=77 // pred_check_branch
          %5125 = sbr.rel (%p5123) target = $region86
        $region85: #{crf_viterbi_batch.1} parent=77 // pred_region
          %p5126 = scmp.lt.s32.totalorder %s19, 1
          %s5127 = scalar_select %p5126, %s19, 1
          %s5128 = smul.addr %s5127, 2
          %s5129 = smul.addr %s5128, 8
          %s5130 = scalar_lea.vmem %s3, %s5129
        $region86: #{crf_viterbi_batch.1} parent=77 // pred_fallthru
          _
      $region78: #{crf_viterbi_batch.1} parent=5 // pred_fallthru
        _
    $region6: #{crf_viterbi_batch.1} parent=1 // loop_footer
      %s17 = sadd.s32 1, %s13
    $region7: #{crf_viterbi_batch.1} parent=1 // loop_footer_branch
      %12 = sbr.rel target = $region3
    $region8: #{crf_viterbi_batch.1} parent=1 // loop_exit
      _
    %5131 = vsyncpa [#allocation5], 1
    %s5132 = scalar_lea.sflag [#allocation5], 1
    %5133 = vsyncpa %s5132, 1

</llo_original>
